<compile_context>
chip_gen: v7x
topology: tpu7x:2x2x1
jax: 0.10.0
libtpu: 0.0.40
codegen_flags: <defaults>
</compile_context>

<pallas_src>
import jax
import jax.numpy as jnp
from jax.experimental import pallas as pl
from jax.experimental.pallas import tpu as pltpu


NEG_SLOPE = 0.2
BN_EPS = 1e-5

# Packed small-vector layout (all offsets are multiples of 128 -> lane-aligned).
_B1_LO, _B1_HI = 0, 128
_G2_LO, _G2_HI = 128, 384
_BE2_LO, _BE2_HI = 384, 640
_G3_LO, _G3_HI = 640, 1152
_BE3_LO, _BE3_HI = 1152, 1664
_G4_LO, _G4_HI = 1664, 2688
_BE4_LO, _BE4_HI = 2688, 3712
_VEC_TOTAL = 3712


def _leaky(h):
    return jnp.where(h >= 0, h, NEG_SLOPE * h)


def _bn_leaky(h, gamma, beta):
    # Training-mode BatchNorm1d (batch mean, biased batch variance), folded to a
    # single scale/shift, with one-pass statistics.
    n = h.shape[0]
    s = jnp.sum(h, axis=0, keepdims=True)
    ss = jnp.sum(h * h, axis=0, keepdims=True)
    mean = s * (1.0 / n)
    var = jnp.maximum(ss * (1.0 / n) - mean * mean, 0.0)
    scale = gamma * jax.lax.rsqrt(var + BN_EPS)
    shift = beta - mean * scale
    return _leaky(h * scale + shift)


def generator_kernel(x_ref, w1_ref, w2_ref, w3_ref, w4_ref, vec_ref,
                     w5_ref, b5_ref, out_ref, h4_ref):
    # Layers 1-4 run once (full batch needed for BN stats); result cached in VMEM.
    @pl.when(pl.program_id(0) == 0)
    def _():
        vec = vec_ref[...]
        b1 = vec[:, _B1_LO:_B1_HI]
        g2, be2 = vec[:, _G2_LO:_G2_HI], vec[:, _BE2_LO:_BE2_HI]
        g3, be3 = vec[:, _G3_LO:_G3_HI], vec[:, _BE3_LO:_BE3_HI]
        g4, be4 = vec[:, _G4_LO:_G4_HI], vec[:, _BE4_LO:_BE4_HI]

        x = x_ref[...].astype(jnp.bfloat16)
        h = jnp.dot(x, w1_ref[...], preferred_element_type=jnp.float32) + b1
        h = _leaky(h)

        # Linear biases for layers 2-4 are omitted: they are cancelled exactly
        # by the training-mode BatchNorm mean subtraction.
        h = jnp.dot(h.astype(jnp.bfloat16), w2_ref[...],
                    preferred_element_type=jnp.float32)
        h = _bn_leaky(h, g2, be2)

        h = jnp.dot(h.astype(jnp.bfloat16), w3_ref[...],
                    preferred_element_type=jnp.float32)
        h = _bn_leaky(h, g3, be3)

        h = jnp.dot(h.astype(jnp.bfloat16), w4_ref[...],
                    preferred_element_type=jnp.float32)
        h = _bn_leaky(h, g4, be4)

        h4_ref[...] = h.astype(jnp.bfloat16)

    # Layer 5 tile: streamed w5 / b5 / out columns. tanh is elementwise, so
    # applying it before the wrapper-side reshape equals applying after view().
    y = jnp.dot(h4_ref[...], w5_ref[...], preferred_element_type=jnp.float32)
    y = y + b5_ref[...]
    out_ref[...] = jnp.tanh(y)


def _pick_col_tile(size):
    for t in (2048, 1024, 512, 256, 128):
        if size % t == 0:
            return t
    return size  # small / irregular size -> single full tile


def _vmem_limit_bytes():
    cap = 128 << 20
    try:
        cap = int(pltpu.get_tpu_info().vmem_capacity_bytes)
    except Exception:
        pass
    # Never request the full physical VMEM (v7x has only 64 MiB); the kernel's
    # real footprint (bf16 weights + one streamed w5 tile + activations) is far
    # below this cap.
    return min(48 << 20, (cap * 3) // 4)


def init_generator_params(key, in_features, image_shape):
    """Parameters matching PyTorch layer shapes.

    Linear weights are stored pre-transposed as (in, out) in bf16 (f32 MXU
    accumulation in-kernel). b2/b3/b4 are not materialized (exactly cancelled
    by the following training-mode BatchNorm). Small vectors are packed.
    """
    channels, height, width = (int(s) for s in image_shape)
    size = channels * height * width
    dims = [in_features, 128, 256, 512, 1024, size]

    keys = jax.random.split(key, 10)
    params = {}
    biases = {}
    for li in range(5):
        fan_in, fan_out = dims[li], dims[li + 1]
        bound = 1.0 / (fan_in ** 0.5)
        w = jax.random.uniform(keys[2 * li], (fan_in, fan_out),
                               jnp.float32, -bound, bound)
        b = jax.random.uniform(keys[2 * li + 1], (1, fan_out),
                               jnp.float32, -bound, bound)
        params[f"w{li + 1}"] = w.astype(jnp.bfloat16)
        biases[li + 1] = b

    # BatchNorm affine params (PyTorch default init: gamma=1, beta=0).
    g = {w_: jnp.ones((1, w_), jnp.float32) for w_ in (256, 512, 1024)}
    be = {w_: jnp.zeros((1, w_), jnp.float32) for w_ in (256, 512, 1024)}

    params["vec"] = jnp.concatenate(
        [biases[1], g[256], be[256], g[512], be[512], g[1024], be[1024]],
        axis=1)
    assert params["vec"].shape == (1, _VEC_TOTAL)
    params["b5"] = biases[5]
    return params, (channels, height, width)


def generator_forward(x, params, image_shape):
    channels, height, width = image_shape
    size = channels * height * width
    batch, in_features = x.shape

    tn = _pick_col_tile(size)
    grid = (size // tn,)

    in_specs = [
        pl.BlockSpec((batch, in_features), lambda j: (0, 0)),   # x
        pl.BlockSpec((in_features, 128), lambda j: (0, 0)),     # w1 (bf16)
        pl.BlockSpec((128, 256), lambda j: (0, 0)),             # w2 (bf16)
        pl.BlockSpec((256, 512), lambda j: (0, 0)),             # w3 (bf16)
        pl.BlockSpec((512, 1024), lambda j: (0, 0)),            # w4 (bf16)
        pl.BlockSpec((1, _VEC_TOTAL), lambda j: (0, 0)),        # packed vectors
        pl.BlockSpec((1024, tn), lambda j: (0, j)),             # w5 tile (streamed)
        pl.BlockSpec((1, tn), lambda j: (0, j)),                # b5 tile
    ]
    out_specs = pl.BlockSpec((batch, tn), lambda j: (0, j))

    flat = pl.pallas_call(
        generator_kernel,
        out_shape=jax.ShapeDtypeStruct((batch, size), jnp.float32),
        grid=grid,
        in_specs=in_specs,
        out_specs=out_specs,
        scratch_shapes=[pltpu.VMEM((batch, 1024), jnp.bfloat16)],
        compiler_params=pltpu.CompilerParams(
            # "arbitrary": layer-5 tiles depend on the step-0 scratch write and
            # BN needs full-batch stats, so the axis must run sequentially.
            dimension_semantics=("arbitrary",),
            vmem_limit_bytes=_vmem_limit_bytes(),
        ),
    )(
        x, params["w1"], params["w2"], params["w3"], params["w4"],
        params["vec"], params["w5"], params["b5"],
    )

    # Matches PyTorch: x.view(-1, channels, width, height)
    return flat.reshape(batch, channels, width, height)


def _reference_forward(x, params, image_shape):
    """Pure-JAX reference with identical numerics (bf16 dot inputs, f32 accum)."""
    channels, height, width = image_shape
    vec = params["vec"]
    b1 = vec[:, _B1_LO:_B1_HI]
    g2, be2 = vec[:, _G2_LO:_G2_HI], vec[:, _BE2_LO:_BE2_HI]
    g3, be3 = vec[:, _G3_LO:_G3_HI], vec[:, _BE3_LO:_BE3_HI]
    g4, be4 = vec[:, _G4_LO:_G4_HI], vec[:, _BE4_LO:_BE4_HI]

    def dot(a, w):
        return jnp.dot(a.astype(jnp.bfloat16), w,
                       preferred_element_type=jnp.float32)

    def bn(h, gamma, beta):
        mean = jnp.mean(h, axis=0, keepdims=True)
        var = jnp.mean((h - mean) ** 2, axis=0, keepdims=True)
        return (h - mean) * jax.lax.rsqrt(var + BN_EPS) * gamma + beta

    h = _leaky(dot(x, params["w1"]) + b1)
    h = _leaky(bn(dot(h, params["w2"]), g2, be2))
    h = _leaky(bn(dot(h, params["w3"]), g3, be3))
    h = _leaky(bn(dot(h, params["w4"]), g4, be4))
    y = jnp.tanh(dot(h, params["w5"]) + params["b5"])
    return y.reshape(x.shape[0], channels, width, height)


if __name__ == "__main__":
    key = jax.random.PRNGKey(0)
    in_features = 32
    image_shape = (1, 16, 16)   # (C, H, W) -> size = 256
    batch = 8

    pkey, xkey = jax.random.split(key)
    params, chw = init_generator_params(pkey, in_features, image_shape)
    x = jax.random.normal(xkey, (batch, in_features), jnp.float32)

    out = generator_forward(x, params, chw)
    jax.block_until_ready(out)

    assert out.shape == (batch, image_shape[0], image_shape[2], image_shape[1])
    assert bool(jnp.all(jnp.isfinite(out)))
    assert bool(jnp.all(jnp.abs(out) <= 1.0))  # tanh range

    ref = _reference_forward(x, params, chw)
    err = float(jnp.max(jnp.abs(out - ref)))
    assert err < 3e-2, f"mismatch vs reference: max abs err {err}"

    print("KERNEL_OK")
</pallas_src>

<mosaic_0001>
module attributes {stable_mosaic.version = 11 : i64} {
  func.func @generator_kernel(%arg0: i32, %arg1: memref<8x32xf32, #tpu.memory_space<vmem>>, %arg2: memref<32x128xbf16, #tpu.memory_space<vmem>>, %arg3: memref<128x256xbf16, #tpu.memory_space<vmem>>, %arg4: memref<256x512xbf16, #tpu.memory_space<vmem>>, %arg5: memref<512x1024xbf16, #tpu.memory_space<vmem>>, %arg6: memref<1x3712xf32, #tpu.memory_space<vmem>>, %arg7: memref<1024x256xbf16, #tpu.memory_space<vmem>>, %arg8: memref<1x256xf32, #tpu.memory_space<vmem>>, %arg9: memref<8x256xf32, #tpu.memory_space<vmem>>, %arg10: memref<8x1024xbf16, #tpu.memory_space<vmem>>) attributes {dimension_semantics = [#tpu.dimension_semantics<arbitrary>], iteration_bounds = array<i64: 1>, scalar_prefetch = 0 : i64, scratch_operands = 1 : i64, tpu.core_type = #tpu.core_type<tc>, window_params = [{pipeline_mode = #tpu.pipeline_mode<synchronous>, transform_indices = @transform_0, window_bounds = array<i64: 8, 32>}, {pipeline_mode = #tpu.pipeline_mode<synchronous>, transform_indices = @transform_1, window_bounds = array<i64: 32, 128>}, {pipeline_mode = #tpu.pipeline_mode<synchronous>, transform_indices = @transform_2, window_bounds = array<i64: 128, 256>}, {pipeline_mode = #tpu.pipeline_mode<synchronous>, transform_indices = @transform_3, window_bounds = array<i64: 256, 512>}, {pipeline_mode = #tpu.pipeline_mode<synchronous>, transform_indices = @transform_4, window_bounds = array<i64: 512, 1024>}, {pipeline_mode = #tpu.pipeline_mode<synchronous>, transform_indices = @transform_5, window_bounds = array<i64: 1, 3712>}, {transform_indices = @transform_6, window_bounds = array<i64: 1024, 256>}, {transform_indices = @transform_7, window_bounds = array<i64: 1, 256>}, {transform_indices = @transform_8, window_bounds = array<i64: 8, 256>}]} {
    %c0_i32 = arith.constant 0 : i32
    %0 = arith.cmpi eq, %arg0, %c0_i32 : i32
    %1 = arith.extui %0 : i1 to i32
    %c0_i32_0 = arith.constant 0 : i32
    %2 = arith.cmpi ne, %1, %c0_i32_0 : i32
    scf.if %2 {
      %c0_8 = arith.constant 0 : index
      %c0_9 = arith.constant 0 : index
      %11 = vector.load %arg6[%c0_8, %c0_9] : memref<1x3712xf32, #tpu.memory_space<vmem>>, vector<1x3712xf32>
      %12 = vector.extract_strided_slice %11 {offsets = [0, 0], sizes = [1, 128], strides = [1, 1]} : vector<1x3712xf32> to vector<1x128xf32>
      %13 = vector.extract_strided_slice %11 {offsets = [0, 128], sizes = [1, 256], strides = [1, 1]} : vector<1x3712xf32> to vector<1x256xf32>
      %14 = vector.extract_strided_slice %11 {offsets = [0, 384], sizes = [1, 256], strides = [1, 1]} : vector<1x3712xf32> to vector<1x256xf32>
      %15 = vector.extract_strided_slice %11 {offsets = [0, 640], sizes = [1, 512], strides = [1, 1]} : vector<1x3712xf32> to vector<1x512xf32>
      %16 = vector.extract_strided_slice %11 {offsets = [0, 1152], sizes = [1, 512], strides = [1, 1]} : vector<1x3712xf32> to vector<1x512xf32>
      %17 = vector.extract_strided_slice %11 {offsets = [0, 1664], sizes = [1, 1024], strides = [1, 1]} : vector<1x3712xf32> to vector<1x1024xf32>
      %18 = vector.extract_strided_slice %11 {offsets = [0, 2688], sizes = [1, 1024], strides = [1, 1]} : vector<1x3712xf32> to vector<1x1024xf32>
      %c0_10 = arith.constant 0 : index
      %c0_11 = arith.constant 0 : index
      %19 = vector.load %arg1[%c0_10, %c0_11] : memref<8x32xf32, #tpu.memory_space<vmem>>, vector<8x32xf32>
      %20 = arith.truncf %19 : vector<8x32xf32> to vector<8x32xbf16>
      %c0_12 = arith.constant 0 : index
      %c0_13 = arith.constant 0 : index
      %21 = vector.load %arg2[%c0_12, %c0_13] : memref<32x128xbf16, #tpu.memory_space<vmem>>, vector<32x128xbf16>
      %cst_14 = arith.constant dense<0.000000e+00> : vector<8x128xf32>
      %22 = tpu.matmul %20, %21, %cst_14 {dimension_numbers = #tpu.dot_dimension_numbers<[1], [0], [0], [1], [0, 0, 1, 1], [], []>} : vector<8x32xbf16>, vector<32x128xbf16>, vector<8x128xf32> -> vector<8x128xf32>
      %23 = vector.broadcast %12 : vector<1x128xf32> to vector<8x128xf32>
      %24 = arith.addf %22, %23 : vector<8x128xf32>
      %cst_15 = arith.constant 0.000000e+00 : f32
      %25 = vector.broadcast %cst_15 : f32 to vector<8x128xf32>
      %26 = arith.cmpf oge, %24, %25 : vector<8x128xf32>
      %cst_16 = arith.constant 2.000000e-01 : f32
      %27 = vector.broadcast %cst_16 : f32 to vector<8x128xf32>
      %28 = arith.mulf %27, %24 : vector<8x128xf32>
      %29 = arith.select %26, %24, %28 : vector<8x128xi1>, vector<8x128xf32>
      %30 = arith.truncf %29 : vector<8x128xf32> to vector<8x128xbf16>
      %c0_17 = arith.constant 0 : index
      %c0_18 = arith.constant 0 : index
      %31 = vector.load %arg3[%c0_17, %c0_18] : memref<128x256xbf16, #tpu.memory_space<vmem>>, vector<128x256xbf16>
      %cst_19 = arith.constant dense<0.000000e+00> : vector<8x256xf32>
      %32 = tpu.matmul %30, %31, %cst_19 {dimension_numbers = #tpu.dot_dimension_numbers<[1], [0], [0], [1], [0, 0, 1, 1], [], []>} : vector<8x128xbf16>, vector<128x256xbf16>, vector<8x256xf32> -> vector<8x256xf32>
      %cst_20 = arith.constant dense<0.000000e+00> : vector<256xf32>
      %33 = vector.multi_reduction <add>, %32, %cst_20 [0] : vector<8x256xf32> to vector<256xf32>
      %34 = vector.shape_cast %33 : vector<256xf32> to vector<1x256xf32>
      %35 = arith.mulf %32, %32 : vector<8x256xf32>
      %cst_21 = arith.constant dense<0.000000e+00> : vector<256xf32>
      %36 = vector.multi_reduction <add>, %35, %cst_21 [0] : vector<8x256xf32> to vector<256xf32>
      %37 = vector.shape_cast %36 : vector<256xf32> to vector<1x256xf32>
      %cst_22 = arith.constant 1.250000e-01 : f32
      %38 = vector.broadcast %cst_22 : f32 to vector<1x256xf32>
      %39 = arith.mulf %34, %38 : vector<1x256xf32>
      %cst_23 = arith.constant 1.250000e-01 : f32
      %40 = vector.broadcast %cst_23 : f32 to vector<1x256xf32>
      %41 = arith.mulf %37, %40 : vector<1x256xf32>
      %42 = arith.mulf %39, %39 : vector<1x256xf32>
      %43 = arith.subf %41, %42 : vector<1x256xf32>
      %cst_24 = arith.constant 0.000000e+00 : f32
      %44 = vector.broadcast %cst_24 : f32 to vector<1x256xf32>
      %45 = arith.maximumf %43, %44 : vector<1x256xf32>
      %cst_25 = arith.constant 9.99999974E-6 : f32
      %46 = vector.broadcast %cst_25 : f32 to vector<1x256xf32>
      %47 = arith.addf %45, %46 : vector<1x256xf32>
      %48 = math.rsqrt %47 : vector<1x256xf32>
      %49 = arith.mulf %13, %48 : vector<1x256xf32>
      %50 = arith.mulf %39, %49 : vector<1x256xf32>
      %51 = arith.subf %14, %50 : vector<1x256xf32>
      %52 = vector.broadcast %49 : vector<1x256xf32> to vector<8x256xf32>
      %53 = arith.mulf %32, %52 : vector<8x256xf32>
      %54 = vector.broadcast %51 : vector<1x256xf32> to vector<8x256xf32>
      %55 = arith.addf %53, %54 : vector<8x256xf32>
      %cst_26 = arith.constant 0.000000e+00 : f32
      %56 = vector.broadcast %cst_26 : f32 to vector<8x256xf32>
      %57 = arith.cmpf oge, %55, %56 : vector<8x256xf32>
      %cst_27 = arith.constant 2.000000e-01 : f32
      %58 = vector.broadcast %cst_27 : f32 to vector<8x256xf32>
      %59 = arith.mulf %58, %55 : vector<8x256xf32>
      %60 = arith.select %57, %55, %59 : vector<8x256xi1>, vector<8x256xf32>
      %61 = arith.truncf %60 : vector<8x256xf32> to vector<8x256xbf16>
      %c0_28 = arith.constant 0 : index
      %c0_29 = arith.constant 0 : index
      %62 = vector.load %arg4[%c0_28, %c0_29] : memref<256x512xbf16, #tpu.memory_space<vmem>>, vector<256x512xbf16>
      %cst_30 = arith.constant dense<0.000000e+00> : vector<8x512xf32>
      %63 = tpu.matmul %61, %62, %cst_30 {dimension_numbers = #tpu.dot_dimension_numbers<[1], [0], [0], [1], [0, 0, 1, 1], [], []>} : vector<8x256xbf16>, vector<256x512xbf16>, vector<8x512xf32> -> vector<8x512xf32>
      %cst_31 = arith.constant dense<0.000000e+00> : vector<512xf32>
      %64 = vector.multi_reduction <add>, %63, %cst_31 [0] : vector<8x512xf32> to vector<512xf32>
      %65 = vector.shape_cast %64 : vector<512xf32> to vector<1x512xf32>
      %66 = arith.mulf %63, %63 : vector<8x512xf32>
      %cst_32 = arith.constant dense<0.000000e+00> : vector<512xf32>
      %67 = vector.multi_reduction <add>, %66, %cst_32 [0] : vector<8x512xf32> to vector<512xf32>
      %68 = vector.shape_cast %67 : vector<512xf32> to vector<1x512xf32>
      %cst_33 = arith.constant 1.250000e-01 : f32
      %69 = vector.broadcast %cst_33 : f32 to vector<1x512xf32>
      %70 = arith.mulf %65, %69 : vector<1x512xf32>
      %cst_34 = arith.constant 1.250000e-01 : f32
      %71 = vector.broadcast %cst_34 : f32 to vector<1x512xf32>
      %72 = arith.mulf %68, %71 : vector<1x512xf32>
      %73 = arith.mulf %70, %70 : vector<1x512xf32>
      %74 = arith.subf %72, %73 : vector<1x512xf32>
      %cst_35 = arith.constant 0.000000e+00 : f32
      %75 = vector.broadcast %cst_35 : f32 to vector<1x512xf32>
      %76 = arith.maximumf %74, %75 : vector<1x512xf32>
      %cst_36 = arith.constant 9.99999974E-6 : f32
      %77 = vector.broadcast %cst_36 : f32 to vector<1x512xf32>
      %78 = arith.addf %76, %77 : vector<1x512xf32>
      %79 = math.rsqrt %78 : vector<1x512xf32>
      %80 = arith.mulf %15, %79 : vector<1x512xf32>
      %81 = arith.mulf %70, %80 : vector<1x512xf32>
      %82 = arith.subf %16, %81 : vector<1x512xf32>
      %83 = vector.broadcast %80 : vector<1x512xf32> to vector<8x512xf32>
      %84 = arith.mulf %63, %83 : vector<8x512xf32>
      %85 = vector.broadcast %82 : vector<1x512xf32> to vector<8x512xf32>
      %86 = arith.addf %84, %85 : vector<8x512xf32>
      %cst_37 = arith.constant 0.000000e+00 : f32
      %87 = vector.broadcast %cst_37 : f32 to vector<8x512xf32>
      %88 = arith.cmpf oge, %86, %87 : vector<8x512xf32>
      %cst_38 = arith.constant 2.000000e-01 : f32
      %89 = vector.broadcast %cst_38 : f32 to vector<8x512xf32>
      %90 = arith.mulf %89, %86 : vector<8x512xf32>
      %91 = arith.select %88, %86, %90 : vector<8x512xi1>, vector<8x512xf32>
      %92 = arith.truncf %91 : vector<8x512xf32> to vector<8x512xbf16>
      %c0_39 = arith.constant 0 : index
      %c0_40 = arith.constant 0 : index
      %93 = vector.load %arg5[%c0_39, %c0_40] : memref<512x1024xbf16, #tpu.memory_space<vmem>>, vector<512x1024xbf16>
      %cst_41 = arith.constant dense<0.000000e+00> : vector<8x1024xf32>
      %94 = tpu.matmul %92, %93, %cst_41 {dimension_numbers = #tpu.dot_dimension_numbers<[1], [0], [0], [1], [0, 0, 1, 1], [], []>} : vector<8x512xbf16>, vector<512x1024xbf16>, vector<8x1024xf32> -> vector<8x1024xf32>
      %cst_42 = arith.constant dense<0.000000e+00> : vector<1024xf32>
      %95 = vector.multi_reduction <add>, %94, %cst_42 [0] : vector<8x1024xf32> to vector<1024xf32>
      %96 = vector.shape_cast %95 : vector<1024xf32> to vector<1x1024xf32>
      %97 = arith.mulf %94, %94 : vector<8x1024xf32>
      %cst_43 = arith.constant dense<0.000000e+00> : vector<1024xf32>
      %98 = vector.multi_reduction <add>, %97, %cst_43 [0] : vector<8x1024xf32> to vector<1024xf32>
      %99 = vector.shape_cast %98 : vector<1024xf32> to vector<1x1024xf32>
      %cst_44 = arith.constant 1.250000e-01 : f32
      %100 = vector.broadcast %cst_44 : f32 to vector<1x1024xf32>
      %101 = arith.mulf %96, %100 : vector<1x1024xf32>
      %cst_45 = arith.constant 1.250000e-01 : f32
      %102 = vector.broadcast %cst_45 : f32 to vector<1x1024xf32>
      %103 = arith.mulf %99, %102 : vector<1x1024xf32>
      %104 = arith.mulf %101, %101 : vector<1x1024xf32>
      %105 = arith.subf %103, %104 : vector<1x1024xf32>
      %cst_46 = arith.constant 0.000000e+00 : f32
      %106 = vector.broadcast %cst_46 : f32 to vector<1x1024xf32>
      %107 = arith.maximumf %105, %106 : vector<1x1024xf32>
      %cst_47 = arith.constant 9.99999974E-6 : f32
      %108 = vector.broadcast %cst_47 : f32 to vector<1x1024xf32>
      %109 = arith.addf %107, %108 : vector<1x1024xf32>
      %110 = math.rsqrt %109 : vector<1x1024xf32>
      %111 = arith.mulf %17, %110 : vector<1x1024xf32>
      %112 = arith.mulf %101, %111 : vector<1x1024xf32>
      %113 = arith.subf %18, %112 : vector<1x1024xf32>
      %114 = vector.broadcast %111 : vector<1x1024xf32> to vector<8x1024xf32>
      %115 = arith.mulf %94, %114 : vector<8x1024xf32>
      %116 = vector.broadcast %113 : vector<1x1024xf32> to vector<8x1024xf32>
      %117 = arith.addf %115, %116 : vector<8x1024xf32>
      %cst_48 = arith.constant 0.000000e+00 : f32
      %118 = vector.broadcast %cst_48 : f32 to vector<8x1024xf32>
      %119 = arith.cmpf oge, %117, %118 : vector<8x1024xf32>
      %cst_49 = arith.constant 2.000000e-01 : f32
      %120 = vector.broadcast %cst_49 : f32 to vector<8x1024xf32>
      %121 = arith.mulf %120, %117 : vector<8x1024xf32>
      %122 = arith.select %119, %117, %121 : vector<8x1024xi1>, vector<8x1024xf32>
      %123 = arith.truncf %122 : vector<8x1024xf32> to vector<8x1024xbf16>
      %c0_50 = arith.constant 0 : index
      %c0_51 = arith.constant 0 : index
      %124 = vector.load %arg10[%c0_50, %c0_51] : memref<8x1024xbf16, #tpu.memory_space<vmem>>, vector<8x1024xbf16>
      tpu.vector_store %arg10[%c0_50, %c0_51], %123 {strides = array<i32>} : memref<8x1024xbf16, #tpu.memory_space<vmem>>, vector<8x1024xbf16>,
    } else {
    }
    %c0 = arith.constant 0 : index
    %c0_1 = arith.constant 0 : index
    %3 = vector.load %arg10[%c0, %c0_1] : memref<8x1024xbf16, #tpu.memory_space<vmem>>, vector<8x1024xbf16>
    %c0_2 = arith.constant 0 : index
    %c0_3 = arith.constant 0 : index
    %4 = vector.load %arg7[%c0_2, %c0_3] : memref<1024x256xbf16, #tpu.memory_space<vmem>>, vector<1024x256xbf16>
    %cst = arith.constant dense<0.000000e+00> : vector<8x256xf32>
    %5 = tpu.matmul %3, %4, %cst {dimension_numbers = #tpu.dot_dimension_numbers<[1], [0], [0], [1], [0, 0, 1, 1], [], []>} : vector<8x1024xbf16>, vector<1024x256xbf16>, vector<8x256xf32> -> vector<8x256xf32>
    %c0_4 = arith.constant 0 : index
    %c0_5 = arith.constant 0 : index
    %6 = vector.load %arg8[%c0_4, %c0_5] : memref<1x256xf32, #tpu.memory_space<vmem>>, vector<1x256xf32>
    %7 = vector.broadcast %6 : vector<1x256xf32> to vector<8x256xf32>
    %8 = arith.addf %5, %7 : vector<8x256xf32>
    %9 = math.tanh %8 : vector<8x256xf32>
    %c0_6 = arith.constant 0 : index
    %c0_7 = arith.constant 0 : index
    %10 = vector.load %arg9[%c0_6, %c0_7] : memref<8x256xf32, #tpu.memory_space<vmem>>, vector<8x256xf32>
    tpu.vector_store %arg9[%c0_6, %c0_7], %9 {strides = array<i32>} : memref<8x256xf32, #tpu.memory_space<vmem>>, vector<8x256xf32>,
    return
  }
  func.func @transform_0(%arg0: i32) -> (i32, i32) {
    %c0_i32 = arith.constant 0 : i32
    %c0_i32_0 = arith.constant 0 : i32
    %c0_i32_1 = arith.constant 0 : i32
    return %c0_i32, %c0_i32_0 : i32, i32
  }
  func.func @transform_1(%arg0: i32) -> (i32, i32) {
    %c0_i32 = arith.constant 0 : i32
    %c0_i32_0 = arith.constant 0 : i32
    %c0_i32_1 = arith.constant 0 : i32
    return %c0_i32, %c0_i32_0 : i32, i32
  }
  func.func @transform_2(%arg0: i32) -> (i32, i32) {
    %c0_i32 = arith.constant 0 : i32
    %c0_i32_0 = arith.constant 0 : i32
    %c0_i32_1 = arith.constant 0 : i32
    return %c0_i32, %c0_i32_0 : i32, i32
  }
  func.func @transform_3(%arg0: i32) -> (i32, i32) {
    %c0_i32 = arith.constant 0 : i32
    %c0_i32_0 = arith.constant 0 : i32
    %c0_i32_1 = arith.constant 0 : i32
    return %c0_i32, %c0_i32_0 : i32, i32
  }
  func.func @transform_4(%arg0: i32) -> (i32, i32) {
    %c0_i32 = arith.constant 0 : i32
    %c0_i32_0 = arith.constant 0 : i32
    %c0_i32_1 = arith.constant 0 : i32
    return %c0_i32, %c0_i32_0 : i32, i32
  }
  func.func @transform_5(%arg0: i32) -> (i32, i32) {
    %c0_i32 = arith.constant 0 : i32
    %c0_i32_0 = arith.constant 0 : i32
    %c0_i32_1 = arith.constant 0 : i32
    return %c0_i32, %c0_i32_0 : i32, i32
  }
  func.func @transform_6(%arg0: i32) -> (i32, i32) {
    %c0_i32 = arith.constant 0 : i32
    %c0_i32_0 = arith.constant 0 : i32
    return %c0_i32, %arg0 : i32, i32
  }
  func.func @transform_7(%arg0: i32) -> (i32, i32) {
    %c0_i32 = arith.constant 0 : i32
    %c0_i32_0 = arith.constant 0 : i32
    return %c0_i32, %arg0 : i32, i32
  }
  func.func @transform_8(%arg0: i32) -> (i32, i32) {
    %c0_i32 = arith.constant 0 : i32
    %c0_i32_0 = arith.constant 0 : i32
    return %c0_i32, %arg0 : i32, i32
  }
}

</mosaic_0001>

<llo_original>
// kernel: tpu_custom_call.1
$region0: #{tpu_custom_call.1}
  #allocation0 [shape = 'u32[]', space=smem, size = 0x4, offset = 0x4, fixed_abs, tag = 'smem constant byte address 0x4 - core index']
  #allocation1 [shape = 'u32[144,128]{1,0:T(1,128)}', space=vmem, size = 0x12000, scoped, tag = 'internal scratch']
  #allocation2 [shape = 'bf16[8,1024]{1,0:T(8,128)(2,1)}', space=vmem, size = 0x4000, scoped, tag = 'scratch operand']
  %s0 = inlined_call_operand.hbm [shape: f32[8,32], index: 0, kind: input, shape index: {}]
  %s1 = inlined_call_operand.hbm [shape: bf16[32,128], index: 1, kind: input, shape index: {}]
  %s2 = inlined_call_operand.hbm [shape: bf16[128,256], index: 2, kind: input, shape index: {}]
  %s3 = inlined_call_operand.hbm [shape: bf16[256,512], index: 3, kind: input, shape index: {}]
  %s4 = inlined_call_operand.hbm [shape: bf16[512,1024], index: 4, kind: input, shape index: {}]
  %s5 = inlined_call_operand.hbm [shape: f32[1,3712], index: 5, kind: input, shape index: {}]
  %s6 = inlined_call_operand.hbm [shape: bf16[1024,256], index: 6, kind: input, shape index: {}]
  %s7 = inlined_call_operand.vmem [shape: f32[1,256], index: 7, kind: input, shape index: {}]
  %s8 = inlined_call_operand.hbm [shape: f32[8,256], index: 8, kind: output, shape index: {}]
  %s9 = sld [smem:[#allocation0]]
  $region74: #{tpu_custom_call.1} parent=0
    _
  %s11 = ssub.s32 1, %s9
  %s12 = scalar_select 0, %s11, %s9
  $region1: #{tpu_custom_call.1} parent=0
    #allocation3 [shape = 'u8[4096]{0}', space=vmem, size = 0x1000, scoped, tag = 'input window, operand 0, single buffered']
    #allocation4 [shape = 's32[1]{0}', space=sflag, size = 0x4, scoped, tag = 'scoped memory for tpu_custom_call.1']
    #allocation5 [shape = 's32[1]{0}', space=sflag, size = 0x4, scoped, tag = 'scoped memory for tpu_custom_call.1']
    #allocation6 [shape = 'u8[8192]{0}', space=vmem, size = 0x2000, scoped, tag = 'input window, operand 1, single buffered']
    #allocation7 [shape = 's32[1]{0}', space=sflag, size = 0x4, scoped, tag = 'scoped memory for tpu_custom_call.1']
    #allocation8 [shape = 'u8[65536]{0}', space=vmem, size = 0x10000, scoped, tag = 'input window, operand 2, single buffered']
    #allocation9 [shape = 'u8[262144]{0}', space=vmem, size = 0x40000, scoped, tag = 'input window, operand 3, single buffered']
    #allocation10 [shape = 's32[1]{0}', space=sflag, size = 0x4, scoped, tag = 'scoped memory for tpu_custom_call.1']
    #allocation11 [shape = 'u8[1048576]{0}', space=vmem, size = 0x100000, scoped, tag = 'input window, operand 4, single buffered']
    #allocation12 [shape = 'u8[14848]{0}', space=vmem, size = 0x3c00, scoped, tag = 'input window, operand 5, single buffered']
    #allocation13 [shape = 's32[1]{0}', space=sflag, size = 0x4, scoped, tag = 'scoped memory for tpu_custom_call.1']
    #allocation14 [shape = 'u8[524288]{0}', space=vmem, size = 0x80000, scoped, tag = 'input window, operand 6, single buffered']
    #allocation15 [shape = 'u8[8192]{0}', space=vmem, size = 0x2000, scoped, tag = 'output window, operand 0, single buffered']
    %13 = vsyncpa [#allocation4], 0
    %14 = vsyncpa [#allocation7], 0
    %15 = vsyncpa [#allocation10], 0
    %16 = vsyncpa [#allocation13], 0
    %17 = vsyncpa [#allocation5], 0
    // Predicated region
    $region2: #{tpu_custom_call.1} parent=1 // pred_check
      _
    $region3: #{tpu_custom_call.1} parent=1 // pred_check_branch
      %19 = sbr.rel (0) target = $region5
    $region4: #{tpu_custom_call.1} parent=1 // pred_region
      %s21 = ssub.s32 128, 128
      %22 = vsyncadd [#allocation4], %s21
      %s24 = sshll.u32 [#allocation3], 4
      %s25 = int_to_ptr.vmem [resolvable:$true] %s24
      %27 = dma.hbm_to_vmem [thread:$0]  %s0, 128, %s25, [#allocation4]
    $region5: #{tpu_custom_call.1} parent=1 // pred_fallthru
      _
    // Predicated region
    $region6: #{tpu_custom_call.1} parent=1 // pred_check
      _
    $region7: #{tpu_custom_call.1} parent=1 // pred_check_branch
      %29 = sbr.rel (0) target = $region9
    $region8: #{tpu_custom_call.1} parent=1 // pred_region
      %s31 = ssub.s32 256, 256
      %32 = vsyncadd [#allocation7], %s31
      %s33 = sshll.u32 [#allocation6], 4
      %s34 = int_to_ptr.vmem [resolvable:$true] %s33
      %39 = dma.hbm_to_vmem [thread:$0]  %s1, 256, %s34, [#allocation7], 64, 64, 4
    $region9: #{tpu_custom_call.1} parent=1 // pred_fallthru
      _
    // Predicated region
    $region10: #{tpu_custom_call.1} parent=1 // pred_check
      _
    $region11: #{tpu_custom_call.1} parent=1 // pred_check_branch
      %41 = sbr.rel (0) target = $region13
    $region12: #{tpu_custom_call.1} parent=1 // pred_region
      %s43 = ssub.s32 2048, 2048
      %44 = vsyncadd [#allocation7], %s43
      %s45 = sshll.u32 [#allocation8], 4
      %s46 = int_to_ptr.vmem [resolvable:$true] %s45
      %51 = dma.hbm_to_vmem [thread:$0]  %s2, 2048, %s46, [#allocation7], 128, 128, 8
    $region13: #{tpu_custom_call.1} parent=1 // pred_fallthru
      _
    // Predicated region
    $region14: #{tpu_custom_call.1} parent=1 // pred_check
      _
    $region15: #{tpu_custom_call.1} parent=1 // pred_check_branch
      %53 = sbr.rel (0) target = $region17
    $region16: #{tpu_custom_call.1} parent=1 // pred_region
      %s55 = ssub.s32 8192, 8192
      %56 = vsyncadd [#allocation10], %s55
      %s57 = sshll.u32 [#allocation9], 4
      %s58 = int_to_ptr.vmem [resolvable:$true] %s57
      %63 = dma.hbm_to_vmem [thread:$0]  %s3, 8192, %s58, [#allocation10], 256, 256, 16
    $region17: #{tpu_custom_call.1} parent=1 // pred_fallthru
      _
    // Predicated region
    $region18: #{tpu_custom_call.1} parent=1 // pred_check
      _
    $region19: #{tpu_custom_call.1} parent=1 // pred_check_branch
      %65 = sbr.rel (0) target = $region21
    $region20: #{tpu_custom_call.1} parent=1 // pred_region
      %s67 = ssub.s32 32768, 32768
      %68 = vsyncadd [#allocation10], %s67
      %s69 = sshll.u32 [#allocation11], 4
      %s70 = int_to_ptr.vmem [resolvable:$true] %s69
      %75 = dma.hbm_to_vmem [thread:$0]  %s4, 32768, %s70, [#allocation10], 512, 512, 32
    $region21: #{tpu_custom_call.1} parent=1 // pred_fallthru
      _
    // Predicated region
    $region22: #{tpu_custom_call.1} parent=1 // pred_check
      _
    $region23: #{tpu_custom_call.1} parent=1 // pred_check_branch
      %77 = sbr.rel (0) target = $region25
    $region24: #{tpu_custom_call.1} parent=1 // pred_region
      %s79 = ssub.s32 464, 464
      %80 = vsyncadd [#allocation13], %s79
      %s82 = sshll.u32 [#allocation12], 4
      %s83 = int_to_ptr.vmem [resolvable:$true] %s82
      %85 = dma.hbm_to_vmem [thread:$0]  %s5, 464, %s83, [#allocation13]
    $region25: #{tpu_custom_call.1} parent=1 // pred_fallthru
      _
    // Predicated region
    $region26: #{tpu_custom_call.1} parent=1 // pred_check
      _
    $region27: #{tpu_custom_call.1} parent=1 // pred_check_branch
      %87 = sbr.rel (0) target = $region29
    $region28: #{tpu_custom_call.1} parent=1 // pred_region
      %s89 = ssub.s32 16384, 16384
      %90 = vsyncadd [#allocation13], %s89
      %s91 = sshll.u32 [#allocation14], 4
      %s92 = int_to_ptr.vmem [resolvable:$true] %s91
      %97 = dma.hbm_to_vmem [thread:$0]  %s6, 16384, %s92, [#allocation13], 128, 128, 8
    $region29: #{tpu_custom_call.1} parent=1 // pred_fallthru
      _
    // Predicated region
    $region30: #{tpu_custom_call.1} parent=1 // pred_check
      _
    $region31: #{tpu_custom_call.1} parent=1 // pred_check_branch
      %99 = sbr.rel (0) target = $region33
    $region32: #{tpu_custom_call.1} parent=1 // pred_region
      _
    $region33: #{tpu_custom_call.1} parent=1 // pred_fallthru
      _
    // Predicated region
    $region34: #{tpu_custom_call.1} parent=1 // pred_check
      _
    $region35: #{tpu_custom_call.1} parent=1 // pred_check_branch
      %101 = sbr.rel (0) target = $region37
    $region36: #{tpu_custom_call.1} parent=1 // pred_region
      %102 = dma.done [#allocation4], 128
    $region37: #{tpu_custom_call.1} parent=1 // pred_fallthru
      _
    // Predicated region
    $region38: #{tpu_custom_call.1} parent=1 // pred_check
      _
    $region39: #{tpu_custom_call.1} parent=1 // pred_check_branch
      %104 = sbr.rel (0) target = $region41
    $region40: #{tpu_custom_call.1} parent=1 // pred_region
      %105 = dma.done [#allocation7], 256
    $region41: #{tpu_custom_call.1} parent=1 // pred_fallthru
      _
    // Predicated region
    $region42: #{tpu_custom_call.1} parent=1 // pred_check
      _
    $region43: #{tpu_custom_call.1} parent=1 // pred_check_branch
      %107 = sbr.rel (0) target = $region45
    $region44: #{tpu_custom_call.1} parent=1 // pred_region
      %108 = dma.done [#allocation7], 2048
    $region45: #{tpu_custom_call.1} parent=1 // pred_fallthru
      _
    // Predicated region
    $region46: #{tpu_custom_call.1} parent=1 // pred_check
      _
    $region47: #{tpu_custom_call.1} parent=1 // pred_check_branch
      %110 = sbr.rel (0) target = $region49
    $region48: #{tpu_custom_call.1} parent=1 // pred_region
      %111 = dma.done [#allocation10], 8192
    $region49: #{tpu_custom_call.1} parent=1 // pred_fallthru
      _
    // Predicated region
    $region50: #{tpu_custom_call.1} parent=1 // pred_check
      _
    $region51: #{tpu_custom_call.1} parent=1 // pred_check_branch
      %113 = sbr.rel (0) target = $region53
    $region52: #{tpu_custom_call.1} parent=1 // pred_region
      %114 = dma.done [#allocation10], 32768
    $region53: #{tpu_custom_call.1} parent=1 // pred_fallthru
      _
    // Predicated region
    $region54: #{tpu_custom_call.1} parent=1 // pred_check
      _
    $region55: #{tpu_custom_call.1} parent=1 // pred_check_branch
      %116 = sbr.rel (0) target = $region57
    $region56: #{tpu_custom_call.1} parent=1 // pred_region
      %117 = dma.done [#allocation13], 464
    $region57: #{tpu_custom_call.1} parent=1 // pred_fallthru
      _
    // Predicated region
    $region58: #{tpu_custom_call.1} parent=1 // pred_check
      _
    $region59: #{tpu_custom_call.1} parent=1 // pred_check_branch
      %119 = sbr.rel (0) target = $region61
    $region60: #{tpu_custom_call.1} parent=1 // pred_region
      %120 = dma.done [#allocation13], 16384
    $region61: #{tpu_custom_call.1} parent=1 // pred_fallthru
      _
    %p122 = scmp.eq.s32.totalorder 0, 0
    // Predicated region
    $region62: #{tpu_custom_call.1} parent=1 // pred_check
      %p123 = pneg %p122
    $region63: #{tpu_custom_call.1} parent=1 // pred_check_branch
      %125 = sbr.rel (%p123) target = $region65
    $region64: #{tpu_custom_call.1} parent=1 // pred_region
      %v126 = vld [vmem:[#allocation12] sm:$0xff]
      %v127 = vld [vmem:[#allocation12 + $0x8] sm:$0xff]
      %v128 = vld [vmem:[#allocation12 + $0x10] sm:$0xff]
      %v129 = vld [vmem:[#allocation12 + $0x18] sm:$0x1f]
      %v130 = vld [vmem:[#allocation3] sm:$0xff]
      %v131 = vpack.c.bf16 %v130, %v130
      %v132 = vld [vmem:[#allocation6] sm:$0xf]
      %v133 = vld [vmem:[#allocation6 + $0x4] sm:$0xf]
      %v134 = vld [vmem:[#allocation6 + $0x8] sm:$0xf]
      %v135 = vld [vmem:[#allocation6 + $0xc] sm:$0xf]
      %v137 = vlaneseq
      %v138 = vshrl.u32 %v137, 7
      %v139 = vsub.s32 0, %v138
      %v140 = vrot.slane %v126, %v139
      %v146 = vunpack.c.l.b16 %v132
      %v147 = vunpack.c.l.b16 %v133
      %v148 = vunpack.c.l.b16 %v134
      %v149 = vunpack.c.l.b16 %v135
      %v150 = vpack.c.b16 %v147, %v146
      %v151 = vpack.c.b16 %v149, %v148
      %vm154 = vcmask 261120
      %v156 = vsel %vm154, %v131, 0
      %158 = vmatprep.subr.bf16.mxu0 0
      %159 = vmatpush1.bf16.msra.mxu0 %v150
      %160 = vmatprep.subr.bf16.mxu0 0
      %161 = vmatpush1.bf16.msra.mxu0 %v151
      %162 = vmatprep.subr.bf16.mxu0 0
      %163 = vmatpush1.bf16.msra.mxu0 0
      %164 = vmatprep.subr.bf16.mxu0 0
      %165 = vmatpush1.bf16.msra.mxu0 0
      %166 = vmatprep.subr.bf16.mxu0 0
      %167 = vmatpush1.bf16.msra.mxu0 0
      %168 = vmatprep.subr.bf16.mxu0 0
      %169 = vmatpush1.bf16.msra.mxu0 0
      %170 = vmatprep.subr.bf16.mxu0 0
      %171 = vmatpush1.bf16.msra.mxu0 0
      %172 = vmatprep.subr.bf16.mxu0 0
      %173 = vmatpush1.bf16.msra.mxu0 0
      %174 = vmatprep.subr.bf16.mxu0 0
      %175 = vmatpush1.bf16.msra.mxu0 0
      %176 = vmatprep.subr.bf16.mxu0 0
      %177 = vmatpush1.bf16.msra.mxu0 0
      %178 = vmatprep.subr.bf16.mxu0 0
      %179 = vmatpush1.bf16.msra.mxu0 0
      %180 = vmatprep.subr.bf16.mxu0 0
      %181 = vmatpush1.bf16.msra.mxu0 0
      %182 = vmatprep.subr.bf16.mxu0 0
      %183 = vmatpush1.bf16.msra.mxu0 0
      %184 = vmatprep.subr.bf16.mxu0 0
      %185 = vmatpush1.bf16.msra.mxu0 0
      %186 = vmatprep.subr.bf16.mxu0 0
      %187 = vmatpush1.bf16.msra.mxu0 0
      %188 = vmatprep.subr.bf16.mxu0 0
      %189 = vmatpush1.bf16.msra.mxu0 0
      %190 = vmatprep.mubr.bf16.mxu0 0
      %191 = vmatmul.mubr.bf16.gmra.mrb[0].mxu0 %v156
      %v192 = vpop.f32.mrb[0].mxu0
      %v193 = vadd.f32 %v140, %v192
      %v194 = vpop.f32.mrb[0].mxu0
      %v195 = vpop.f32.mrb[0].mxu0
      %v196 = vpop.f32.mrb[0].mxu0
      %197 = vdwg.mxu0
      %vm198 = vcmp.ge.f32.partialorder %v193, 0.0
      %v199 = vmul.f32 %v193, 0.2
      %v200 = vsel %vm198, %v193, %v199
      %v201 = vpack.c.bf16 %v200, %v200
      %v202 = vld [vmem:[#allocation8] sm:$0xff]
      %v203 = vld [vmem:[#allocation8 + $0x8] sm:$0xff]
      %v204 = vld [vmem:[#allocation8 + $0x10] sm:$0xff]
      %v205 = vld [vmem:[#allocation8 + $0x18] sm:$0xff]
      %v206 = vld [vmem:[#allocation8 + $0x20] sm:$0xff]
      %v207 = vld [vmem:[#allocation8 + $0x28] sm:$0xff]
      %v208 = vld [vmem:[#allocation8 + $0x30] sm:$0xff]
      %v209 = vld [vmem:[#allocation8 + $0x38] sm:$0xff]
      %v210 = vld [vmem:[#allocation8 + $0x40] sm:$0xff]
      %v211 = vld [vmem:[#allocation8 + $0x48] sm:$0xff]
      %v212 = vld [vmem:[#allocation8 + $0x50] sm:$0xff]
      %v213 = vld [vmem:[#allocation8 + $0x58] sm:$0xff]
      %v214 = vld [vmem:[#allocation8 + $0x60] sm:$0xff]
      %v215 = vld [vmem:[#allocation8 + $0x68] sm:$0xff]
      %v216 = vld [vmem:[#allocation8 + $0x70] sm:$0xff]
      %v217 = vld [vmem:[#allocation8 + $0x78] sm:$0xff]
      %v234 = vunpack.c.l.b16 %v202
      %v235 = vunpack.c.h.b16 %v202
      %v236 = vunpack.c.l.b16 %v203
      %v237 = vunpack.c.h.b16 %v203
      %v238 = vunpack.c.l.b16 %v204
      %v239 = vunpack.c.h.b16 %v204
      %v240 = vunpack.c.l.b16 %v205
      %v241 = vunpack.c.h.b16 %v205
      %v242 = vunpack.c.l.b16 %v206
      %v243 = vunpack.c.h.b16 %v206
      %v244 = vunpack.c.l.b16 %v207
      %v245 = vunpack.c.h.b16 %v207
      %v246 = vunpack.c.l.b16 %v208
      %v247 = vunpack.c.h.b16 %v208
      %v248 = vunpack.c.l.b16 %v209
      %v249 = vunpack.c.h.b16 %v209
      %v250 = vunpack.c.l.b16 %v210
      %v251 = vunpack.c.h.b16 %v210
      %v252 = vunpack.c.l.b16 %v211
      %v253 = vunpack.c.h.b16 %v211
      %v254 = vunpack.c.l.b16 %v212
      %v255 = vunpack.c.h.b16 %v212
      %v256 = vunpack.c.l.b16 %v213
      %v257 = vunpack.c.h.b16 %v213
      %v258 = vunpack.c.l.b16 %v214
      %v259 = vunpack.c.h.b16 %v214
      %v260 = vunpack.c.l.b16 %v215
      %v261 = vunpack.c.h.b16 %v215
      %v262 = vunpack.c.l.b16 %v216
      %v263 = vunpack.c.h.b16 %v216
      %v264 = vunpack.c.l.b16 %v217
      %v265 = vunpack.c.h.b16 %v217
      %v266 = vpack.c.b16 %v236, %v234
      %v267 = vpack.c.b16 %v237, %v235
      %v268 = vpack.c.b16 %v240, %v238
      %v269 = vpack.c.b16 %v241, %v239
      %v270 = vpack.c.b16 %v244, %v242
      %v271 = vpack.c.b16 %v245, %v243
      %v272 = vpack.c.b16 %v248, %v246
      %v273 = vpack.c.b16 %v249, %v247
      %v274 = vpack.c.b16 %v252, %v250
      %v275 = vpack.c.b16 %v253, %v251
      %v276 = vpack.c.b16 %v256, %v254
      %v277 = vpack.c.b16 %v257, %v255
      %v278 = vpack.c.b16 %v260, %v258
      %v279 = vpack.c.b16 %v261, %v259
      %v280 = vpack.c.b16 %v264, %v262
      %v281 = vpack.c.b16 %v265, %v263
      %298 = vmatprep.subr.bf16.mxu0 %v267
      %299 = vmatpush1.bf16.msra.mxu0 %v266
      %300 = vmatprep.subr.bf16.mxu0 %v269
      %301 = vmatpush1.bf16.msra.mxu0 %v268
      %302 = vmatprep.subr.bf16.mxu0 %v271
      %303 = vmatpush1.bf16.msra.mxu0 %v270
      %304 = vmatprep.subr.bf16.mxu0 %v273
      %305 = vmatpush1.bf16.msra.mxu0 %v272
      %306 = vmatprep.subr.bf16.mxu0 %v275
      %307 = vmatpush1.bf16.msra.mxu0 %v274
      %308 = vmatprep.subr.bf16.mxu0 %v277
      %309 = vmatpush1.bf16.msra.mxu0 %v276
      %310 = vmatprep.subr.bf16.mxu0 %v279
      %311 = vmatpush1.bf16.msra.mxu0 %v278
      %312 = vmatprep.subr.bf16.mxu0 %v281
      %313 = vmatpush1.bf16.msra.mxu0 %v280
      %314 = vmatprep.subr.bf16.mxu0 0
      %315 = vmatpush1.bf16.msra.mxu0 0
      %316 = vmatprep.subr.bf16.mxu0 0
      %317 = vmatpush1.bf16.msra.mxu0 0
      %318 = vmatprep.subr.bf16.mxu0 0
      %319 = vmatpush1.bf16.msra.mxu0 0
      %320 = vmatprep.subr.bf16.mxu0 0
      %321 = vmatpush1.bf16.msra.mxu0 0
      %322 = vmatprep.subr.bf16.mxu0 0
      %323 = vmatpush1.bf16.msra.mxu0 0
      %324 = vmatprep.subr.bf16.mxu0 0
      %325 = vmatpush1.bf16.msra.mxu0 0
      %326 = vmatprep.subr.bf16.mxu0 0
      %327 = vmatpush1.bf16.msra.mxu0 0
      %328 = vmatprep.subr.bf16.mxu0 0
      %329 = vmatpush1.bf16.msra.mxu0 0
      %330 = vmatprep.mubr.bf16.mxu0 0
      %331 = vmatmul.mubr.bf16.gmra.mrb[0].mxu0 %v201
      %v332 = vpop.f32.mrb[0].mxu0
      %v333 = vadd.f32 0.0, %v332
      %v334 = vpop.f32.mrb[0].mxu0
      %v335 = vadd.f32 0.0, %v334
      %v336 = vpop.f32.mrb[0].mxu0
      %v337 = vpop.f32.mrb[0].mxu0
      %338 = vdwg.mxu0
      %v339 = vrot.slane %v333, 4
      %v340 = vadd.f32 %v333, %v339
      %v341 = vrot.slane %v340, 2
      %v342 = vadd.f32 %v340, %v341
      %v343 = vrot.slane %v342, 1
      %v344 = vadd.f32 %v342, %v343
      %v345 = vrot.slane %v335, 4
      %v346 = vadd.f32 %v335, %v345
      %v347 = vrot.slane %v346, 2
      %v348 = vadd.f32 %v346, %v347
      %v349 = vrot.slane %v348, 1
      %v350 = vadd.f32 %v348, %v349
      %v351 = vmul.f32 %v333, %v333
      %v352 = vmul.f32 %v335, %v335
      %v353 = vrot.slane %v351, 4
      %v354 = vadd.f32 %v351, %v353
      %v355 = vrot.slane %v354, 2
      %v356 = vadd.f32 %v354, %v355
      %v357 = vrot.slane %v356, 1
      %v358 = vadd.f32 %v356, %v357
      %v359 = vrot.slane %v352, 4
      %v360 = vadd.f32 %v352, %v359
      %v361 = vrot.slane %v360, 2
      %v362 = vadd.f32 %v360, %v361
      %v363 = vrot.slane %v362, 1
      %v364 = vadd.f32 %v362, %v363
      %v365 = vmul.f32 %v344, 0.125
      %v366 = vmul.f32 %v350, 0.125
      %v367 = vmul.f32 %v358, 0.125
      %v368 = vmul.f32 %v364, 0.125
      %v369 = vmul.f32 %v365, %v365
      %v370 = vmul.f32 %v366, %v366
      %v371 = vsub.f32 %v367, %v369
      %v372 = vsub.f32 %v368, %v370
      %v373 = vmax.f32 %v371, 0.0
      %v374 = vmax.f32 %v372, 0.0
      %v375 = vadd.f32 %v373, 1e-05
      %v376 = vadd.f32 %v374, 1e-05
      %v377 = vrsqrt.pop %v375
      %v378 = vrsqrt.pop %v376
      %v379 = vrot.slane %v126, 1
      %v383 = vcombine.low %v377, %v378
      %v385 = vunpack.c.l.s4 1966171168
      %v386 = vunpack.c.0.s8 %v385
      %v387 = vlaneseq
      %v388 = vshrl.u32 %v387, 7
      %v389 = vsub.s32 %v386, %v388
      %v390 = vrot.slane %v383, %v389
      %v392 = vunpack.c.l.s4 1966171168
      %v393 = vunpack.c.0.s8 %v392
      %v394 = vlaneseq
      %v395 = vshrl.u32 %v394, 7
      %v396 = vsub.s32 %v393, %v395
      %v397 = vrot.slane %v390, %v396
      %v399 = vmul.f32 %v379, %v397
      %v401 = vlaneseq
      %v402 = vshrl.u32 %v401, 7
      %v403 = vsub.s32 0, %v402
      %v404 = vrot.slane %v399, %v403
      %v405 = vlaneseq
      %v406 = vshrl.u32 %v405, 7
      %v407 = vsub.s32 1, %v406
      %v408 = vrot.slane %v399, %v407
      %v411 = vmul.f32 %v365, %v404
      %v412 = vmul.f32 %v366, %v408
      %v413 = vrot.slane %v126, 3
      %v417 = vcombine.low %v411, %v412
      %v419 = vunpack.c.l.s4 1966171168
      %v420 = vunpack.c.0.s8 %v419
      %v421 = vlaneseq
      %v422 = vshrl.u32 %v421, 7
      %v423 = vsub.s32 %v420, %v422
      %v424 = vrot.slane %v417, %v423
      %v426 = vunpack.c.l.s4 1966171168
      %v427 = vunpack.c.0.s8 %v426
      %v428 = vlaneseq
      %v429 = vshrl.u32 %v428, 7
      %v430 = vsub.s32 %v427, %v429
      %v431 = vrot.slane %v424, %v430
      %v433 = vsub.f32 %v413, %v431
      %v434 = vmul.f32 %v333, %v404
      %v435 = vmul.f32 %v335, %v408
      %v437 = vlaneseq
      %v438 = vshrl.u32 %v437, 7
      %v439 = vsub.s32 0, %v438
      %v440 = vrot.slane %v433, %v439
      %v441 = vlaneseq
      %v442 = vshrl.u32 %v441, 7
      %v443 = vsub.s32 1, %v442
      %v444 = vrot.slane %v433, %v443
      %v447 = vadd.f32 %v434, %v440
      %v448 = vadd.f32 %v435, %v444
      %vm449 = vcmp.ge.f32.partialorder %v447, 0.0
      %vm450 = vcmp.ge.f32.partialorder %v448, 0.0
      %v451 = vmul.f32 %v447, 0.2
      %v452 = vmul.f32 %v448, 0.2
      %v453 = vsel %vm449, %v447, %v451
      %v454 = vsel %vm450, %v448, %v452
      %v455 = vpack.c.bf16 %v453, %v453
      %v456 = vpack.c.bf16 %v454, %v454
      %v457 = vld [vmem:[#allocation9] sm:$0xff]
      %v458 = vld [vmem:[#allocation9 + $0x8] sm:$0xff]
      %v459 = vld [vmem:[#allocation9 + $0x10] sm:$0xff]
      %v460 = vld [vmem:[#allocation9 + $0x18] sm:$0xff]
      %v461 = vld [vmem:[#allocation9 + $0x20] sm:$0xff]
      %v462 = vld [vmem:[#allocation9 + $0x28] sm:$0xff]
      %v463 = vld [vmem:[#allocation9 + $0x30] sm:$0xff]
      %v464 = vld [vmem:[#allocation9 + $0x38] sm:$0xff]
      %v465 = vld [vmem:[#allocation9 + $0x40] sm:$0xff]
      %v466 = vld [vmem:[#allocation9 + $0x48] sm:$0xff]
      %v467 = vld [vmem:[#allocation9 + $0x50] sm:$0xff]
      %v468 = vld [vmem:[#allocation9 + $0x58] sm:$0xff]
      %v469 = vld [vmem:[#allocation9 + $0x60] sm:$0xff]
      %v470 = vld [vmem:[#allocation9 + $0x68] sm:$0xff]
      %v471 = vld [vmem:[#allocation9 + $0x70] sm:$0xff]
      %v472 = vld [vmem:[#allocation9 + $0x78] sm:$0xff]
      %v473 = vld [vmem:[#allocation9 + $0x80] sm:$0xff]
      %v474 = vld [vmem:[#allocation9 + $0x88] sm:$0xff]
      %v475 = vld [vmem:[#allocation9 + $0x90] sm:$0xff]
      %v476 = vld [vmem:[#allocation9 + $0x98] sm:$0xff]
      %v477 = vld [vmem:[#allocation9 + $0xa0] sm:$0xff]
      %v478 = vld [vmem:[#allocation9 + $0xa8] sm:$0xff]
      %v479 = vld [vmem:[#allocation9 + $0xb0] sm:$0xff]
      %v480 = vld [vmem:[#allocation9 + $0xb8] sm:$0xff]
      %v481 = vld [vmem:[#allocation9 + $0xc0] sm:$0xff]
      %v482 = vld [vmem:[#allocation9 + $0xc8] sm:$0xff]
      %v483 = vld [vmem:[#allocation9 + $0xd0] sm:$0xff]
      %v484 = vld [vmem:[#allocation9 + $0xd8] sm:$0xff]
      %v485 = vld [vmem:[#allocation9 + $0xe0] sm:$0xff]
      %v486 = vld [vmem:[#allocation9 + $0xe8] sm:$0xff]
      %v487 = vld [vmem:[#allocation9 + $0xf0] sm:$0xff]
      %v488 = vld [vmem:[#allocation9 + $0xf8] sm:$0xff]
      %v489 = vld [vmem:[#allocation9 + $0x100] sm:$0xff]
      %v490 = vld [vmem:[#allocation9 + $0x108] sm:$0xff]
      %v491 = vld [vmem:[#allocation9 + $0x110] sm:$0xff]
      %v492 = vld [vmem:[#allocation9 + $0x118] sm:$0xff]
      %v493 = vld [vmem:[#allocation9 + $0x120] sm:$0xff]
      %v494 = vld [vmem:[#allocation9 + $0x128] sm:$0xff]
      %v495 = vld [vmem:[#allocation9 + $0x130] sm:$0xff]
      %v496 = vld [vmem:[#allocation9 + $0x138] sm:$0xff]
      %v497 = vld [vmem:[#allocation9 + $0x140] sm:$0xff]
      %v498 = vld [vmem:[#allocation9 + $0x148] sm:$0xff]
      %v499 = vld [vmem:[#allocation9 + $0x150] sm:$0xff]
      %v500 = vld [vmem:[#allocation9 + $0x158] sm:$0xff]
      %v501 = vld [vmem:[#allocation9 + $0x160] sm:$0xff]
      %v502 = vld [vmem:[#allocation9 + $0x168] sm:$0xff]
      %v503 = vld [vmem:[#allocation9 + $0x170] sm:$0xff]
      %v504 = vld [vmem:[#allocation9 + $0x178] sm:$0xff]
      %v505 = vld [vmem:[#allocation9 + $0x180] sm:$0xff]
      %v506 = vld [vmem:[#allocation9 + $0x188] sm:$0xff]
      %v507 = vld [vmem:[#allocation9 + $0x190] sm:$0xff]
      %v508 = vld [vmem:[#allocation9 + $0x198] sm:$0xff]
      %v509 = vld [vmem:[#allocation9 + $0x1a0] sm:$0xff]
      %v510 = vld [vmem:[#allocation9 + $0x1a8] sm:$0xff]
      %v511 = vld [vmem:[#allocation9 + $0x1b0] sm:$0xff]
      %v512 = vld [vmem:[#allocation9 + $0x1b8] sm:$0xff]
      %v513 = vld [vmem:[#allocation9 + $0x1c0] sm:$0xff]
      %v514 = vld [vmem:[#allocation9 + $0x1c8] sm:$0xff]
      %v515 = vld [vmem:[#allocation9 + $0x1d0] sm:$0xff]
      %v516 = vld [vmem:[#allocation9 + $0x1d8] sm:$0xff]
      %v517 = vld [vmem:[#allocation9 + $0x1e0] sm:$0xff]
      %v518 = vld [vmem:[#allocation9 + $0x1e8] sm:$0xff]
      %v519 = vld [vmem:[#allocation9 + $0x1f0] sm:$0xff]
      %v520 = vld [vmem:[#allocation9 + $0x1f8] sm:$0xff]
      %v585 = vunpack.c.l.b16 %v457
      %v586 = vunpack.c.h.b16 %v457
      %v587 = vunpack.c.l.b16 %v458
      %v588 = vunpack.c.h.b16 %v458
      %v589 = vunpack.c.l.b16 %v459
      %v590 = vunpack.c.h.b16 %v459
      %v591 = vunpack.c.l.b16 %v460
      %v592 = vunpack.c.h.b16 %v460
      %v593 = vunpack.c.l.b16 %v461
      %v594 = vunpack.c.h.b16 %v461
      %v595 = vunpack.c.l.b16 %v462
      %v596 = vunpack.c.h.b16 %v462
      %v597 = vunpack.c.l.b16 %v463
      %v598 = vunpack.c.h.b16 %v463
      %v599 = vunpack.c.l.b16 %v464
      %v600 = vunpack.c.h.b16 %v464
      %v601 = vunpack.c.l.b16 %v465
      %v602 = vunpack.c.h.b16 %v465
      %v603 = vunpack.c.l.b16 %v466
      %v604 = vunpack.c.h.b16 %v466
      %v605 = vunpack.c.l.b16 %v467
      %v606 = vunpack.c.h.b16 %v467
      %v607 = vunpack.c.l.b16 %v468
      %v608 = vunpack.c.h.b16 %v468
      %v609 = vunpack.c.l.b16 %v469
      %v610 = vunpack.c.h.b16 %v469
      %v611 = vunpack.c.l.b16 %v470
      %v612 = vunpack.c.h.b16 %v470
      %v613 = vunpack.c.l.b16 %v471
      %v614 = vunpack.c.h.b16 %v471
      %v615 = vunpack.c.l.b16 %v472
      %v616 = vunpack.c.h.b16 %v472
      %v617 = vunpack.c.l.b16 %v473
      %v618 = vunpack.c.h.b16 %v473
      %v619 = vunpack.c.l.b16 %v474
      %v620 = vunpack.c.h.b16 %v474
      %v621 = vunpack.c.l.b16 %v475
      %v622 = vunpack.c.h.b16 %v475
      %v623 = vunpack.c.l.b16 %v476
      %v624 = vunpack.c.h.b16 %v476
      %v625 = vunpack.c.l.b16 %v477
      %v626 = vunpack.c.h.b16 %v477
      %v627 = vunpack.c.l.b16 %v478
      %v628 = vunpack.c.h.b16 %v478
      %v629 = vunpack.c.l.b16 %v479
      %v630 = vunpack.c.h.b16 %v479
      %v631 = vunpack.c.l.b16 %v480
      %v632 = vunpack.c.h.b16 %v480
      %v633 = vunpack.c.l.b16 %v481
      %v634 = vunpack.c.h.b16 %v481
      %v635 = vunpack.c.l.b16 %v482
      %v636 = vunpack.c.h.b16 %v482
      %v637 = vunpack.c.l.b16 %v483
      %v638 = vunpack.c.h.b16 %v483
      %v639 = vunpack.c.l.b16 %v484
      %v640 = vunpack.c.h.b16 %v484
      %v641 = vunpack.c.l.b16 %v485
      %v642 = vunpack.c.h.b16 %v485
      %v643 = vunpack.c.l.b16 %v486
      %v644 = vunpack.c.h.b16 %v486
      %v645 = vunpack.c.l.b16 %v487
      %v646 = vunpack.c.h.b16 %v487
      %v647 = vunpack.c.l.b16 %v488
      %v648 = vunpack.c.h.b16 %v488
      %v649 = vunpack.c.l.b16 %v489
      %v650 = vunpack.c.h.b16 %v489
      %v651 = vunpack.c.l.b16 %v490
      %v652 = vunpack.c.h.b16 %v490
      %v653 = vunpack.c.l.b16 %v491
      %v654 = vunpack.c.h.b16 %v491
      %v655 = vunpack.c.l.b16 %v492
      %v656 = vunpack.c.h.b16 %v492
      %v657 = vunpack.c.l.b16 %v493
      %v658 = vunpack.c.h.b16 %v493
      %v659 = vunpack.c.l.b16 %v494
      %v660 = vunpack.c.h.b16 %v494
      %v661 = vunpack.c.l.b16 %v495
      %v662 = vunpack.c.h.b16 %v495
      %v663 = vunpack.c.l.b16 %v496
      %v664 = vunpack.c.h.b16 %v496
      %v665 = vunpack.c.l.b16 %v497
      %v666 = vunpack.c.h.b16 %v497
      %v667 = vunpack.c.l.b16 %v498
      %v668 = vunpack.c.h.b16 %v498
      %v669 = vunpack.c.l.b16 %v499
      %v670 = vunpack.c.h.b16 %v499
      %v671 = vunpack.c.l.b16 %v500
      %v672 = vunpack.c.h.b16 %v500
      %v673 = vunpack.c.l.b16 %v501
      %v674 = vunpack.c.h.b16 %v501
      %v675 = vunpack.c.l.b16 %v502
      %v676 = vunpack.c.h.b16 %v502
      %v677 = vunpack.c.l.b16 %v503
      %v678 = vunpack.c.h.b16 %v503
      %v679 = vunpack.c.l.b16 %v504
      %v680 = vunpack.c.h.b16 %v504
      %v681 = vunpack.c.l.b16 %v505
      %v682 = vunpack.c.h.b16 %v505
      %v683 = vunpack.c.l.b16 %v506
      %v684 = vunpack.c.h.b16 %v506
      %v685 = vunpack.c.l.b16 %v507
      %v686 = vunpack.c.h.b16 %v507
      %v687 = vunpack.c.l.b16 %v508
      %v688 = vunpack.c.h.b16 %v508
      %v689 = vunpack.c.l.b16 %v509
      %v690 = vunpack.c.h.b16 %v509
      %v691 = vunpack.c.l.b16 %v510
      %v692 = vunpack.c.h.b16 %v510
      %v693 = vunpack.c.l.b16 %v511
      %v694 = vunpack.c.h.b16 %v511
      %v695 = vunpack.c.l.b16 %v512
      %v696 = vunpack.c.h.b16 %v512
      %v697 = vunpack.c.l.b16 %v513
      %v698 = vunpack.c.h.b16 %v513
      %v699 = vunpack.c.l.b16 %v514
      %v700 = vunpack.c.h.b16 %v514
      %v701 = vunpack.c.l.b16 %v515
      %v702 = vunpack.c.h.b16 %v515
      %v703 = vunpack.c.l.b16 %v516
      %v704 = vunpack.c.h.b16 %v516
      %v705 = vunpack.c.l.b16 %v517
      %v706 = vunpack.c.h.b16 %v517
      %v707 = vunpack.c.l.b16 %v518
      %v708 = vunpack.c.h.b16 %v518
      %v709 = vunpack.c.l.b16 %v519
      %v710 = vunpack.c.h.b16 %v519
      %v711 = vunpack.c.l.b16 %v520
      %v712 = vunpack.c.h.b16 %v520
      %v713 = vpack.c.b16 %v589, %v585
      %v714 = vpack.c.b16 %v590, %v586
      %v715 = vpack.c.b16 %v591, %v587
      %v716 = vpack.c.b16 %v592, %v588
      %v717 = vpack.c.b16 %v597, %v593
      %v718 = vpack.c.b16 %v598, %v594
      %v719 = vpack.c.b16 %v599, %v595
      %v720 = vpack.c.b16 %v600, %v596
      %v721 = vpack.c.b16 %v605, %v601
      %v722 = vpack.c.b16 %v606, %v602
      %v723 = vpack.c.b16 %v607, %v603
      %v724 = vpack.c.b16 %v608, %v604
      %v725 = vpack.c.b16 %v613, %v609
      %v726 = vpack.c.b16 %v614, %v610
      %v727 = vpack.c.b16 %v615, %v611
      %v728 = vpack.c.b16 %v616, %v612
      %v729 = vpack.c.b16 %v621, %v617
      %v730 = vpack.c.b16 %v622, %v618
      %v731 = vpack.c.b16 %v623, %v619
      %v732 = vpack.c.b16 %v624, %v620
      %v733 = vpack.c.b16 %v629, %v625
      %v734 = vpack.c.b16 %v630, %v626
      %v735 = vpack.c.b16 %v631, %v627
      %v736 = vpack.c.b16 %v632, %v628
      %v737 = vpack.c.b16 %v637, %v633
      %v738 = vpack.c.b16 %v638, %v634
      %v739 = vpack.c.b16 %v639, %v635
      %v740 = vpack.c.b16 %v640, %v636
      %v741 = vpack.c.b16 %v645, %v641
      %v742 = vpack.c.b16 %v646, %v642
      %v743 = vpack.c.b16 %v647, %v643
      %v744 = vpack.c.b16 %v648, %v644
      %v745 = vpack.c.b16 %v653, %v649
      %v746 = vpack.c.b16 %v654, %v650
      %v747 = vpack.c.b16 %v655, %v651
      %v748 = vpack.c.b16 %v656, %v652
      %v749 = vpack.c.b16 %v661, %v657
      %v750 = vpack.c.b16 %v662, %v658
      %v751 = vpack.c.b16 %v663, %v659
      %v752 = vpack.c.b16 %v664, %v660
      %v753 = vpack.c.b16 %v669, %v665
      %v754 = vpack.c.b16 %v670, %v666
      %v755 = vpack.c.b16 %v671, %v667
      %v756 = vpack.c.b16 %v672, %v668
      %v757 = vpack.c.b16 %v677, %v673
      %v758 = vpack.c.b16 %v678, %v674
      %v759 = vpack.c.b16 %v679, %v675
      %v760 = vpack.c.b16 %v680, %v676
      %v761 = vpack.c.b16 %v685, %v681
      %v762 = vpack.c.b16 %v686, %v682
      %v763 = vpack.c.b16 %v687, %v683
      %v764 = vpack.c.b16 %v688, %v684
      %v765 = vpack.c.b16 %v693, %v689
      %v766 = vpack.c.b16 %v694, %v690
      %v767 = vpack.c.b16 %v695, %v691
      %v768 = vpack.c.b16 %v696, %v692
      %v769 = vpack.c.b16 %v701, %v697
      %v770 = vpack.c.b16 %v702, %v698
      %v771 = vpack.c.b16 %v703, %v699
      %v772 = vpack.c.b16 %v704, %v700
      %v773 = vpack.c.b16 %v709, %v705
      %v774 = vpack.c.b16 %v710, %v706
      %v775 = vpack.c.b16 %v711, %v707
      %v776 = vpack.c.b16 %v712, %v708
      %841 = vmatprep.subr.bf16.mxu0 %v714
      %842 = vmatpush1.bf16.msra.mxu0 %v713
      %843 = vmatprep.subr.bf16.mxu0 %v718
      %844 = vmatpush1.bf16.msra.mxu0 %v717
      %845 = vmatprep.subr.bf16.mxu0 %v722
      %846 = vmatpush1.bf16.msra.mxu0 %v721
      %847 = vmatprep.subr.bf16.mxu0 %v726
      %848 = vmatpush1.bf16.msra.mxu0 %v725
      %849 = vmatprep.subr.bf16.mxu0 %v730
      %850 = vmatpush1.bf16.msra.mxu0 %v729
      %851 = vmatprep.subr.bf16.mxu0 %v734
      %852 = vmatpush1.bf16.msra.mxu0 %v733
      %853 = vmatprep.subr.bf16.mxu0 %v738
      %854 = vmatpush1.bf16.msra.mxu0 %v737
      %855 = vmatprep.subr.bf16.mxu0 %v742
      %856 = vmatpush1.bf16.msra.mxu0 %v741
      %857 = vmatprep.subr.bf16.mxu0 %v746
      %858 = vmatpush1.bf16.msra.mxu0 %v745
      %859 = vmatprep.subr.bf16.mxu0 %v750
      %860 = vmatpush1.bf16.msra.mxu0 %v749
      %861 = vmatprep.subr.bf16.mxu0 %v754
      %862 = vmatpush1.bf16.msra.mxu0 %v753
      %863 = vmatprep.subr.bf16.mxu0 %v758
      %864 = vmatpush1.bf16.msra.mxu0 %v757
      %865 = vmatprep.subr.bf16.mxu0 %v762
      %866 = vmatpush1.bf16.msra.mxu0 %v761
      %867 = vmatprep.subr.bf16.mxu0 %v766
      %868 = vmatpush1.bf16.msra.mxu0 %v765
      %869 = vmatprep.subr.bf16.mxu0 %v770
      %870 = vmatpush1.bf16.msra.mxu0 %v769
      %871 = vmatprep.subr.bf16.mxu0 %v774
      %872 = vmatpush1.bf16.msra.mxu0 %v773
      %873 = vmatprep.mubr.bf16.mxu0 %v456
      %874 = vmatmul.mubr.bf16.gmra.mrb[0].mxu0 %v455
      %v875 = vpop.f32.mrb[0].mxu0
      %v876 = vadd.f32 0.0, %v875
      %v877 = vpop.f32.mrb[0].mxu0
      %v878 = vadd.f32 0.0, %v877
      %v879 = vpop.f32.mrb[0].mxu0
      %v880 = vpop.f32.mrb[0].mxu0
      %881 = vdwg.mxu0
      %882 = vmatprep.subr.bf16.mxu0 %v716
      %883 = vmatpush1.bf16.msra.mxu0 %v715
      %884 = vmatprep.subr.bf16.mxu0 %v720
      %885 = vmatpush1.bf16.msra.mxu0 %v719
      %886 = vmatprep.subr.bf16.mxu0 %v724
      %887 = vmatpush1.bf16.msra.mxu0 %v723
      %888 = vmatprep.subr.bf16.mxu0 %v728
      %889 = vmatpush1.bf16.msra.mxu0 %v727
      %890 = vmatprep.subr.bf16.mxu0 %v732
      %891 = vmatpush1.bf16.msra.mxu0 %v731
      %892 = vmatprep.subr.bf16.mxu0 %v736
      %893 = vmatpush1.bf16.msra.mxu0 %v735
      %894 = vmatprep.subr.bf16.mxu0 %v740
      %895 = vmatpush1.bf16.msra.mxu0 %v739
      %896 = vmatprep.subr.bf16.mxu0 %v744
      %897 = vmatpush1.bf16.msra.mxu0 %v743
      %898 = vmatprep.subr.bf16.mxu0 %v748
      %899 = vmatpush1.bf16.msra.mxu0 %v747
      %900 = vmatprep.subr.bf16.mxu0 %v752
      %901 = vmatpush1.bf16.msra.mxu0 %v751
      %902 = vmatprep.subr.bf16.mxu0 %v756
      %903 = vmatpush1.bf16.msra.mxu0 %v755
      %904 = vmatprep.subr.bf16.mxu0 %v760
      %905 = vmatpush1.bf16.msra.mxu0 %v759
      %906 = vmatprep.subr.bf16.mxu0 %v764
      %907 = vmatpush1.bf16.msra.mxu0 %v763
      %908 = vmatprep.subr.bf16.mxu0 %v768
      %909 = vmatpush1.bf16.msra.mxu0 %v767
      %910 = vmatprep.subr.bf16.mxu0 %v772
      %911 = vmatpush1.bf16.msra.mxu0 %v771
      %912 = vmatprep.subr.bf16.mxu0 %v776
      %913 = vmatpush1.bf16.msra.mxu0 %v775
      %914 = vmatprep.mubr.bf16.mxu0 %v456
      %915 = vmatmul.mubr.bf16.gmra.mrb[0].mxu0 %v455
      %v916 = vpop.f32.mrb[0].mxu0
      %v917 = vadd.f32 0.0, %v916
      %v918 = vpop.f32.mrb[0].mxu0
      %v919 = vadd.f32 0.0, %v918
      %v920 = vpop.f32.mrb[0].mxu0
      %v921 = vpop.f32.mrb[0].mxu0
      %922 = vdwg.mxu0
      %v923 = vrot.slane %v876, 4
      %v924 = vadd.f32 %v876, %v923
      %v925 = vrot.slane %v924, 2
      %v926 = vadd.f32 %v924, %v925
      %v927 = vrot.slane %v926, 1
      %v928 = vadd.f32 %v926, %v927
      %v929 = vrot.slane %v878, 4
      %v930 = vadd.f32 %v878, %v929
      %v931 = vrot.slane %v930, 2
      %v932 = vadd.f32 %v930, %v931
      %v933 = vrot.slane %v932, 1
      %v934 = vadd.f32 %v932, %v933
      %v935 = vrot.slane %v917, 4
      %v936 = vadd.f32 %v917, %v935
      %v937 = vrot.slane %v936, 2
      %v938 = vadd.f32 %v936, %v937
      %v939 = vrot.slane %v938, 1
      %v940 = vadd.f32 %v938, %v939
      %v941 = vrot.slane %v919, 4
      %v942 = vadd.f32 %v919, %v941
      %v943 = vrot.slane %v942, 2
      %v944 = vadd.f32 %v942, %v943
      %v945 = vrot.slane %v944, 1
      %v946 = vadd.f32 %v944, %v945
      %v947 = vmul.f32 %v876, %v876
      %v948 = vmul.f32 %v878, %v878
      %v949 = vmul.f32 %v917, %v917
      %v950 = vmul.f32 %v919, %v919
      %v951 = vrot.slane %v947, 4
      %v952 = vadd.f32 %v947, %v951
      %v953 = vrot.slane %v952, 2
      %v954 = vadd.f32 %v952, %v953
      %v955 = vrot.slane %v954, 1
      %v956 = vadd.f32 %v954, %v955
      %v957 = vrot.slane %v948, 4
      %v958 = vadd.f32 %v948, %v957
      %v959 = vrot.slane %v958, 2
      %v960 = vadd.f32 %v958, %v959
      %v961 = vrot.slane %v960, 1
      %v962 = vadd.f32 %v960, %v961
      %v963 = vrot.slane %v949, 4
      %v964 = vadd.f32 %v949, %v963
      %v965 = vrot.slane %v964, 2
      %v966 = vadd.f32 %v964, %v965
      %v967 = vrot.slane %v966, 1
      %v968 = vadd.f32 %v966, %v967
      %v969 = vrot.slane %v950, 4
      %v970 = vadd.f32 %v950, %v969
      %v971 = vrot.slane %v970, 2
      %v972 = vadd.f32 %v970, %v971
      %v973 = vrot.slane %v972, 1
      %v974 = vadd.f32 %v972, %v973
      %v975 = vmul.f32 %v928, 0.125
      %v976 = vmul.f32 %v934, 0.125
      %v977 = vmul.f32 %v940, 0.125
      %v978 = vmul.f32 %v946, 0.125
      %v979 = vmul.f32 %v956, 0.125
      %v980 = vmul.f32 %v962, 0.125
      %v981 = vmul.f32 %v968, 0.125
      %v982 = vmul.f32 %v974, 0.125
      %v983 = vmul.f32 %v975, %v975
      %v984 = vmul.f32 %v976, %v976
      %v985 = vmul.f32 %v977, %v977
      %v986 = vmul.f32 %v978, %v978
      %v987 = vsub.f32 %v979, %v983
      %v988 = vsub.f32 %v980, %v984
      %v989 = vsub.f32 %v981, %v985
      %v990 = vsub.f32 %v982, %v986
      %v991 = vmax.f32 %v987, 0.0
      %v992 = vmax.f32 %v988, 0.0
      %v993 = vmax.f32 %v989, 0.0
      %v994 = vmax.f32 %v990, 0.0
      %v995 = vadd.f32 %v991, 1e-05
      %v996 = vadd.f32 %v992, 1e-05
      %v997 = vadd.f32 %v993, 1e-05
      %v998 = vadd.f32 %v994, 1e-05
      %v999 = vrsqrt.pop %v995
      %v1000 = vrsqrt.pop %v996
      %v1001 = vrsqrt.pop %v997
      %v1002 = vrsqrt.pop %v998
      %v1004 = vrot.slane %v126, 5
      %v1005 = vrot.slane %v127, 5
      %vm1006 = vcmask 1042432
      %v1007 = vsel %vm1006, %v1004, %v1005
      %v1013 = vcombine.low %v999, %v1000
      %v1014 = vcombine.low %v1001, %v1002
      %v1016 = vunpack.c.l.s4 1966171168
      %v1017 = vunpack.c.0.s8 %v1016
      %v1018 = vlaneseq
      %v1019 = vshrl.u32 %v1018, 7
      %v1020 = vsub.s32 %v1017, %v1019
      %v1021 = vrot.slane %v1013, %v1020
      %v1023 = vunpack.c.l.s4 1966171168
      %v1024 = vunpack.c.0.s8 %v1023
      %v1025 = vlaneseq
      %v1026 = vshrl.u32 %v1025, 7
      %v1027 = vsub.s32 %v1024, %v1026
      %v1028 = vrot.slane %v1014, %v1027
      %v1029 = vcombine.low %v1021, %v1028
      %v1031 = vunpack.c.l.s4 1966171168
      %v1032 = vunpack.c.0.s8 %v1031
      %v1033 = vlaneseq
      %v1034 = vshrl.u32 %v1033, 7
      %v1035 = vsub.s32 %v1032, %v1034
      %v1036 = vrot.slane %v1029, %v1035
      %v1038 = vmul.f32 %v1007, %v1036
      %v1040 = vlaneseq
      %v1041 = vshrl.u32 %v1040, 7
      %v1042 = vsub.s32 0, %v1041
      %v1043 = vrot.slane %v1038, %v1042
      %v1044 = vlaneseq
      %v1045 = vshrl.u32 %v1044, 7
      %v1046 = vsub.s32 1, %v1045
      %v1047 = vrot.slane %v1038, %v1046
      %v1048 = vlaneseq
      %v1049 = vshrl.u32 %v1048, 7
      %v1050 = vsub.s32 2, %v1049
      %v1051 = vrot.slane %v1038, %v1050
      %v1052 = vlaneseq
      %v1053 = vshrl.u32 %v1052, 7
      %v1054 = vsub.s32 3, %v1053
      %v1055 = vrot.slane %v1038, %v1054
      %v1060 = vmul.f32 %v975, %v1043
      %v1061 = vmul.f32 %v976, %v1047
      %v1062 = vmul.f32 %v977, %v1051
      %v1063 = vmul.f32 %v978, %v1055
      %v1064 = vrot.slane %v127, 1
      %v1070 = vcombine.low %v1060, %v1061
      %v1071 = vcombine.low %v1062, %v1063
      %v1073 = vunpack.c.l.s4 1966171168
      %v1074 = vunpack.c.0.s8 %v1073
      %v1075 = vlaneseq
      %v1076 = vshrl.u32 %v1075, 7
      %v1077 = vsub.s32 %v1074, %v1076
      %v1078 = vrot.slane %v1070, %v1077
      %v1080 = vunpack.c.l.s4 1966171168
      %v1081 = vunpack.c.0.s8 %v1080
      %v1082 = vlaneseq
      %v1083 = vshrl.u32 %v1082, 7
      %v1084 = vsub.s32 %v1081, %v1083
      %v1085 = vrot.slane %v1071, %v1084
      %v1086 = vcombine.low %v1078, %v1085
      %v1088 = vunpack.c.l.s4 1966171168
      %v1089 = vunpack.c.0.s8 %v1088
      %v1090 = vlaneseq
      %v1091 = vshrl.u32 %v1090, 7
      %v1092 = vsub.s32 %v1089, %v1091
      %v1093 = vrot.slane %v1086, %v1092
      %v1095 = vsub.f32 %v1064, %v1093
      %v1096 = vmul.f32 %v876, %v1043
      %v1097 = vmul.f32 %v878, %v1047
      %v1098 = vmul.f32 %v917, %v1051
      %v1099 = vmul.f32 %v919, %v1055
      %v1101 = vlaneseq
      %v1102 = vshrl.u32 %v1101, 7
      %v1103 = vsub.s32 0, %v1102
      %v1104 = vrot.slane %v1095, %v1103
      %v1105 = vlaneseq
      %v1106 = vshrl.u32 %v1105, 7
      %v1107 = vsub.s32 1, %v1106
      %v1108 = vrot.slane %v1095, %v1107
      %v1109 = vlaneseq
      %v1110 = vshrl.u32 %v1109, 7
      %v1111 = vsub.s32 2, %v1110
      %v1112 = vrot.slane %v1095, %v1111
      %v1113 = vlaneseq
      %v1114 = vshrl.u32 %v1113, 7
      %v1115 = vsub.s32 3, %v1114
      %v1116 = vrot.slane %v1095, %v1115
      %v1121 = vadd.f32 %v1096, %v1104
      %v1122 = vadd.f32 %v1097, %v1108
      %v1123 = vadd.f32 %v1098, %v1112
      %v1124 = vadd.f32 %v1099, %v1116
      %vm1125 = vcmp.ge.f32.partialorder %v1121, 0.0
      %vm1126 = vcmp.ge.f32.partialorder %v1122, 0.0
      %vm1127 = vcmp.ge.f32.partialorder %v1123, 0.0
      %vm1128 = vcmp.ge.f32.partialorder %v1124, 0.0
      %v1129 = vmul.f32 %v1121, 0.2
      %v1130 = vmul.f32 %v1122, 0.2
      %v1131 = vmul.f32 %v1123, 0.2
      %v1132 = vmul.f32 %v1124, 0.2
      %v1133 = vsel %vm1125, %v1121, %v1129
      %v1134 = vsel %vm1126, %v1122, %v1130
      %v1135 = vsel %vm1127, %v1123, %v1131
      %v1136 = vsel %vm1128, %v1124, %v1132
      %v1137 = vpack.c.bf16 %v1133, %v1133
      %v1138 = vpack.c.bf16 %v1134, %v1134
      %v1139 = vpack.c.bf16 %v1135, %v1135
      %v1140 = vpack.c.bf16 %v1136, %v1136
      %v1141 = vld [vmem:[#allocation11] sm:$0xff]
      %v1142 = vld [vmem:[#allocation11 + $0x8] sm:$0xff]
      %v1143 = vld [vmem:[#allocation11 + $0x10] sm:$0xff]
      %v1144 = vld [vmem:[#allocation11 + $0x18] sm:$0xff]
      %v1145 = vld [vmem:[#allocation11 + $0x20] sm:$0xff]
      %v1146 = vld [vmem:[#allocation11 + $0x28] sm:$0xff]
      %v1147 = vld [vmem:[#allocation11 + $0x30] sm:$0xff]
      %v1148 = vld [vmem:[#allocation11 + $0x38] sm:$0xff]
      %v1149 = vld [vmem:[#allocation11 + $0x40] sm:$0xff]
      %v1150 = vld [vmem:[#allocation11 + $0x48] sm:$0xff]
      %v1151 = vld [vmem:[#allocation11 + $0x50] sm:$0xff]
      %v1152 = vld [vmem:[#allocation11 + $0x58] sm:$0xff]
      %v1153 = vld [vmem:[#allocation11 + $0x60] sm:$0xff]
      %v1154 = vld [vmem:[#allocation11 + $0x68] sm:$0xff]
      %v1155 = vld [vmem:[#allocation11 + $0x70] sm:$0xff]
      %v1156 = vld [vmem:[#allocation11 + $0x78] sm:$0xff]
      %v1157 = vld [vmem:[#allocation11 + $0x80] sm:$0xff]
      %v1158 = vld [vmem:[#allocation11 + $0x88] sm:$0xff]
      %v1159 = vld [vmem:[#allocation11 + $0x90] sm:$0xff]
      %v1160 = vld [vmem:[#allocation11 + $0x98] sm:$0xff]
      %v1161 = vld [vmem:[#allocation11 + $0xa0] sm:$0xff]
      %v1162 = vld [vmem:[#allocation11 + $0xa8] sm:$0xff]
      %v1163 = vld [vmem:[#allocation11 + $0xb0] sm:$0xff]
      %v1164 = vld [vmem:[#allocation11 + $0xb8] sm:$0xff]
      %v1165 = vld [vmem:[#allocation11 + $0xc0] sm:$0xff]
      %v1166 = vld [vmem:[#allocation11 + $0xc8] sm:$0xff]
      %v1167 = vld [vmem:[#allocation11 + $0xd0] sm:$0xff]
      %v1168 = vld [vmem:[#allocation11 + $0xd8] sm:$0xff]
      %v1169 = vld [vmem:[#allocation11 + $0xe0] sm:$0xff]
      %v1170 = vld [vmem:[#allocation11 + $0xe8] sm:$0xff]
      %v1171 = vld [vmem:[#allocation11 + $0xf0] sm:$0xff]
      %v1172 = vld [vmem:[#allocation11 + $0xf8] sm:$0xff]
      %v1173 = vld [vmem:[#allocation11 + $0x100] sm:$0xff]
      %v1174 = vld [vmem:[#allocation11 + $0x108] sm:$0xff]
      %v1175 = vld [vmem:[#allocation11 + $0x110] sm:$0xff]
      %v1176 = vld [vmem:[#allocation11 + $0x118] sm:$0xff]
      %v1177 = vld [vmem:[#allocation11 + $0x120] sm:$0xff]
      %v1178 = vld [vmem:[#allocation11 + $0x128] sm:$0xff]
      %v1179 = vld [vmem:[#allocation11 + $0x130] sm:$0xff]
      %v1180 = vld [vmem:[#allocation11 + $0x138] sm:$0xff]
      %v1181 = vld [vmem:[#allocation11 + $0x140] sm:$0xff]
      %v1182 = vld [vmem:[#allocation11 + $0x148] sm:$0xff]
      %v1183 = vld [vmem:[#allocation11 + $0x150] sm:$0xff]
      %v1184 = vld [vmem:[#allocation11 + $0x158] sm:$0xff]
      %v1185 = vld [vmem:[#allocation11 + $0x160] sm:$0xff]
      %v1186 = vld [vmem:[#allocation11 + $0x168] sm:$0xff]
      %v1187 = vld [vmem:[#allocation11 + $0x170] sm:$0xff]
      %v1188 = vld [vmem:[#allocation11 + $0x178] sm:$0xff]
      %v1189 = vld [vmem:[#allocation11 + $0x180] sm:$0xff]
      %v1190 = vld [vmem:[#allocation11 + $0x188] sm:$0xff]
      %v1191 = vld [vmem:[#allocation11 + $0x190] sm:$0xff]
      %v1192 = vld [vmem:[#allocation11 + $0x198] sm:$0xff]
      %v1193 = vld [vmem:[#allocation11 + $0x1a0] sm:$0xff]
      %v1194 = vld [vmem:[#allocation11 + $0x1a8] sm:$0xff]
      %v1195 = vld [vmem:[#allocation11 + $0x1b0] sm:$0xff]
      %v1196 = vld [vmem:[#allocation11 + $0x1b8] sm:$0xff]
      %v1197 = vld [vmem:[#allocation11 + $0x1c0] sm:$0xff]
      %v1198 = vld [vmem:[#allocation11 + $0x1c8] sm:$0xff]
      %v1199 = vld [vmem:[#allocation11 + $0x1d0] sm:$0xff]
      %v1200 = vld [vmem:[#allocation11 + $0x1d8] sm:$0xff]
      %v1201 = vld [vmem:[#allocation11 + $0x1e0] sm:$0xff]
      %v1202 = vld [vmem:[#allocation11 + $0x1e8] sm:$0xff]
      %v1203 = vld [vmem:[#allocation11 + $0x1f0] sm:$0xff]
      %v1204 = vld [vmem:[#allocation11 + $0x1f8] sm:$0xff]
      %v1205 = vld [vmem:[#allocation11 + $0x200] sm:$0xff]
      %v1206 = vld [vmem:[#allocation11 + $0x208] sm:$0xff]
      %v1207 = vld [vmem:[#allocation11 + $0x210] sm:$0xff]
      %v1208 = vld [vmem:[#allocation11 + $0x218] sm:$0xff]
      %v1209 = vld [vmem:[#allocation11 + $0x220] sm:$0xff]
      %v1210 = vld [vmem:[#allocation11 + $0x228] sm:$0xff]
      %v1211 = vld [vmem:[#allocation11 + $0x230] sm:$0xff]
      %v1212 = vld [vmem:[#allocation11 + $0x238] sm:$0xff]
      %v1213 = vld [vmem:[#allocation11 + $0x240] sm:$0xff]
      %v1214 = vld [vmem:[#allocation11 + $0x248] sm:$0xff]
      %v1215 = vld [vmem:[#allocation11 + $0x250] sm:$0xff]
      %v1216 = vld [vmem:[#allocation11 + $0x258] sm:$0xff]
      %v1217 = vld [vmem:[#allocation11 + $0x260] sm:$0xff]
      %v1218 = vld [vmem:[#allocation11 + $0x268] sm:$0xff]
      %v1219 = vld [vmem:[#allocation11 + $0x270] sm:$0xff]
      %v1220 = vld [vmem:[#allocation11 + $0x278] sm:$0xff]
      %v1221 = vld [vmem:[#allocation11 + $0x280] sm:$0xff]
      %v1222 = vld [vmem:[#allocation11 + $0x288] sm:$0xff]
      %v1223 = vld [vmem:[#allocation11 + $0x290] sm:$0xff]
      %v1224 = vld [vmem:[#allocation11 + $0x298] sm:$0xff]
      %v1225 = vld [vmem:[#allocation11 + $0x2a0] sm:$0xff]
      %v1226 = vld [vmem:[#allocation11 + $0x2a8] sm:$0xff]
      %v1227 = vld [vmem:[#allocation11 + $0x2b0] sm:$0xff]
      %v1228 = vld [vmem:[#allocation11 + $0x2b8] sm:$0xff]
      %v1229 = vld [vmem:[#allocation11 + $0x2c0] sm:$0xff]
      %v1230 = vld [vmem:[#allocation11 + $0x2c8] sm:$0xff]
      %v1231 = vld [vmem:[#allocation11 + $0x2d0] sm:$0xff]
      %v1232 = vld [vmem:[#allocation11 + $0x2d8] sm:$0xff]
      %v1233 = vld [vmem:[#allocation11 + $0x2e0] sm:$0xff]
      %v1234 = vld [vmem:[#allocation11 + $0x2e8] sm:$0xff]
      %v1235 = vld [vmem:[#allocation11 + $0x2f0] sm:$0xff]
      %v1236 = vld [vmem:[#allocation11 + $0x2f8] sm:$0xff]
      %v1237 = vld [vmem:[#allocation11 + $0x300] sm:$0xff]
      %v1238 = vld [vmem:[#allocation11 + $0x308] sm:$0xff]
      %v1239 = vld [vmem:[#allocation11 + $0x310] sm:$0xff]
      %v1240 = vld [vmem:[#allocation11 + $0x318] sm:$0xff]
      %v1241 = vld [vmem:[#allocation11 + $0x320] sm:$0xff]
      %v1242 = vld [vmem:[#allocation11 + $0x328] sm:$0xff]
      %v1243 = vld [vmem:[#allocation11 + $0x330] sm:$0xff]
      %v1244 = vld [vmem:[#allocation11 + $0x338] sm:$0xff]
      %v1245 = vld [vmem:[#allocation11 + $0x340] sm:$0xff]
      %v1246 = vld [vmem:[#allocation11 + $0x348] sm:$0xff]
      %v1247 = vld [vmem:[#allocation11 + $0x350] sm:$0xff]
      %v1248 = vld [vmem:[#allocation11 + $0x358] sm:$0xff]
      %v1249 = vld [vmem:[#allocation11 + $0x360] sm:$0xff]
      %v1250 = vld [vmem:[#allocation11 + $0x368] sm:$0xff]
      %v1251 = vld [vmem:[#allocation11 + $0x370] sm:$0xff]
      %v1252 = vld [vmem:[#allocation11 + $0x378] sm:$0xff]
      %v1253 = vld [vmem:[#allocation11 + $0x380] sm:$0xff]
      %v1254 = vld [vmem:[#allocation11 + $0x388] sm:$0xff]
      %v1255 = vld [vmem:[#allocation11 + $0x390] sm:$0xff]
      %v1256 = vld [vmem:[#allocation11 + $0x398] sm:$0xff]
      %v1257 = vld [vmem:[#allocation11 + $0x3a0] sm:$0xff]
      %v1258 = vld [vmem:[#allocation11 + $0x3a8] sm:$0xff]
      %v1259 = vld [vmem:[#allocation11 + $0x3b0] sm:$0xff]
      %v1260 = vld [vmem:[#allocation11 + $0x3b8] sm:$0xff]
      %v1261 = vld [vmem:[#allocation11 + $0x3c0] sm:$0xff]
      %v1262 = vld [vmem:[#allocation11 + $0x3c8] sm:$0xff]
      %v1263 = vld [vmem:[#allocation11 + $0x3d0] sm:$0xff]
      %v1264 = vld [vmem:[#allocation11 + $0x3d8] sm:$0xff]
      %v1265 = vld [vmem:[#allocation11 + $0x3e0] sm:$0xff]
      %v1266 = vld [vmem:[#allocation11 + $0x3e8] sm:$0xff]
      %v1267 = vld [vmem:[#allocation11 + $0x3f0] sm:$0xff]
      %v1268 = vld [vmem:[#allocation11 + $0x3f8] sm:$0xff]
      %v1269 = vld [vmem:[#allocation11 + $0x400] sm:$0xff]
      %v1270 = vld [vmem:[#allocation11 + $0x408] sm:$0xff]
      %v1271 = vld [vmem:[#allocation11 + $0x410] sm:$0xff]
      %v1272 = vld [vmem:[#allocation11 + $0x418] sm:$0xff]
      %v1273 = vld [vmem:[#allocation11 + $0x420] sm:$0xff]
      %v1274 = vld [vmem:[#allocation11 + $0x428] sm:$0xff]
      %v1275 = vld [vmem:[#allocation11 + $0x430] sm:$0xff]
      %v1276 = vld [vmem:[#allocation11 + $0x438] sm:$0xff]
      %v1277 = vld [vmem:[#allocation11 + $0x440] sm:$0xff]
      %v1278 = vld [vmem:[#allocation11 + $0x448] sm:$0xff]
      %v1279 = vld [vmem:[#allocation11 + $0x450] sm:$0xff]
      %v1280 = vld [vmem:[#allocation11 + $0x458] sm:$0xff]
      %v1281 = vld [vmem:[#allocation11 + $0x460] sm:$0xff]
      %v1282 = vld [vmem:[#allocation11 + $0x468] sm:$0xff]
      %v1283 = vld [vmem:[#allocation11 + $0x470] sm:$0xff]
      %v1284 = vld [vmem:[#allocation11 + $0x478] sm:$0xff]
      %v1285 = vld [vmem:[#allocation11 + $0x480] sm:$0xff]
      %v1286 = vld [vmem:[#allocation11 + $0x488] sm:$0xff]
      %v1287 = vld [vmem:[#allocation11 + $0x490] sm:$0xff]
      %v1288 = vld [vmem:[#allocation11 + $0x498] sm:$0xff]
      %v1289 = vld [vmem:[#allocation11 + $0x4a0] sm:$0xff]
      %v1290 = vld [vmem:[#allocation11 + $0x4a8] sm:$0xff]
      %v1291 = vld [vmem:[#allocation11 + $0x4b0] sm:$0xff]
      %v1292 = vld [vmem:[#allocation11 + $0x4b8] sm:$0xff]
      %v1293 = vld [vmem:[#allocation11 + $0x4c0] sm:$0xff]
      %v1294 = vld [vmem:[#allocation11 + $0x4c8] sm:$0xff]
      %v1295 = vld [vmem:[#allocation11 + $0x4d0] sm:$0xff]
      %v1296 = vld [vmem:[#allocation11 + $0x4d8] sm:$0xff]
      %v1297 = vld [vmem:[#allocation11 + $0x4e0] sm:$0xff]
      %v1298 = vld [vmem:[#allocation11 + $0x4e8] sm:$0xff]
      %v1299 = vld [vmem:[#allocation11 + $0x4f0] sm:$0xff]
      %v1300 = vld [vmem:[#allocation11 + $0x4f8] sm:$0xff]
      %v1301 = vld [vmem:[#allocation11 + $0x500] sm:$0xff]
      %v1302 = vld [vmem:[#allocation11 + $0x508] sm:$0xff]
      %v1303 = vld [vmem:[#allocation11 + $0x510] sm:$0xff]
      %v1304 = vld [vmem:[#allocation11 + $0x518] sm:$0xff]
      %v1305 = vld [vmem:[#allocation11 + $0x520] sm:$0xff]
      %v1306 = vld [vmem:[#allocation11 + $0x528] sm:$0xff]
      %v1307 = vld [vmem:[#allocation11 + $0x530] sm:$0xff]
      %v1308 = vld [vmem:[#allocation11 + $0x538] sm:$0xff]
      %v1309 = vld [vmem:[#allocation11 + $0x540] sm:$0xff]
      %v1310 = vld [vmem:[#allocation11 + $0x548] sm:$0xff]
      %v1311 = vld [vmem:[#allocation11 + $0x550] sm:$0xff]
      %v1312 = vld [vmem:[#allocation11 + $0x558] sm:$0xff]
      %v1313 = vld [vmem:[#allocation11 + $0x560] sm:$0xff]
      %v1314 = vld [vmem:[#allocation11 + $0x568] sm:$0xff]
      %v1315 = vld [vmem:[#allocation11 + $0x570] sm:$0xff]
      %v1316 = vld [vmem:[#allocation11 + $0x578] sm:$0xff]
      %v1317 = vld [vmem:[#allocation11 + $0x580] sm:$0xff]
      %v1318 = vld [vmem:[#allocation11 + $0x588] sm:$0xff]
      %v1319 = vld [vmem:[#allocation11 + $0x590] sm:$0xff]
      %v1320 = vld [vmem:[#allocation11 + $0x598] sm:$0xff]
      %v1321 = vld [vmem:[#allocation11 + $0x5a0] sm:$0xff]
      %v1322 = vld [vmem:[#allocation11 + $0x5a8] sm:$0xff]
      %v1323 = vld [vmem:[#allocation11 + $0x5b0] sm:$0xff]
      %v1324 = vld [vmem:[#allocation11 + $0x5b8] sm:$0xff]
      %v1325 = vld [vmem:[#allocation11 + $0x5c0] sm:$0xff]
      %v1326 = vld [vmem:[#allocation11 + $0x5c8] sm:$0xff]
      %v1327 = vld [vmem:[#allocation11 + $0x5d0] sm:$0xff]
      %v1328 = vld [vmem:[#allocation11 + $0x5d8] sm:$0xff]
      %v1329 = vld [vmem:[#allocation11 + $0x5e0] sm:$0xff]
      %v1330 = vld [vmem:[#allocation11 + $0x5e8] sm:$0xff]
      %v1331 = vld [vmem:[#allocation11 + $0x5f0] sm:$0xff]
      %v1332 = vld [vmem:[#allocation11 + $0x5f8] sm:$0xff]
      %v1333 = vld [vmem:[#allocation11 + $0x600] sm:$0xff]
      %v1334 = vld [vmem:[#allocation11 + $0x608] sm:$0xff]
      %v1335 = vld [vmem:[#allocation11 + $0x610] sm:$0xff]
      %v1336 = vld [vmem:[#allocation11 + $0x618] sm:$0xff]
      %v1337 = vld [vmem:[#allocation11 + $0x620] sm:$0xff]
      %v1338 = vld [vmem:[#allocation11 + $0x628] sm:$0xff]
      %v1339 = vld [vmem:[#allocation11 + $0x630] sm:$0xff]
      %v1340 = vld [vmem:[#allocation11 + $0x638] sm:$0xff]
      %v1341 = vld [vmem:[#allocation11 + $0x640] sm:$0xff]
      %v1342 = vld [vmem:[#allocation11 + $0x648] sm:$0xff]
      %v1343 = vld [vmem:[#allocation11 + $0x650] sm:$0xff]
      %v1344 = vld [vmem:[#allocation11 + $0x658] sm:$0xff]
      %v1345 = vld [vmem:[#allocation11 + $0x660] sm:$0xff]
      %v1346 = vld [vmem:[#allocation11 + $0x668] sm:$0xff]
      %v1347 = vld [vmem:[#allocation11 + $0x670] sm:$0xff]
      %v1348 = vld [vmem:[#allocation11 + $0x678] sm:$0xff]
      %v1349 = vld [vmem:[#allocation11 + $0x680] sm:$0xff]
      %v1350 = vld [vmem:[#allocation11 + $0x688] sm:$0xff]
      %v1351 = vld [vmem:[#allocation11 + $0x690] sm:$0xff]
      %v1352 = vld [vmem:[#allocation11 + $0x698] sm:$0xff]
      %v1353 = vld [vmem:[#allocation11 + $0x6a0] sm:$0xff]
      %v1354 = vld [vmem:[#allocation11 + $0x6a8] sm:$0xff]
      %v1355 = vld [vmem:[#allocation11 + $0x6b0] sm:$0xff]
      %v1356 = vld [vmem:[#allocation11 + $0x6b8] sm:$0xff]
      %v1357 = vld [vmem:[#allocation11 + $0x6c0] sm:$0xff]
      %v1358 = vld [vmem:[#allocation11 + $0x6c8] sm:$0xff]
      %v1359 = vld [vmem:[#allocation11 + $0x6d0] sm:$0xff]
      %v1360 = vld [vmem:[#allocation11 + $0x6d8] sm:$0xff]
      %v1361 = vld [vmem:[#allocation11 + $0x6e0] sm:$0xff]
      %v1362 = vld [vmem:[#allocation11 + $0x6e8] sm:$0xff]
      %v1363 = vld [vmem:[#allocation11 + $0x6f0] sm:$0xff]
      %v1364 = vld [vmem:[#allocation11 + $0x6f8] sm:$0xff]
      %v1365 = vld [vmem:[#allocation11 + $0x700] sm:$0xff]
      %v1366 = vld [vmem:[#allocation11 + $0x708] sm:$0xff]
      %v1367 = vld [vmem:[#allocation11 + $0x710] sm:$0xff]
      %v1368 = vld [vmem:[#allocation11 + $0x718] sm:$0xff]
      %v1369 = vld [vmem:[#allocation11 + $0x720] sm:$0xff]
      %v1370 = vld [vmem:[#allocation11 + $0x728] sm:$0xff]
      %v1371 = vld [vmem:[#allocation11 + $0x730] sm:$0xff]
      %v1372 = vld [vmem:[#allocation11 + $0x738] sm:$0xff]
      %v1373 = vld [vmem:[#allocation11 + $0x740] sm:$0xff]
      %v1374 = vld [vmem:[#allocation11 + $0x748] sm:$0xff]
      %v1375 = vld [vmem:[#allocation11 + $0x750] sm:$0xff]
      %v1376 = vld [vmem:[#allocation11 + $0x758] sm:$0xff]
      %v1377 = vld [vmem:[#allocation11 + $0x760] sm:$0xff]
      %v1378 = vld [vmem:[#allocation11 + $0x768] sm:$0xff]
      %v1379 = vld [vmem:[#allocation11 + $0x770] sm:$0xff]
      %v1380 = vld [vmem:[#allocation11 + $0x778] sm:$0xff]
      %v1381 = vld [vmem:[#allocation11 + $0x780] sm:$0xff]
      %v1382 = vld [vmem:[#allocation11 + $0x788] sm:$0xff]
      %v1383 = vld [vmem:[#allocation11 + $0x790] sm:$0xff]
      %v1384 = vld [vmem:[#allocation11 + $0x798] sm:$0xff]
      %v1385 = vld [vmem:[#allocation11 + $0x7a0] sm:$0xff]
      %v1386 = vld [vmem:[#allocation11 + $0x7a8] sm:$0xff]
      %v1387 = vld [vmem:[#allocation11 + $0x7b0] sm:$0xff]
      %v1388 = vld [vmem:[#allocation11 + $0x7b8] sm:$0xff]
      %v1389 = vld [vmem:[#allocation11 + $0x7c0] sm:$0xff]
      %v1390 = vld [vmem:[#allocation11 + $0x7c8] sm:$0xff]
      %v1391 = vld [vmem:[#allocation11 + $0x7d0] sm:$0xff]
      %v1392 = vld [vmem:[#allocation11 + $0x7d8] sm:$0xff]
      %v1393 = vld [vmem:[#allocation11 + $0x7e0] sm:$0xff]
      %v1394 = vld [vmem:[#allocation11 + $0x7e8] sm:$0xff]
      %v1395 = vld [vmem:[#allocation11 + $0x7f0] sm:$0xff]
      %v1396 = vld [vmem:[#allocation11 + $0x7f8] sm:$0xff]
      %v1653 = vunpack.c.l.b16 %v1141
      %v1654 = vunpack.c.h.b16 %v1141
      %v1655 = vunpack.c.l.b16 %v1142
      %v1656 = vunpack.c.h.b16 %v1142
      %v1657 = vunpack.c.l.b16 %v1143
      %v1658 = vunpack.c.h.b16 %v1143
      %v1659 = vunpack.c.l.b16 %v1144
      %v1660 = vunpack.c.h.b16 %v1144
      %v1661 = vunpack.c.l.b16 %v1145
      %v1662 = vunpack.c.h.b16 %v1145
      %v1663 = vunpack.c.l.b16 %v1146
      %v1664 = vunpack.c.h.b16 %v1146
      %v1665 = vunpack.c.l.b16 %v1147
      %v1666 = vunpack.c.h.b16 %v1147
      %v1667 = vunpack.c.l.b16 %v1148
      %v1668 = vunpack.c.h.b16 %v1148
      %v1669 = vunpack.c.l.b16 %v1149
      %v1670 = vunpack.c.h.b16 %v1149
      %v1671 = vunpack.c.l.b16 %v1150
      %v1672 = vunpack.c.h.b16 %v1150
      %v1673 = vunpack.c.l.b16 %v1151
      %v1674 = vunpack.c.h.b16 %v1151
      %v1675 = vunpack.c.l.b16 %v1152
      %v1676 = vunpack.c.h.b16 %v1152
      %v1677 = vunpack.c.l.b16 %v1153
      %v1678 = vunpack.c.h.b16 %v1153
      %v1679 = vunpack.c.l.b16 %v1154
      %v1680 = vunpack.c.h.b16 %v1154
      %v1681 = vunpack.c.l.b16 %v1155
      %v1682 = vunpack.c.h.b16 %v1155
      %v1683 = vunpack.c.l.b16 %v1156
      %v1684 = vunpack.c.h.b16 %v1156
      %v1685 = vunpack.c.l.b16 %v1157
      %v1686 = vunpack.c.h.b16 %v1157
      %v1687 = vunpack.c.l.b16 %v1158
      %v1688 = vunpack.c.h.b16 %v1158
      %v1689 = vunpack.c.l.b16 %v1159
      %v1690 = vunpack.c.h.b16 %v1159
      %v1691 = vunpack.c.l.b16 %v1160
      %v1692 = vunpack.c.h.b16 %v1160
      %v1693 = vunpack.c.l.b16 %v1161
      %v1694 = vunpack.c.h.b16 %v1161
      %v1695 = vunpack.c.l.b16 %v1162
      %v1696 = vunpack.c.h.b16 %v1162
      %v1697 = vunpack.c.l.b16 %v1163
      %v1698 = vunpack.c.h.b16 %v1163
      %v1699 = vunpack.c.l.b16 %v1164
      %v1700 = vunpack.c.h.b16 %v1164
      %v1701 = vunpack.c.l.b16 %v1165
      %v1702 = vunpack.c.h.b16 %v1165
      %v1703 = vunpack.c.l.b16 %v1166
      %v1704 = vunpack.c.h.b16 %v1166
      %v1705 = vunpack.c.l.b16 %v1167
      %v1706 = vunpack.c.h.b16 %v1167
      %v1707 = vunpack.c.l.b16 %v1168
      %v1708 = vunpack.c.h.b16 %v1168
      %v1709 = vunpack.c.l.b16 %v1169
      %v1710 = vunpack.c.h.b16 %v1169
      %v1711 = vunpack.c.l.b16 %v1170
      %v1712 = vunpack.c.h.b16 %v1170
      %v1713 = vunpack.c.l.b16 %v1171
      %v1714 = vunpack.c.h.b16 %v1171
      %v1715 = vunpack.c.l.b16 %v1172
      %v1716 = vunpack.c.h.b16 %v1172
      %v1717 = vunpack.c.l.b16 %v1173
      %v1718 = vunpack.c.h.b16 %v1173
      %v1719 = vunpack.c.l.b16 %v1174
      %v1720 = vunpack.c.h.b16 %v1174
      %v1721 = vunpack.c.l.b16 %v1175
      %v1722 = vunpack.c.h.b16 %v1175
      %v1723 = vunpack.c.l.b16 %v1176
      %v1724 = vunpack.c.h.b16 %v1176
      %v1725 = vunpack.c.l.b16 %v1177
      %v1726 = vunpack.c.h.b16 %v1177
      %v1727 = vunpack.c.l.b16 %v1178
      %v1728 = vunpack.c.h.b16 %v1178
      %v1729 = vunpack.c.l.b16 %v1179
      %v1730 = vunpack.c.h.b16 %v1179
      %v1731 = vunpack.c.l.b16 %v1180
      %v1732 = vunpack.c.h.b16 %v1180
      %v1733 = vunpack.c.l.b16 %v1181
      %v1734 = vunpack.c.h.b16 %v1181
      %v1735 = vunpack.c.l.b16 %v1182
      %v1736 = vunpack.c.h.b16 %v1182
      %v1737 = vunpack.c.l.b16 %v1183
      %v1738 = vunpack.c.h.b16 %v1183
      %v1739 = vunpack.c.l.b16 %v1184
      %v1740 = vunpack.c.h.b16 %v1184
      %v1741 = vunpack.c.l.b16 %v1185
      %v1742 = vunpack.c.h.b16 %v1185
      %v1743 = vunpack.c.l.b16 %v1186
      %v1744 = vunpack.c.h.b16 %v1186
      %v1745 = vunpack.c.l.b16 %v1187
      %v1746 = vunpack.c.h.b16 %v1187
      %v1747 = vunpack.c.l.b16 %v1188
      %v1748 = vunpack.c.h.b16 %v1188
      %v1749 = vunpack.c.l.b16 %v1189
      %v1750 = vunpack.c.h.b16 %v1189
      %v1751 = vunpack.c.l.b16 %v1190
      %v1752 = vunpack.c.h.b16 %v1190
      %v1753 = vunpack.c.l.b16 %v1191
      %v1754 = vunpack.c.h.b16 %v1191
      %v1755 = vunpack.c.l.b16 %v1192
      %v1756 = vunpack.c.h.b16 %v1192
      %v1757 = vunpack.c.l.b16 %v1193
      %v1758 = vunpack.c.h.b16 %v1193
      %v1759 = vunpack.c.l.b16 %v1194
      %v1760 = vunpack.c.h.b16 %v1194
      %v1761 = vunpack.c.l.b16 %v1195
      %v1762 = vunpack.c.h.b16 %v1195
      %v1763 = vunpack.c.l.b16 %v1196
      %v1764 = vunpack.c.h.b16 %v1196
      %v1765 = vunpack.c.l.b16 %v1197
      %v1766 = vunpack.c.h.b16 %v1197
      %v1767 = vunpack.c.l.b16 %v1198
      %v1768 = vunpack.c.h.b16 %v1198
      %v1769 = vunpack.c.l.b16 %v1199
      %v1770 = vunpack.c.h.b16 %v1199
      %v1771 = vunpack.c.l.b16 %v1200
      %v1772 = vunpack.c.h.b16 %v1200
      %v1773 = vunpack.c.l.b16 %v1201
      %v1774 = vunpack.c.h.b16 %v1201
      %v1775 = vunpack.c.l.b16 %v1202
      %v1776 = vunpack.c.h.b16 %v1202
      %v1777 = vunpack.c.l.b16 %v1203
      %v1778 = vunpack.c.h.b16 %v1203
      %v1779 = vunpack.c.l.b16 %v1204
      %v1780 = vunpack.c.h.b16 %v1204
      %v1781 = vunpack.c.l.b16 %v1205
      %v1782 = vunpack.c.h.b16 %v1205
      %v1783 = vunpack.c.l.b16 %v1206
      %v1784 = vunpack.c.h.b16 %v1206
      %v1785 = vunpack.c.l.b16 %v1207
      %v1786 = vunpack.c.h.b16 %v1207
      %v1787 = vunpack.c.l.b16 %v1208
      %v1788 = vunpack.c.h.b16 %v1208
      %v1789 = vunpack.c.l.b16 %v1209
      %v1790 = vunpack.c.h.b16 %v1209
      %v1791 = vunpack.c.l.b16 %v1210
      %v1792 = vunpack.c.h.b16 %v1210
      %v1793 = vunpack.c.l.b16 %v1211
      %v1794 = vunpack.c.h.b16 %v1211
      %v1795 = vunpack.c.l.b16 %v1212
      %v1796 = vunpack.c.h.b16 %v1212
      %v1797 = vunpack.c.l.b16 %v1213
      %v1798 = vunpack.c.h.b16 %v1213
      %v1799 = vunpack.c.l.b16 %v1214
      %v1800 = vunpack.c.h.b16 %v1214
      %v1801 = vunpack.c.l.b16 %v1215
      %v1802 = vunpack.c.h.b16 %v1215
      %v1803 = vunpack.c.l.b16 %v1216
      %v1804 = vunpack.c.h.b16 %v1216
      %v1805 = vunpack.c.l.b16 %v1217
      %v1806 = vunpack.c.h.b16 %v1217
      %v1807 = vunpack.c.l.b16 %v1218
      %v1808 = vunpack.c.h.b16 %v1218
      %v1809 = vunpack.c.l.b16 %v1219
      %v1810 = vunpack.c.h.b16 %v1219
      %v1811 = vunpack.c.l.b16 %v1220
      %v1812 = vunpack.c.h.b16 %v1220
      %v1813 = vunpack.c.l.b16 %v1221
      %v1814 = vunpack.c.h.b16 %v1221
      %v1815 = vunpack.c.l.b16 %v1222
      %v1816 = vunpack.c.h.b16 %v1222
      %v1817 = vunpack.c.l.b16 %v1223
      %v1818 = vunpack.c.h.b16 %v1223
      %v1819 = vunpack.c.l.b16 %v1224
      %v1820 = vunpack.c.h.b16 %v1224
      %v1821 = vunpack.c.l.b16 %v1225
      %v1822 = vunpack.c.h.b16 %v1225
      %v1823 = vunpack.c.l.b16 %v1226
      %v1824 = vunpack.c.h.b16 %v1226
      %v1825 = vunpack.c.l.b16 %v1227
      %v1826 = vunpack.c.h.b16 %v1227
      %v1827 = vunpack.c.l.b16 %v1228
      %v1828 = vunpack.c.h.b16 %v1228
      %v1829 = vunpack.c.l.b16 %v1229
      %v1830 = vunpack.c.h.b16 %v1229
      %v1831 = vunpack.c.l.b16 %v1230
      %v1832 = vunpack.c.h.b16 %v1230
      %v1833 = vunpack.c.l.b16 %v1231
      %v1834 = vunpack.c.h.b16 %v1231
      %v1835 = vunpack.c.l.b16 %v1232
      %v1836 = vunpack.c.h.b16 %v1232
      %v1837 = vunpack.c.l.b16 %v1233
      %v1838 = vunpack.c.h.b16 %v1233
      %v1839 = vunpack.c.l.b16 %v1234
      %v1840 = vunpack.c.h.b16 %v1234
      %v1841 = vunpack.c.l.b16 %v1235
      %v1842 = vunpack.c.h.b16 %v1235
      %v1843 = vunpack.c.l.b16 %v1236
      %v1844 = vunpack.c.h.b16 %v1236
      %v1845 = vunpack.c.l.b16 %v1237
      %v1846 = vunpack.c.h.b16 %v1237
      %v1847 = vunpack.c.l.b16 %v1238
      %v1848 = vunpack.c.h.b16 %v1238
      %v1849 = vunpack.c.l.b16 %v1239
      %v1850 = vunpack.c.h.b16 %v1239
      %v1851 = vunpack.c.l.b16 %v1240
      %v1852 = vunpack.c.h.b16 %v1240
      %v1853 = vunpack.c.l.b16 %v1241
      %v1854 = vunpack.c.h.b16 %v1241
      %v1855 = vunpack.c.l.b16 %v1242
      %v1856 = vunpack.c.h.b16 %v1242
      %v1857 = vunpack.c.l.b16 %v1243
      %v1858 = vunpack.c.h.b16 %v1243
      %v1859 = vunpack.c.l.b16 %v1244
      %v1860 = vunpack.c.h.b16 %v1244
      %v1861 = vunpack.c.l.b16 %v1245
      %v1862 = vunpack.c.h.b16 %v1245
      %v1863 = vunpack.c.l.b16 %v1246
      %v1864 = vunpack.c.h.b16 %v1246
      %v1865 = vunpack.c.l.b16 %v1247
      %v1866 = vunpack.c.h.b16 %v1247
      %v1867 = vunpack.c.l.b16 %v1248
      %v1868 = vunpack.c.h.b16 %v1248
      %v1869 = vunpack.c.l.b16 %v1249
      %v1870 = vunpack.c.h.b16 %v1249
      %v1871 = vunpack.c.l.b16 %v1250
      %v1872 = vunpack.c.h.b16 %v1250
      %v1873 = vunpack.c.l.b16 %v1251
      %v1874 = vunpack.c.h.b16 %v1251
      %v1875 = vunpack.c.l.b16 %v1252
      %v1876 = vunpack.c.h.b16 %v1252
      %v1877 = vunpack.c.l.b16 %v1253
      %v1878 = vunpack.c.h.b16 %v1253
      %v1879 = vunpack.c.l.b16 %v1254
      %v1880 = vunpack.c.h.b16 %v1254
      %v1881 = vunpack.c.l.b16 %v1255
      %v1882 = vunpack.c.h.b16 %v1255
      %v1883 = vunpack.c.l.b16 %v1256
      %v1884 = vunpack.c.h.b16 %v1256
      %v1885 = vunpack.c.l.b16 %v1257
      %v1886 = vunpack.c.h.b16 %v1257
      %v1887 = vunpack.c.l.b16 %v1258
      %v1888 = vunpack.c.h.b16 %v1258
      %v1889 = vunpack.c.l.b16 %v1259
      %v1890 = vunpack.c.h.b16 %v1259
      %v1891 = vunpack.c.l.b16 %v1260
      %v1892 = vunpack.c.h.b16 %v1260
      %v1893 = vunpack.c.l.b16 %v1261
      %v1894 = vunpack.c.h.b16 %v1261
      %v1895 = vunpack.c.l.b16 %v1262
      %v1896 = vunpack.c.h.b16 %v1262
      %v1897 = vunpack.c.l.b16 %v1263
      %v1898 = vunpack.c.h.b16 %v1263
      %v1899 = vunpack.c.l.b16 %v1264
      %v1900 = vunpack.c.h.b16 %v1264
      %v1901 = vunpack.c.l.b16 %v1265
      %v1902 = vunpack.c.h.b16 %v1265
      %v1903 = vunpack.c.l.b16 %v1266
      %v1904 = vunpack.c.h.b16 %v1266
      %v1905 = vunpack.c.l.b16 %v1267
      %v1906 = vunpack.c.h.b16 %v1267
      %v1907 = vunpack.c.l.b16 %v1268
      %v1908 = vunpack.c.h.b16 %v1268
      %v1909 = vunpack.c.l.b16 %v1269
      %v1910 = vunpack.c.h.b16 %v1269
      %v1911 = vunpack.c.l.b16 %v1270
      %v1912 = vunpack.c.h.b16 %v1270
      %v1913 = vunpack.c.l.b16 %v1271
      %v1914 = vunpack.c.h.b16 %v1271
      %v1915 = vunpack.c.l.b16 %v1272
      %v1916 = vunpack.c.h.b16 %v1272
      %v1917 = vunpack.c.l.b16 %v1273
      %v1918 = vunpack.c.h.b16 %v1273
      %v1919 = vunpack.c.l.b16 %v1274
      %v1920 = vunpack.c.h.b16 %v1274
      %v1921 = vunpack.c.l.b16 %v1275
      %v1922 = vunpack.c.h.b16 %v1275
      %v1923 = vunpack.c.l.b16 %v1276
      %v1924 = vunpack.c.h.b16 %v1276
      %v1925 = vunpack.c.l.b16 %v1277
      %v1926 = vunpack.c.h.b16 %v1277
      %v1927 = vunpack.c.l.b16 %v1278
      %v1928 = vunpack.c.h.b16 %v1278
      %v1929 = vunpack.c.l.b16 %v1279
      %v1930 = vunpack.c.h.b16 %v1279
      %v1931 = vunpack.c.l.b16 %v1280
      %v1932 = vunpack.c.h.b16 %v1280
      %v1933 = vunpack.c.l.b16 %v1281
      %v1934 = vunpack.c.h.b16 %v1281
      %v1935 = vunpack.c.l.b16 %v1282
      %v1936 = vunpack.c.h.b16 %v1282
      %v1937 = vunpack.c.l.b16 %v1283
      %v1938 = vunpack.c.h.b16 %v1283
      %v1939 = vunpack.c.l.b16 %v1284
      %v1940 = vunpack.c.h.b16 %v1284
      %v1941 = vunpack.c.l.b16 %v1285
      %v1942 = vunpack.c.h.b16 %v1285
      %v1943 = vunpack.c.l.b16 %v1286
      %v1944 = vunpack.c.h.b16 %v1286
      %v1945 = vunpack.c.l.b16 %v1287
      %v1946 = vunpack.c.h.b16 %v1287
      %v1947 = vunpack.c.l.b16 %v1288
      %v1948 = vunpack.c.h.b16 %v1288
      %v1949 = vunpack.c.l.b16 %v1289
      %v1950 = vunpack.c.h.b16 %v1289
      %v1951 = vunpack.c.l.b16 %v1290
      %v1952 = vunpack.c.h.b16 %v1290
      %v1953 = vunpack.c.l.b16 %v1291
      %v1954 = vunpack.c.h.b16 %v1291
      %v1955 = vunpack.c.l.b16 %v1292
      %v1956 = vunpack.c.h.b16 %v1292
      %v1957 = vunpack.c.l.b16 %v1293
      %v1958 = vunpack.c.h.b16 %v1293
      %v1959 = vunpack.c.l.b16 %v1294
      %v1960 = vunpack.c.h.b16 %v1294
      %v1961 = vunpack.c.l.b16 %v1295
      %v1962 = vunpack.c.h.b16 %v1295
      %v1963 = vunpack.c.l.b16 %v1296
      %v1964 = vunpack.c.h.b16 %v1296
      %v1965 = vunpack.c.l.b16 %v1297
      %v1966 = vunpack.c.h.b16 %v1297
      %v1967 = vunpack.c.l.b16 %v1298
      %v1968 = vunpack.c.h.b16 %v1298
      %v1969 = vunpack.c.l.b16 %v1299
      %v1970 = vunpack.c.h.b16 %v1299
      %v1971 = vunpack.c.l.b16 %v1300
      %v1972 = vunpack.c.h.b16 %v1300
      %v1973 = vunpack.c.l.b16 %v1301
      %v1974 = vunpack.c.h.b16 %v1301
      %v1975 = vunpack.c.l.b16 %v1302
      %v1976 = vunpack.c.h.b16 %v1302
      %v1977 = vunpack.c.l.b16 %v1303
      %v1978 = vunpack.c.h.b16 %v1303
      %v1979 = vunpack.c.l.b16 %v1304
      %v1980 = vunpack.c.h.b16 %v1304
      %v1981 = vunpack.c.l.b16 %v1305
      %v1982 = vunpack.c.h.b16 %v1305
      %v1983 = vunpack.c.l.b16 %v1306
      %v1984 = vunpack.c.h.b16 %v1306
      %v1985 = vunpack.c.l.b16 %v1307
      %v1986 = vunpack.c.h.b16 %v1307
      %v1987 = vunpack.c.l.b16 %v1308
      %v1988 = vunpack.c.h.b16 %v1308
      %v1989 = vunpack.c.l.b16 %v1309
      %v1990 = vunpack.c.h.b16 %v1309
      %v1991 = vunpack.c.l.b16 %v1310
      %v1992 = vunpack.c.h.b16 %v1310
      %v1993 = vunpack.c.l.b16 %v1311
      %v1994 = vunpack.c.h.b16 %v1311
      %v1995 = vunpack.c.l.b16 %v1312
      %v1996 = vunpack.c.h.b16 %v1312
      %v1997 = vunpack.c.l.b16 %v1313
      %v1998 = vunpack.c.h.b16 %v1313
      %v1999 = vunpack.c.l.b16 %v1314
      %v2000 = vunpack.c.h.b16 %v1314
      %v2001 = vunpack.c.l.b16 %v1315
      %v2002 = vunpack.c.h.b16 %v1315
      %v2003 = vunpack.c.l.b16 %v1316
      %v2004 = vunpack.c.h.b16 %v1316
      %v2005 = vunpack.c.l.b16 %v1317
      %v2006 = vunpack.c.h.b16 %v1317
      %v2007 = vunpack.c.l.b16 %v1318
      %v2008 = vunpack.c.h.b16 %v1318
      %v2009 = vunpack.c.l.b16 %v1319
      %v2010 = vunpack.c.h.b16 %v1319
      %v2011 = vunpack.c.l.b16 %v1320
      %v2012 = vunpack.c.h.b16 %v1320
      %v2013 = vunpack.c.l.b16 %v1321
      %v2014 = vunpack.c.h.b16 %v1321
      %v2015 = vunpack.c.l.b16 %v1322
      %v2016 = vunpack.c.h.b16 %v1322
      %v2017 = vunpack.c.l.b16 %v1323
      %v2018 = vunpack.c.h.b16 %v1323
      %v2019 = vunpack.c.l.b16 %v1324
      %v2020 = vunpack.c.h.b16 %v1324
      %v2021 = vunpack.c.l.b16 %v1325
      %v2022 = vunpack.c.h.b16 %v1325
      %v2023 = vunpack.c.l.b16 %v1326
      %v2024 = vunpack.c.h.b16 %v1326
      %v2025 = vunpack.c.l.b16 %v1327
      %v2026 = vunpack.c.h.b16 %v1327
      %v2027 = vunpack.c.l.b16 %v1328
      %v2028 = vunpack.c.h.b16 %v1328
      %v2029 = vunpack.c.l.b16 %v1329
      %v2030 = vunpack.c.h.b16 %v1329
      %v2031 = vunpack.c.l.b16 %v1330
      %v2032 = vunpack.c.h.b16 %v1330
      %v2033 = vunpack.c.l.b16 %v1331
      %v2034 = vunpack.c.h.b16 %v1331
      %v2035 = vunpack.c.l.b16 %v1332
      %v2036 = vunpack.c.h.b16 %v1332
      %v2037 = vunpack.c.l.b16 %v1333
      %v2038 = vunpack.c.h.b16 %v1333
      %v2039 = vunpack.c.l.b16 %v1334
      %v2040 = vunpack.c.h.b16 %v1334
      %v2041 = vunpack.c.l.b16 %v1335
      %v2042 = vunpack.c.h.b16 %v1335
      %v2043 = vunpack.c.l.b16 %v1336
      %v2044 = vunpack.c.h.b16 %v1336
      %v2045 = vunpack.c.l.b16 %v1337
      %v2046 = vunpack.c.h.b16 %v1337
      %v2047 = vunpack.c.l.b16 %v1338
      %v2048 = vunpack.c.h.b16 %v1338
      %v2049 = vunpack.c.l.b16 %v1339
      %v2050 = vunpack.c.h.b16 %v1339
      %v2051 = vunpack.c.l.b16 %v1340
      %v2052 = vunpack.c.h.b16 %v1340
      %v2053 = vunpack.c.l.b16 %v1341
      %v2054 = vunpack.c.h.b16 %v1341
      %v2055 = vunpack.c.l.b16 %v1342
      %v2056 = vunpack.c.h.b16 %v1342
      %v2057 = vunpack.c.l.b16 %v1343
      %v2058 = vunpack.c.h.b16 %v1343
      %v2059 = vunpack.c.l.b16 %v1344
      %v2060 = vunpack.c.h.b16 %v1344
      %v2061 = vunpack.c.l.b16 %v1345
      %v2062 = vunpack.c.h.b16 %v1345
      %v2063 = vunpack.c.l.b16 %v1346
      %v2064 = vunpack.c.h.b16 %v1346
      %v2065 = vunpack.c.l.b16 %v1347
      %v2066 = vunpack.c.h.b16 %v1347
      %v2067 = vunpack.c.l.b16 %v1348
      %v2068 = vunpack.c.h.b16 %v1348
      %v2069 = vunpack.c.l.b16 %v1349
      %v2070 = vunpack.c.h.b16 %v1349
      %v2071 = vunpack.c.l.b16 %v1350
      %v2072 = vunpack.c.h.b16 %v1350
      %v2073 = vunpack.c.l.b16 %v1351
      %v2074 = vunpack.c.h.b16 %v1351
      %v2075 = vunpack.c.l.b16 %v1352
      %v2076 = vunpack.c.h.b16 %v1352
      %v2077 = vunpack.c.l.b16 %v1353
      %v2078 = vunpack.c.h.b16 %v1353
      %v2079 = vunpack.c.l.b16 %v1354
      %v2080 = vunpack.c.h.b16 %v1354
      %v2081 = vunpack.c.l.b16 %v1355
      %v2082 = vunpack.c.h.b16 %v1355
      %v2083 = vunpack.c.l.b16 %v1356
      %v2084 = vunpack.c.h.b16 %v1356
      %v2085 = vunpack.c.l.b16 %v1357
      %v2086 = vunpack.c.h.b16 %v1357
      %v2087 = vunpack.c.l.b16 %v1358
      %v2088 = vunpack.c.h.b16 %v1358
      %v2089 = vunpack.c.l.b16 %v1359
      %v2090 = vunpack.c.h.b16 %v1359
      %v2091 = vunpack.c.l.b16 %v1360
      %v2092 = vunpack.c.h.b16 %v1360
      %v2093 = vunpack.c.l.b16 %v1361
      %v2094 = vunpack.c.h.b16 %v1361
      %v2095 = vunpack.c.l.b16 %v1362
      %v2096 = vunpack.c.h.b16 %v1362
      %v2097 = vunpack.c.l.b16 %v1363
      %v2098 = vunpack.c.h.b16 %v1363
      %v2099 = vunpack.c.l.b16 %v1364
      %v2100 = vunpack.c.h.b16 %v1364
      %v2101 = vunpack.c.l.b16 %v1365
      %v2102 = vunpack.c.h.b16 %v1365
      %v2103 = vunpack.c.l.b16 %v1366
      %v2104 = vunpack.c.h.b16 %v1366
      %v2105 = vunpack.c.l.b16 %v1367
      %v2106 = vunpack.c.h.b16 %v1367
      %v2107 = vunpack.c.l.b16 %v1368
      %v2108 = vunpack.c.h.b16 %v1368
      %v2109 = vunpack.c.l.b16 %v1369
      %v2110 = vunpack.c.h.b16 %v1369
      %v2111 = vunpack.c.l.b16 %v1370
      %v2112 = vunpack.c.h.b16 %v1370
      %v2113 = vunpack.c.l.b16 %v1371
      %v2114 = vunpack.c.h.b16 %v1371
      %v2115 = vunpack.c.l.b16 %v1372
      %v2116 = vunpack.c.h.b16 %v1372
      %v2117 = vunpack.c.l.b16 %v1373
      %v2118 = vunpack.c.h.b16 %v1373
      %v2119 = vunpack.c.l.b16 %v1374
      %v2120 = vunpack.c.h.b16 %v1374
      %v2121 = vunpack.c.l.b16 %v1375
      %v2122 = vunpack.c.h.b16 %v1375
      %v2123 = vunpack.c.l.b16 %v1376
      %v2124 = vunpack.c.h.b16 %v1376
      %v2125 = vunpack.c.l.b16 %v1377
      %v2126 = vunpack.c.h.b16 %v1377
      %v2127 = vunpack.c.l.b16 %v1378
      %v2128 = vunpack.c.h.b16 %v1378
      %v2129 = vunpack.c.l.b16 %v1379
      %v2130 = vunpack.c.h.b16 %v1379
      %v2131 = vunpack.c.l.b16 %v1380
      %v2132 = vunpack.c.h.b16 %v1380
      %v2133 = vunpack.c.l.b16 %v1381
      %v2134 = vunpack.c.h.b16 %v1381
      %v2135 = vunpack.c.l.b16 %v1382
      %v2136 = vunpack.c.h.b16 %v1382
      %v2137 = vunpack.c.l.b16 %v1383
      %v2138 = vunpack.c.h.b16 %v1383
      %v2139 = vunpack.c.l.b16 %v1384
      %v2140 = vunpack.c.h.b16 %v1384
      %v2141 = vunpack.c.l.b16 %v1385
      %v2142 = vunpack.c.h.b16 %v1385
      %v2143 = vunpack.c.l.b16 %v1386
      %v2144 = vunpack.c.h.b16 %v1386
      %v2145 = vunpack.c.l.b16 %v1387
      %v2146 = vunpack.c.h.b16 %v1387
      %v2147 = vunpack.c.l.b16 %v1388
      %v2148 = vunpack.c.h.b16 %v1388
      %v2149 = vunpack.c.l.b16 %v1389
      %v2150 = vunpack.c.h.b16 %v1389
      %v2151 = vunpack.c.l.b16 %v1390
      %v2152 = vunpack.c.h.b16 %v1390
      %v2153 = vunpack.c.l.b16 %v1391
      %v2154 = vunpack.c.h.b16 %v1391
      %v2155 = vunpack.c.l.b16 %v1392
      %v2156 = vunpack.c.h.b16 %v1392
      %v2157 = vunpack.c.l.b16 %v1393
      %v2158 = vunpack.c.h.b16 %v1393
      %v2159 = vunpack.c.l.b16 %v1394
      %v2160 = vunpack.c.h.b16 %v1394
      %v2161 = vunpack.c.l.b16 %v1395
      %v2162 = vunpack.c.h.b16 %v1395
      %v2163 = vunpack.c.l.b16 %v1396
      %v2164 = vunpack.c.h.b16 %v1396
      %v2165 = vpack.c.b16 %v1661, %v1653
      %v2166 = vpack.c.b16 %v1662, %v1654
      %v2167 = vpack.c.b16 %v1663, %v1655
      %v2168 = vpack.c.b16 %v1664, %v1656
      %v2169 = vpack.c.b16 %v1665, %v1657
      %v2170 = vpack.c.b16 %v1666, %v1658
      %v2171 = vpack.c.b16 %v1667, %v1659
      %v2172 = vpack.c.b16 %v1668, %v1660
      %v2173 = vpack.c.b16 %v1677, %v1669
      %v2174 = vpack.c.b16 %v1678, %v1670
      %v2175 = vpack.c.b16 %v1679, %v1671
      %v2176 = vpack.c.b16 %v1680, %v1672
      %v2177 = vpack.c.b16 %v1681, %v1673
      %v2178 = vpack.c.b16 %v1682, %v1674
      %v2179 = vpack.c.b16 %v1683, %v1675
      %v2180 = vpack.c.b16 %v1684, %v1676
      %v2181 = vpack.c.b16 %v1693, %v1685
      %v2182 = vpack.c.b16 %v1694, %v1686
      %v2183 = vpack.c.b16 %v1695, %v1687
      %v2184 = vpack.c.b16 %v1696, %v1688
      %v2185 = vpack.c.b16 %v1697, %v1689
      %v2186 = vpack.c.b16 %v1698, %v1690
      %v2187 = vpack.c.b16 %v1699, %v1691
      %v2188 = vpack.c.b16 %v1700, %v1692
      %v2189 = vpack.c.b16 %v1709, %v1701
      %v2190 = vpack.c.b16 %v1710, %v1702
      %v2191 = vpack.c.b16 %v1711, %v1703
      %v2192 = vpack.c.b16 %v1712, %v1704
      %v2193 = vpack.c.b16 %v1713, %v1705
      %v2194 = vpack.c.b16 %v1714, %v1706
      %v2195 = vpack.c.b16 %v1715, %v1707
      %v2196 = vpack.c.b16 %v1716, %v1708
      %v2197 = vpack.c.b16 %v1725, %v1717
      %v2198 = vpack.c.b16 %v1726, %v1718
      %v2199 = vpack.c.b16 %v1727, %v1719
      %v2200 = vpack.c.b16 %v1728, %v1720
      %v2201 = vpack.c.b16 %v1729, %v1721
      %v2202 = vpack.c.b16 %v1730, %v1722
      %v2203 = vpack.c.b16 %v1731, %v1723
      %v2204 = vpack.c.b16 %v1732, %v1724
      %v2205 = vpack.c.b16 %v1741, %v1733
      %v2206 = vpack.c.b16 %v1742, %v1734
      %v2207 = vpack.c.b16 %v1743, %v1735
      %v2208 = vpack.c.b16 %v1744, %v1736
      %v2209 = vpack.c.b16 %v1745, %v1737
      %v2210 = vpack.c.b16 %v1746, %v1738
      %v2211 = vpack.c.b16 %v1747, %v1739
      %v2212 = vpack.c.b16 %v1748, %v1740
      %v2213 = vpack.c.b16 %v1757, %v1749
      %v2214 = vpack.c.b16 %v1758, %v1750
      %v2215 = vpack.c.b16 %v1759, %v1751
      %v2216 = vpack.c.b16 %v1760, %v1752
      %v2217 = vpack.c.b16 %v1761, %v1753
      %v2218 = vpack.c.b16 %v1762, %v1754
      %v2219 = vpack.c.b16 %v1763, %v1755
      %v2220 = vpack.c.b16 %v1764, %v1756
      %v2221 = vpack.c.b16 %v1773, %v1765
      %v2222 = vpack.c.b16 %v1774, %v1766
      %v2223 = vpack.c.b16 %v1775, %v1767
      %v2224 = vpack.c.b16 %v1776, %v1768
      %v2225 = vpack.c.b16 %v1777, %v1769
      %v2226 = vpack.c.b16 %v1778, %v1770
      %v2227 = vpack.c.b16 %v1779, %v1771
      %v2228 = vpack.c.b16 %v1780, %v1772
      %v2229 = vpack.c.b16 %v1789, %v1781
      %v2230 = vpack.c.b16 %v1790, %v1782
      %v2231 = vpack.c.b16 %v1791, %v1783
      %v2232 = vpack.c.b16 %v1792, %v1784
      %v2233 = vpack.c.b16 %v1793, %v1785
      %v2234 = vpack.c.b16 %v1794, %v1786
      %v2235 = vpack.c.b16 %v1795, %v1787
      %v2236 = vpack.c.b16 %v1796, %v1788
      %v2237 = vpack.c.b16 %v1805, %v1797
      %v2238 = vpack.c.b16 %v1806, %v1798
      %v2239 = vpack.c.b16 %v1807, %v1799
      %v2240 = vpack.c.b16 %v1808, %v1800
      %v2241 = vpack.c.b16 %v1809, %v1801
      %v2242 = vpack.c.b16 %v1810, %v1802
      %v2243 = vpack.c.b16 %v1811, %v1803
      %v2244 = vpack.c.b16 %v1812, %v1804
      %v2245 = vpack.c.b16 %v1821, %v1813
      %v2246 = vpack.c.b16 %v1822, %v1814
      %v2247 = vpack.c.b16 %v1823, %v1815
      %v2248 = vpack.c.b16 %v1824, %v1816
      %v2249 = vpack.c.b16 %v1825, %v1817
      %v2250 = vpack.c.b16 %v1826, %v1818
      %v2251 = vpack.c.b16 %v1827, %v1819
      %v2252 = vpack.c.b16 %v1828, %v1820
      %v2253 = vpack.c.b16 %v1837, %v1829
      %v2254 = vpack.c.b16 %v1838, %v1830
      %v2255 = vpack.c.b16 %v1839, %v1831
      %v2256 = vpack.c.b16 %v1840, %v1832
      %v2257 = vpack.c.b16 %v1841, %v1833
      %v2258 = vpack.c.b16 %v1842, %v1834
      %v2259 = vpack.c.b16 %v1843, %v1835
      %v2260 = vpack.c.b16 %v1844, %v1836
      %v2261 = vpack.c.b16 %v1853, %v1845
      %v2262 = vpack.c.b16 %v1854, %v1846
      %v2263 = vpack.c.b16 %v1855, %v1847
      %v2264 = vpack.c.b16 %v1856, %v1848
      %v2265 = vpack.c.b16 %v1857, %v1849
      %v2266 = vpack.c.b16 %v1858, %v1850
      %v2267 = vpack.c.b16 %v1859, %v1851
      %v2268 = vpack.c.b16 %v1860, %v1852
      %v2269 = vpack.c.b16 %v1869, %v1861
      %v2270 = vpack.c.b16 %v1870, %v1862
      %v2271 = vpack.c.b16 %v1871, %v1863
      %v2272 = vpack.c.b16 %v1872, %v1864
      %v2273 = vpack.c.b16 %v1873, %v1865
      %v2274 = vpack.c.b16 %v1874, %v1866
      %v2275 = vpack.c.b16 %v1875, %v1867
      %v2276 = vpack.c.b16 %v1876, %v1868
      %v2277 = vpack.c.b16 %v1885, %v1877
      %v2278 = vpack.c.b16 %v1886, %v1878
      %v2279 = vpack.c.b16 %v1887, %v1879
      %v2280 = vpack.c.b16 %v1888, %v1880
      %v2281 = vpack.c.b16 %v1889, %v1881
      %v2282 = vpack.c.b16 %v1890, %v1882
      %v2283 = vpack.c.b16 %v1891, %v1883
      %v2284 = vpack.c.b16 %v1892, %v1884
      %v2285 = vpack.c.b16 %v1901, %v1893
      %v2286 = vpack.c.b16 %v1902, %v1894
      %v2287 = vpack.c.b16 %v1903, %v1895
      %v2288 = vpack.c.b16 %v1904, %v1896
      %v2289 = vpack.c.b16 %v1905, %v1897
      %v2290 = vpack.c.b16 %v1906, %v1898
      %v2291 = vpack.c.b16 %v1907, %v1899
      %v2292 = vpack.c.b16 %v1908, %v1900
      %v2293 = vpack.c.b16 %v1917, %v1909
      %v2294 = vpack.c.b16 %v1918, %v1910
      %v2295 = vpack.c.b16 %v1919, %v1911
      %v2296 = vpack.c.b16 %v1920, %v1912
      %v2297 = vpack.c.b16 %v1921, %v1913
      %v2298 = vpack.c.b16 %v1922, %v1914
      %v2299 = vpack.c.b16 %v1923, %v1915
      %v2300 = vpack.c.b16 %v1924, %v1916
      %v2301 = vpack.c.b16 %v1933, %v1925
      %v2302 = vpack.c.b16 %v1934, %v1926
      %v2303 = vpack.c.b16 %v1935, %v1927
      %v2304 = vpack.c.b16 %v1936, %v1928
      %v2305 = vpack.c.b16 %v1937, %v1929
      %v2306 = vpack.c.b16 %v1938, %v1930
      %v2307 = vpack.c.b16 %v1939, %v1931
      %v2308 = vpack.c.b16 %v1940, %v1932
      %v2309 = vpack.c.b16 %v1949, %v1941
      %v2310 = vpack.c.b16 %v1950, %v1942
      %v2311 = vpack.c.b16 %v1951, %v1943
      %v2312 = vpack.c.b16 %v1952, %v1944
      %v2313 = vpack.c.b16 %v1953, %v1945
      %v2314 = vpack.c.b16 %v1954, %v1946
      %v2315 = vpack.c.b16 %v1955, %v1947
      %v2316 = vpack.c.b16 %v1956, %v1948
      %v2317 = vpack.c.b16 %v1965, %v1957
      %v2318 = vpack.c.b16 %v1966, %v1958
      %v2319 = vpack.c.b16 %v1967, %v1959
      %v2320 = vpack.c.b16 %v1968, %v1960
      %v2321 = vpack.c.b16 %v1969, %v1961
      %v2322 = vpack.c.b16 %v1970, %v1962
      %v2323 = vpack.c.b16 %v1971, %v1963
      %v2324 = vpack.c.b16 %v1972, %v1964
      %v2325 = vpack.c.b16 %v1981, %v1973
      %v2326 = vpack.c.b16 %v1982, %v1974
      %v2327 = vpack.c.b16 %v1983, %v1975
      %v2328 = vpack.c.b16 %v1984, %v1976
      %v2329 = vpack.c.b16 %v1985, %v1977
      %v2330 = vpack.c.b16 %v1986, %v1978
      %v2331 = vpack.c.b16 %v1987, %v1979
      %v2332 = vpack.c.b16 %v1988, %v1980
      %v2333 = vpack.c.b16 %v1997, %v1989
      %v2334 = vpack.c.b16 %v1998, %v1990
      %v2335 = vpack.c.b16 %v1999, %v1991
      %v2336 = vpack.c.b16 %v2000, %v1992
      %v2337 = vpack.c.b16 %v2001, %v1993
      %v2338 = vpack.c.b16 %v2002, %v1994
      %v2339 = vpack.c.b16 %v2003, %v1995
      %v2340 = vpack.c.b16 %v2004, %v1996
      %v2341 = vpack.c.b16 %v2013, %v2005
      %v2342 = vpack.c.b16 %v2014, %v2006
      %v2343 = vpack.c.b16 %v2015, %v2007
      %v2344 = vpack.c.b16 %v2016, %v2008
      %v2345 = vpack.c.b16 %v2017, %v2009
      %v2346 = vpack.c.b16 %v2018, %v2010
      %v2347 = vpack.c.b16 %v2019, %v2011
      %v2348 = vpack.c.b16 %v2020, %v2012
      %v2349 = vpack.c.b16 %v2029, %v2021
      %v2350 = vpack.c.b16 %v2030, %v2022
      %v2351 = vpack.c.b16 %v2031, %v2023
      %v2352 = vpack.c.b16 %v2032, %v2024
      %v2353 = vpack.c.b16 %v2033, %v2025
      %v2354 = vpack.c.b16 %v2034, %v2026
      %v2355 = vpack.c.b16 %v2035, %v2027
      %v2356 = vpack.c.b16 %v2036, %v2028
      %v2357 = vpack.c.b16 %v2045, %v2037
      %v2358 = vpack.c.b16 %v2046, %v2038
      %v2359 = vpack.c.b16 %v2047, %v2039
      %v2360 = vpack.c.b16 %v2048, %v2040
      %v2361 = vpack.c.b16 %v2049, %v2041
      %v2362 = vpack.c.b16 %v2050, %v2042
      %v2363 = vpack.c.b16 %v2051, %v2043
      %v2364 = vpack.c.b16 %v2052, %v2044
      %v2365 = vpack.c.b16 %v2061, %v2053
      %v2366 = vpack.c.b16 %v2062, %v2054
      %v2367 = vpack.c.b16 %v2063, %v2055
      %v2368 = vpack.c.b16 %v2064, %v2056
      %v2369 = vpack.c.b16 %v2065, %v2057
      %v2370 = vpack.c.b16 %v2066, %v2058
      %v2371 = vpack.c.b16 %v2067, %v2059
      %v2372 = vpack.c.b16 %v2068, %v2060
      %v2373 = vpack.c.b16 %v2077, %v2069
      %v2374 = vpack.c.b16 %v2078, %v2070
      %v2375 = vpack.c.b16 %v2079, %v2071
      %v2376 = vpack.c.b16 %v2080, %v2072
      %v2377 = vpack.c.b16 %v2081, %v2073
      %v2378 = vpack.c.b16 %v2082, %v2074
      %v2379 = vpack.c.b16 %v2083, %v2075
      %v2380 = vpack.c.b16 %v2084, %v2076
      %v2381 = vpack.c.b16 %v2093, %v2085
      %v2382 = vpack.c.b16 %v2094, %v2086
      %v2383 = vpack.c.b16 %v2095, %v2087
      %v2384 = vpack.c.b16 %v2096, %v2088
      %v2385 = vpack.c.b16 %v2097, %v2089
      %v2386 = vpack.c.b16 %v2098, %v2090
      %v2387 = vpack.c.b16 %v2099, %v2091
      %v2388 = vpack.c.b16 %v2100, %v2092
      %v2389 = vpack.c.b16 %v2109, %v2101
      %v2390 = vpack.c.b16 %v2110, %v2102
      %v2391 = vpack.c.b16 %v2111, %v2103
      %v2392 = vpack.c.b16 %v2112, %v2104
      %v2393 = vpack.c.b16 %v2113, %v2105
      %v2394 = vpack.c.b16 %v2114, %v2106
      %v2395 = vpack.c.b16 %v2115, %v2107
      %v2396 = vpack.c.b16 %v2116, %v2108
      %v2397 = vpack.c.b16 %v2125, %v2117
      %v2398 = vpack.c.b16 %v2126, %v2118
      %v2399 = vpack.c.b16 %v2127, %v2119
      %v2400 = vpack.c.b16 %v2128, %v2120
      %v2401 = vpack.c.b16 %v2129, %v2121
      %v2402 = vpack.c.b16 %v2130, %v2122
      %v2403 = vpack.c.b16 %v2131, %v2123
      %v2404 = vpack.c.b16 %v2132, %v2124
      %v2405 = vpack.c.b16 %v2141, %v2133
      %v2406 = vpack.c.b16 %v2142, %v2134
      %v2407 = vpack.c.b16 %v2143, %v2135
      %v2408 = vpack.c.b16 %v2144, %v2136
      %v2409 = vpack.c.b16 %v2145, %v2137
      %v2410 = vpack.c.b16 %v2146, %v2138
      %v2411 = vpack.c.b16 %v2147, %v2139
      %v2412 = vpack.c.b16 %v2148, %v2140
      %v2413 = vpack.c.b16 %v2157, %v2149
      %v2414 = vpack.c.b16 %v2158, %v2150
      %v2415 = vpack.c.b16 %v2159, %v2151
      %v2416 = vpack.c.b16 %v2160, %v2152
      %v2417 = vpack.c.b16 %v2161, %v2153
      %v2418 = vpack.c.b16 %v2162, %v2154
      %v2419 = vpack.c.b16 %v2163, %v2155
      %v2420 = vpack.c.b16 %v2164, %v2156
      %2677 = vmatprep.subr.bf16.mxu0 %v2166
      %2678 = vmatpush1.bf16.msra.mxu0 %v2165
      %2679 = vmatprep.subr.bf16.mxu0 %v2174
      %2680 = vmatpush1.bf16.msra.mxu0 %v2173
      %2681 = vmatprep.subr.bf16.mxu0 %v2182
      %2682 = vmatpush1.bf16.msra.mxu0 %v2181
      %2683 = vmatprep.subr.bf16.mxu0 %v2190
      %2684 = vmatpush1.bf16.msra.mxu0 %v2189
      %2685 = vmatprep.subr.bf16.mxu0 %v2198
      %2686 = vmatpush1.bf16.msra.mxu0 %v2197
      %2687 = vmatprep.subr.bf16.mxu0 %v2206
      %2688 = vmatpush1.bf16.msra.mxu0 %v2205
      %2689 = vmatprep.subr.bf16.mxu0 %v2214
      %2690 = vmatpush1.bf16.msra.mxu0 %v2213
      %2691 = vmatprep.subr.bf16.mxu0 %v2222
      %2692 = vmatpush1.bf16.msra.mxu0 %v2221
      %2693 = vmatprep.subr.bf16.mxu0 %v2230
      %2694 = vmatpush1.bf16.msra.mxu0 %v2229
      %2695 = vmatprep.subr.bf16.mxu0 %v2238
      %2696 = vmatpush1.bf16.msra.mxu0 %v2237
      %2697 = vmatprep.subr.bf16.mxu0 %v2246
      %2698 = vmatpush1.bf16.msra.mxu0 %v2245
      %2699 = vmatprep.subr.bf16.mxu0 %v2254
      %2700 = vmatpush1.bf16.msra.mxu0 %v2253
      %2701 = vmatprep.subr.bf16.mxu0 %v2262
      %2702 = vmatpush1.bf16.msra.mxu0 %v2261
      %2703 = vmatprep.subr.bf16.mxu0 %v2270
      %2704 = vmatpush1.bf16.msra.mxu0 %v2269
      %2705 = vmatprep.subr.bf16.mxu0 %v2278
      %2706 = vmatpush1.bf16.msra.mxu0 %v2277
      %2707 = vmatprep.subr.bf16.mxu0 %v2286
      %2708 = vmatpush1.bf16.msra.mxu0 %v2285
      %2709 = vmatprep.mubr.bf16.mxu0 %v1138
      %2710 = vmatmul.mubr.bf16.gmra.mrb[0].mxu0 %v1137
      %v2711 = vpop.f32.mrb[0].mxu0
      %v2712 = vadd.f32 0.0, %v2711
      %v2713 = vpop.f32.mrb[0].mxu0
      %v2714 = vadd.f32 0.0, %v2713
      %v2715 = vpop.f32.mrb[0].mxu0
      %v2716 = vpop.f32.mrb[0].mxu0
      %2717 = vdwg.mxu0
      %2718 = vmatprep.subr.bf16.mxu0 %v2294
      %2719 = vmatpush1.bf16.msra.mxu0 %v2293
      %2720 = vmatprep.subr.bf16.mxu0 %v2302
      %2721 = vmatpush1.bf16.msra.mxu0 %v2301
      %2722 = vmatprep.subr.bf16.mxu0 %v2310
      %2723 = vmatpush1.bf16.msra.mxu0 %v2309
      %2724 = vmatprep.subr.bf16.mxu0 %v2318
      %2725 = vmatpush1.bf16.msra.mxu0 %v2317
      %2726 = vmatprep.subr.bf16.mxu0 %v2326
      %2727 = vmatpush1.bf16.msra.mxu0 %v2325
      %2728 = vmatprep.subr.bf16.mxu0 %v2334
      %2729 = vmatpush1.bf16.msra.mxu0 %v2333
      %2730 = vmatprep.subr.bf16.mxu0 %v2342
      %2731 = vmatpush1.bf16.msra.mxu0 %v2341
      %2732 = vmatprep.subr.bf16.mxu0 %v2350
      %2733 = vmatpush1.bf16.msra.mxu0 %v2349
      %2734 = vmatprep.subr.bf16.mxu0 %v2358
      %2735 = vmatpush1.bf16.msra.mxu0 %v2357
      %2736 = vmatprep.subr.bf16.mxu0 %v2366
      %2737 = vmatpush1.bf16.msra.mxu0 %v2365
      %2738 = vmatprep.subr.bf16.mxu0 %v2374
      %2739 = vmatpush1.bf16.msra.mxu0 %v2373
      %2740 = vmatprep.subr.bf16.mxu0 %v2382
      %2741 = vmatpush1.bf16.msra.mxu0 %v2381
      %2742 = vmatprep.subr.bf16.mxu0 %v2390
      %2743 = vmatpush1.bf16.msra.mxu0 %v2389
      %2744 = vmatprep.subr.bf16.mxu0 %v2398
      %2745 = vmatpush1.bf16.msra.mxu0 %v2397
      %2746 = vmatprep.subr.bf16.mxu0 %v2406
      %2747 = vmatpush1.bf16.msra.mxu0 %v2405
      %2748 = vmatprep.subr.bf16.mxu0 %v2414
      %2749 = vmatpush1.bf16.msra.mxu0 %v2413
      %2750 = vmatprep.mubr.bf16.mxu0 %v1140
      %2751 = vmatmul.mubr.bf16.gmra.mrb[0].mxu0 %v1139
      %v2752 = vpop.f32.mrb[0].mxu0
      %v2753 = vadd.f32 %v2712, %v2752
      %v2754 = vpop.f32.mrb[0].mxu0
      %v2755 = vadd.f32 %v2714, %v2754
      %v2756 = vpop.f32.mrb[0].mxu0
      %v2757 = vpop.f32.mrb[0].mxu0
      %2758 = vdwg.mxu0
      %2759 = vmatprep.subr.bf16.mxu0 %v2168
      %2760 = vmatpush1.bf16.msra.mxu0 %v2167
      %2761 = vmatprep.subr.bf16.mxu0 %v2176
      %2762 = vmatpush1.bf16.msra.mxu0 %v2175
      %2763 = vmatprep.subr.bf16.mxu0 %v2184
      %2764 = vmatpush1.bf16.msra.mxu0 %v2183
      %2765 = vmatprep.subr.bf16.mxu0 %v2192
      %2766 = vmatpush1.bf16.msra.mxu0 %v2191
      %2767 = vmatprep.subr.bf16.mxu0 %v2200
      %2768 = vmatpush1.bf16.msra.mxu0 %v2199
      %2769 = vmatprep.subr.bf16.mxu0 %v2208
      %2770 = vmatpush1.bf16.msra.mxu0 %v2207
      %2771 = vmatprep.subr.bf16.mxu0 %v2216
      %2772 = vmatpush1.bf16.msra.mxu0 %v2215
      %2773 = vmatprep.subr.bf16.mxu0 %v2224
      %2774 = vmatpush1.bf16.msra.mxu0 %v2223
      %2775 = vmatprep.subr.bf16.mxu0 %v2232
      %2776 = vmatpush1.bf16.msra.mxu0 %v2231
      %2777 = vmatprep.subr.bf16.mxu0 %v2240
      %2778 = vmatpush1.bf16.msra.mxu0 %v2239
      %2779 = vmatprep.subr.bf16.mxu0 %v2248
      %2780 = vmatpush1.bf16.msra.mxu0 %v2247
      %2781 = vmatprep.subr.bf16.mxu0 %v2256
      %2782 = vmatpush1.bf16.msra.mxu0 %v2255
      %2783 = vmatprep.subr.bf16.mxu0 %v2264
      %2784 = vmatpush1.bf16.msra.mxu0 %v2263
      %2785 = vmatprep.subr.bf16.mxu0 %v2272
      %2786 = vmatpush1.bf16.msra.mxu0 %v2271
      %2787 = vmatprep.subr.bf16.mxu0 %v2280
      %2788 = vmatpush1.bf16.msra.mxu0 %v2279
      %2789 = vmatprep.subr.bf16.mxu0 %v2288
      %2790 = vmatpush1.bf16.msra.mxu0 %v2287
      %2791 = vmatprep.mubr.bf16.mxu0 %v1138
      %2792 = vmatmul.mubr.bf16.gmra.mrb[0].mxu0 %v1137
      %v2793 = vpop.f32.mrb[0].mxu0
      %v2794 = vadd.f32 0.0, %v2793
      %v2795 = vpop.f32.mrb[0].mxu0
      %v2796 = vadd.f32 0.0, %v2795
      %v2797 = vpop.f32.mrb[0].mxu0
      %v2798 = vpop.f32.mrb[0].mxu0
      %2799 = vdwg.mxu0
      %2800 = vmatprep.subr.bf16.mxu0 %v2296
      %2801 = vmatpush1.bf16.msra.mxu0 %v2295
      %2802 = vmatprep.subr.bf16.mxu0 %v2304
      %2803 = vmatpush1.bf16.msra.mxu0 %v2303
      %2804 = vmatprep.subr.bf16.mxu0 %v2312
      %2805 = vmatpush1.bf16.msra.mxu0 %v2311
      %2806 = vmatprep.subr.bf16.mxu0 %v2320
      %2807 = vmatpush1.bf16.msra.mxu0 %v2319
      %2808 = vmatprep.subr.bf16.mxu0 %v2328
      %2809 = vmatpush1.bf16.msra.mxu0 %v2327
      %2810 = vmatprep.subr.bf16.mxu0 %v2336
      %2811 = vmatpush1.bf16.msra.mxu0 %v2335
      %2812 = vmatprep.subr.bf16.mxu0 %v2344
      %2813 = vmatpush1.bf16.msra.mxu0 %v2343
      %2814 = vmatprep.subr.bf16.mxu0 %v2352
      %2815 = vmatpush1.bf16.msra.mxu0 %v2351
      %2816 = vmatprep.subr.bf16.mxu0 %v2360
      %2817 = vmatpush1.bf16.msra.mxu0 %v2359
      %2818 = vmatprep.subr.bf16.mxu0 %v2368
      %2819 = vmatpush1.bf16.msra.mxu0 %v2367
      %2820 = vmatprep.subr.bf16.mxu0 %v2376
      %2821 = vmatpush1.bf16.msra.mxu0 %v2375
      %2822 = vmatprep.subr.bf16.mxu0 %v2384
      %2823 = vmatpush1.bf16.msra.mxu0 %v2383
      %2824 = vmatprep.subr.bf16.mxu0 %v2392
      %2825 = vmatpush1.bf16.msra.mxu0 %v2391
      %2826 = vmatprep.subr.bf16.mxu0 %v2400
      %2827 = vmatpush1.bf16.msra.mxu0 %v2399
      %2828 = vmatprep.subr.bf16.mxu0 %v2408
      %2829 = vmatpush1.bf16.msra.mxu0 %v2407
      %2830 = vmatprep.subr.bf16.mxu0 %v2416
      %2831 = vmatpush1.bf16.msra.mxu0 %v2415
      %2832 = vmatprep.mubr.bf16.mxu0 %v1140
      %2833 = vmatmul.mubr.bf16.gmra.mrb[0].mxu0 %v1139
      %v2834 = vpop.f32.mrb[0].mxu0
      %v2835 = vadd.f32 %v2794, %v2834
      %v2836 = vpop.f32.mrb[0].mxu0
      %v2837 = vadd.f32 %v2796, %v2836
      %v2838 = vpop.f32.mrb[0].mxu0
      %v2839 = vpop.f32.mrb[0].mxu0
      %2840 = vdwg.mxu0
      %2841 = vmatprep.subr.bf16.mxu0 %v2170
      %2842 = vmatpush1.bf16.msra.mxu0 %v2169
      %2843 = vmatprep.subr.bf16.mxu0 %v2178
      %2844 = vmatpush1.bf16.msra.mxu0 %v2177
      %2845 = vmatprep.subr.bf16.mxu0 %v2186
      %2846 = vmatpush1.bf16.msra.mxu0 %v2185
      %2847 = vmatprep.subr.bf16.mxu0 %v2194
      %2848 = vmatpush1.bf16.msra.mxu0 %v2193
      %2849 = vmatprep.subr.bf16.mxu0 %v2202
      %2850 = vmatpush1.bf16.msra.mxu0 %v2201
      %2851 = vmatprep.subr.bf16.mxu0 %v2210
      %2852 = vmatpush1.bf16.msra.mxu0 %v2209
      %2853 = vmatprep.subr.bf16.mxu0 %v2218
      %2854 = vmatpush1.bf16.msra.mxu0 %v2217
      %2855 = vmatprep.subr.bf16.mxu0 %v2226
      %2856 = vmatpush1.bf16.msra.mxu0 %v2225
      %2857 = vmatprep.subr.bf16.mxu0 %v2234
      %2858 = vmatpush1.bf16.msra.mxu0 %v2233
      %2859 = vmatprep.subr.bf16.mxu0 %v2242
      %2860 = vmatpush1.bf16.msra.mxu0 %v2241
      %2861 = vmatprep.subr.bf16.mxu0 %v2250
      %2862 = vmatpush1.bf16.msra.mxu0 %v2249
      %2863 = vmatprep.subr.bf16.mxu0 %v2258
      %2864 = vmatpush1.bf16.msra.mxu0 %v2257
      %2865 = vmatprep.subr.bf16.mxu0 %v2266
      %2866 = vmatpush1.bf16.msra.mxu0 %v2265
      %2867 = vmatprep.subr.bf16.mxu0 %v2274
      %2868 = vmatpush1.bf16.msra.mxu0 %v2273
      %2869 = vmatprep.subr.bf16.mxu0 %v2282
      %2870 = vmatpush1.bf16.msra.mxu0 %v2281
      %2871 = vmatprep.subr.bf16.mxu0 %v2290
      %2872 = vmatpush1.bf16.msra.mxu0 %v2289
      %2873 = vmatprep.mubr.bf16.mxu0 %v1138
      %2874 = vmatmul.mubr.bf16.gmra.mrb[0].mxu0 %v1137
      %v2875 = vpop.f32.mrb[0].mxu0
      %v2876 = vadd.f32 0.0, %v2875
      %v2877 = vpop.f32.mrb[0].mxu0
      %v2878 = vadd.f32 0.0, %v2877
      %v2879 = vpop.f32.mrb[0].mxu0
      %v2880 = vpop.f32.mrb[0].mxu0
      %2881 = vdwg.mxu0
      %2882 = vmatprep.subr.bf16.mxu0 %v2298
      %2883 = vmatpush1.bf16.msra.mxu0 %v2297
      %2884 = vmatprep.subr.bf16.mxu0 %v2306
      %2885 = vmatpush1.bf16.msra.mxu0 %v2305
      %2886 = vmatprep.subr.bf16.mxu0 %v2314
      %2887 = vmatpush1.bf16.msra.mxu0 %v2313
      %2888 = vmatprep.subr.bf16.mxu0 %v2322
      %2889 = vmatpush1.bf16.msra.mxu0 %v2321
      %2890 = vmatprep.subr.bf16.mxu0 %v2330
      %2891 = vmatpush1.bf16.msra.mxu0 %v2329
      %2892 = vmatprep.subr.bf16.mxu0 %v2338
      %2893 = vmatpush1.bf16.msra.mxu0 %v2337
      %2894 = vmatprep.subr.bf16.mxu0 %v2346
      %2895 = vmatpush1.bf16.msra.mxu0 %v2345
      %2896 = vmatprep.subr.bf16.mxu0 %v2354
      %2897 = vmatpush1.bf16.msra.mxu0 %v2353
      %2898 = vmatprep.subr.bf16.mxu0 %v2362
      %2899 = vmatpush1.bf16.msra.mxu0 %v2361
      %2900 = vmatprep.subr.bf16.mxu0 %v2370
      %2901 = vmatpush1.bf16.msra.mxu0 %v2369
      %2902 = vmatprep.subr.bf16.mxu0 %v2378
      %2903 = vmatpush1.bf16.msra.mxu0 %v2377
      %2904 = vmatprep.subr.bf16.mxu0 %v2386
      %2905 = vmatpush1.bf16.msra.mxu0 %v2385
      %2906 = vmatprep.subr.bf16.mxu0 %v2394
      %2907 = vmatpush1.bf16.msra.mxu0 %v2393
      %2908 = vmatprep.subr.bf16.mxu0 %v2402
      %2909 = vmatpush1.bf16.msra.mxu0 %v2401
      %2910 = vmatprep.subr.bf16.mxu0 %v2410
      %2911 = vmatpush1.bf16.msra.mxu0 %v2409
      %2912 = vmatprep.subr.bf16.mxu0 %v2418
      %2913 = vmatpush1.bf16.msra.mxu0 %v2417
      %2914 = vmatprep.mubr.bf16.mxu0 %v1140
      %2915 = vmatmul.mubr.bf16.gmra.mrb[0].mxu0 %v1139
      %v2916 = vpop.f32.mrb[0].mxu0
      %v2917 = vadd.f32 %v2876, %v2916
      %v2918 = vpop.f32.mrb[0].mxu0
      %v2919 = vadd.f32 %v2878, %v2918
      %v2920 = vpop.f32.mrb[0].mxu0
      %v2921 = vpop.f32.mrb[0].mxu0
      %2922 = vdwg.mxu0
      %2923 = vmatprep.subr.bf16.mxu0 %v2172
      %2924 = vmatpush1.bf16.msra.mxu0 %v2171
      %2925 = vmatprep.subr.bf16.mxu0 %v2180
      %2926 = vmatpush1.bf16.msra.mxu0 %v2179
      %2927 = vmatprep.subr.bf16.mxu0 %v2188
      %2928 = vmatpush1.bf16.msra.mxu0 %v2187
      %2929 = vmatprep.subr.bf16.mxu0 %v2196
      %2930 = vmatpush1.bf16.msra.mxu0 %v2195
      %2931 = vmatprep.subr.bf16.mxu0 %v2204
      %2932 = vmatpush1.bf16.msra.mxu0 %v2203
      %2933 = vmatprep.subr.bf16.mxu0 %v2212
      %2934 = vmatpush1.bf16.msra.mxu0 %v2211
      %2935 = vmatprep.subr.bf16.mxu0 %v2220
      %2936 = vmatpush1.bf16.msra.mxu0 %v2219
      %2937 = vmatprep.subr.bf16.mxu0 %v2228
      %2938 = vmatpush1.bf16.msra.mxu0 %v2227
      %2939 = vmatprep.subr.bf16.mxu0 %v2236
      %2940 = vmatpush1.bf16.msra.mxu0 %v2235
      %2941 = vmatprep.subr.bf16.mxu0 %v2244
      %2942 = vmatpush1.bf16.msra.mxu0 %v2243
      %2943 = vmatprep.subr.bf16.mxu0 %v2252
      %2944 = vmatpush1.bf16.msra.mxu0 %v2251
      %2945 = vmatprep.subr.bf16.mxu0 %v2260
      %2946 = vmatpush1.bf16.msra.mxu0 %v2259
      %2947 = vmatprep.subr.bf16.mxu0 %v2268
      %2948 = vmatpush1.bf16.msra.mxu0 %v2267
      %2949 = vmatprep.subr.bf16.mxu0 %v2276
      %2950 = vmatpush1.bf16.msra.mxu0 %v2275
      %2951 = vmatprep.subr.bf16.mxu0 %v2284
      %2952 = vmatpush1.bf16.msra.mxu0 %v2283
      %2953 = vmatprep.subr.bf16.mxu0 %v2292
      %2954 = vmatpush1.bf16.msra.mxu0 %v2291
      %2955 = vmatprep.mubr.bf16.mxu0 %v1138
      %2956 = vmatmul.mubr.bf16.gmra.mrb[0].mxu0 %v1137
      %v2957 = vpop.f32.mrb[0].mxu0
      %v2958 = vadd.f32 0.0, %v2957
      %v2959 = vpop.f32.mrb[0].mxu0
      %v2960 = vadd.f32 0.0, %v2959
      %v2961 = vpop.f32.mrb[0].mxu0
      %v2962 = vpop.f32.mrb[0].mxu0
      %2963 = vdwg.mxu0
      %2964 = vmatprep.subr.bf16.mxu0 %v2300
      %2965 = vmatpush1.bf16.msra.mxu0 %v2299
      %2966 = vmatprep.subr.bf16.mxu0 %v2308
      %2967 = vmatpush1.bf16.msra.mxu0 %v2307
      %2968 = vmatprep.subr.bf16.mxu0 %v2316
      %2969 = vmatpush1.bf16.msra.mxu0 %v2315
      %2970 = vmatprep.subr.bf16.mxu0 %v2324
      %2971 = vmatpush1.bf16.msra.mxu0 %v2323
      %2972 = vmatprep.subr.bf16.mxu0 %v2332
      %2973 = vmatpush1.bf16.msra.mxu0 %v2331
      %2974 = vmatprep.subr.bf16.mxu0 %v2340
      %2975 = vmatpush1.bf16.msra.mxu0 %v2339
      %2976 = vmatprep.subr.bf16.mxu0 %v2348
      %2977 = vmatpush1.bf16.msra.mxu0 %v2347
      %2978 = vmatprep.subr.bf16.mxu0 %v2356
      %2979 = vmatpush1.bf16.msra.mxu0 %v2355
      %2980 = vmatprep.subr.bf16.mxu0 %v2364
      %2981 = vmatpush1.bf16.msra.mxu0 %v2363
      %2982 = vmatprep.subr.bf16.mxu0 %v2372
      %2983 = vmatpush1.bf16.msra.mxu0 %v2371
      %2984 = vmatprep.subr.bf16.mxu0 %v2380
      %2985 = vmatpush1.bf16.msra.mxu0 %v2379
      %2986 = vmatprep.subr.bf16.mxu0 %v2388
      %2987 = vmatpush1.bf16.msra.mxu0 %v2387
      %2988 = vmatprep.subr.bf16.mxu0 %v2396
      %2989 = vmatpush1.bf16.msra.mxu0 %v2395
      %2990 = vmatprep.subr.bf16.mxu0 %v2404
      %2991 = vmatpush1.bf16.msra.mxu0 %v2403
      %2992 = vmatprep.subr.bf16.mxu0 %v2412
      %2993 = vmatpush1.bf16.msra.mxu0 %v2411
      %2994 = vmatprep.subr.bf16.mxu0 %v2420
      %2995 = vmatpush1.bf16.msra.mxu0 %v2419
      %2996 = vmatprep.mubr.bf16.mxu0 %v1140
      %2997 = vmatmul.mubr.bf16.gmra.mrb[0].mxu0 %v1139
      %v2998 = vpop.f32.mrb[0].mxu0
      %v2999 = vadd.f32 %v2958, %v2998
      %v3000 = vpop.f32.mrb[0].mxu0
      %v3001 = vadd.f32 %v2960, %v3000
      %v3002 = vpop.f32.mrb[0].mxu0
      %v3003 = vpop.f32.mrb[0].mxu0
      %3004 = vdwg.mxu0
      %v3005 = vrot.slane %v2753, 4
      %v3006 = vadd.f32 %v2753, %v3005
      %v3007 = vrot.slane %v3006, 2
      %v3008 = vadd.f32 %v3006, %v3007
      %v3009 = vrot.slane %v3008, 1
      %v3010 = vadd.f32 %v3008, %v3009
      %v3011 = vrot.slane %v2755, 4
      %v3012 = vadd.f32 %v2755, %v3011
      %v3013 = vrot.slane %v3012, 2
      %v3014 = vadd.f32 %v3012, %v3013
      %v3015 = vrot.slane %v3014, 1
      %v3016 = vadd.f32 %v3014, %v3015
      %v3017 = vrot.slane %v2835, 4
      %v3018 = vadd.f32 %v2835, %v3017
      %v3019 = vrot.slane %v3018, 2
      %v3020 = vadd.f32 %v3018, %v3019
      %v3021 = vrot.slane %v3020, 1
      %v3022 = vadd.f32 %v3020, %v3021
      %v3023 = vrot.slane %v2837, 4
      %v3024 = vadd.f32 %v2837, %v3023
      %v3025 = vrot.slane %v3024, 2
      %v3026 = vadd.f32 %v3024, %v3025
      %v3027 = vrot.slane %v3026, 1
      %v3028 = vadd.f32 %v3026, %v3027
      %v3029 = vrot.slane %v2917, 4
      %v3030 = vadd.f32 %v2917, %v3029
      %v3031 = vrot.slane %v3030, 2
      %v3032 = vadd.f32 %v3030, %v3031
      %v3033 = vrot.slane %v3032, 1
      %v3034 = vadd.f32 %v3032, %v3033
      %v3035 = vrot.slane %v2919, 4
      %v3036 = vadd.f32 %v2919, %v3035
      %v3037 = vrot.slane %v3036, 2
      %v3038 = vadd.f32 %v3036, %v3037
      %v3039 = vrot.slane %v3038, 1
      %v3040 = vadd.f32 %v3038, %v3039
      %v3041 = vrot.slane %v2999, 4
      %v3042 = vadd.f32 %v2999, %v3041
      %v3043 = vrot.slane %v3042, 2
      %v3044 = vadd.f32 %v3042, %v3043
      %v3045 = vrot.slane %v3044, 1
      %v3046 = vadd.f32 %v3044, %v3045
      %v3047 = vrot.slane %v3001, 4
      %v3048 = vadd.f32 %v3001, %v3047
      %v3049 = vrot.slane %v3048, 2
      %v3050 = vadd.f32 %v3048, %v3049
      %v3051 = vrot.slane %v3050, 1
      %v3052 = vadd.f32 %v3050, %v3051
      %v3053 = vmul.f32 %v2753, %v2753
      %v3054 = vmul.f32 %v2755, %v2755
      %v3055 = vmul.f32 %v2835, %v2835
      %v3056 = vmul.f32 %v2837, %v2837
      %v3057 = vmul.f32 %v2917, %v2917
      %v3058 = vmul.f32 %v2919, %v2919
      %v3059 = vmul.f32 %v2999, %v2999
      %v3060 = vmul.f32 %v3001, %v3001
      %v3061 = vrot.slane %v3053, 4
      %v3062 = vadd.f32 %v3053, %v3061
      %v3063 = vrot.slane %v3062, 2
      %v3064 = vadd.f32 %v3062, %v3063
      %v3065 = vrot.slane %v3064, 1
      %v3066 = vadd.f32 %v3064, %v3065
      %v3067 = vrot.slane %v3054, 4
      %v3068 = vadd.f32 %v3054, %v3067
      %v3069 = vrot.slane %v3068, 2
      %v3070 = vadd.f32 %v3068, %v3069
      %v3071 = vrot.slane %v3070, 1
      %v3072 = vadd.f32 %v3070, %v3071
      %v3073 = vrot.slane %v3055, 4
      %v3074 = vadd.f32 %v3055, %v3073
      %v3075 = vrot.slane %v3074, 2
      %v3076 = vadd.f32 %v3074, %v3075
      %v3077 = vrot.slane %v3076, 1
      %v3078 = vadd.f32 %v3076, %v3077
      %v3079 = vrot.slane %v3056, 4
      %v3080 = vadd.f32 %v3056, %v3079
      %v3081 = vrot.slane %v3080, 2
      %v3082 = vadd.f32 %v3080, %v3081
      %v3083 = vrot.slane %v3082, 1
      %v3084 = vadd.f32 %v3082, %v3083
      %v3085 = vrot.slane %v3057, 4
      %v3086 = vadd.f32 %v3057, %v3085
      %v3087 = vrot.slane %v3086, 2
      %v3088 = vadd.f32 %v3086, %v3087
      %v3089 = vrot.slane %v3088, 1
      %v3090 = vadd.f32 %v3088, %v3089
      %v3091 = vrot.slane %v3058, 4
      %v3092 = vadd.f32 %v3058, %v3091
      %v3093 = vrot.slane %v3092, 2
      %v3094 = vadd.f32 %v3092, %v3093
      %v3095 = vrot.slane %v3094, 1
      %v3096 = vadd.f32 %v3094, %v3095
      %v3097 = vrot.slane %v3059, 4
      %v3098 = vadd.f32 %v3059, %v3097
      %v3099 = vrot.slane %v3098, 2
      %v3100 = vadd.f32 %v3098, %v3099
      %v3101 = vrot.slane %v3100, 1
      %v3102 = vadd.f32 %v3100, %v3101
      %v3103 = vrot.slane %v3060, 4
      %v3104 = vadd.f32 %v3060, %v3103
      %v3105 = vrot.slane %v3104, 2
      %v3106 = vadd.f32 %v3104, %v3105
      %v3107 = vrot.slane %v3106, 1
      %v3108 = vadd.f32 %v3106, %v3107
      %v3109 = vmul.f32 %v3010, 0.125
      %v3110 = vmul.f32 %v3016, 0.125
      %v3111 = vmul.f32 %v3022, 0.125
      %v3112 = vmul.f32 %v3028, 0.125
      %v3113 = vmul.f32 %v3034, 0.125
      %v3114 = vmul.f32 %v3040, 0.125
      %v3115 = vmul.f32 %v3046, 0.125
      %v3116 = vmul.f32 %v3052, 0.125
      %v3117 = vmul.f32 %v3066, 0.125
      %v3118 = vmul.f32 %v3072, 0.125
      %v3119 = vmul.f32 %v3078, 0.125
      %v3120 = vmul.f32 %v3084, 0.125
      %v3121 = vmul.f32 %v3090, 0.125
      %v3122 = vmul.f32 %v3096, 0.125
      %v3123 = vmul.f32 %v3102, 0.125
      %v3124 = vmul.f32 %v3108, 0.125
      %v3125 = vmul.f32 %v3109, %v3109
      %v3126 = vmul.f32 %v3110, %v3110
      %v3127 = vmul.f32 %v3111, %v3111
      %v3128 = vmul.f32 %v3112, %v3112
      %v3129 = vmul.f32 %v3113, %v3113
      %v3130 = vmul.f32 %v3114, %v3114
      %v3131 = vmul.f32 %v3115, %v3115
      %v3132 = vmul.f32 %v3116, %v3116
      %v3133 = vsub.f32 %v3117, %v3125
      %v3134 = vsub.f32 %v3118, %v3126
      %v3135 = vsub.f32 %v3119, %v3127
      %v3136 = vsub.f32 %v3120, %v3128
      %v3137 = vsub.f32 %v3121, %v3129
      %v3138 = vsub.f32 %v3122, %v3130
      %v3139 = vsub.f32 %v3123, %v3131
      %v3140 = vsub.f32 %v3124, %v3132
      %v3141 = vmax.f32 %v3133, 0.0
      %v3142 = vmax.f32 %v3134, 0.0
      %v3143 = vmax.f32 %v3135, 0.0
      %v3144 = vmax.f32 %v3136, 0.0
      %v3145 = vmax.f32 %v3137, 0.0
      %v3146 = vmax.f32 %v3138, 0.0
      %v3147 = vmax.f32 %v3139, 0.0
      %v3148 = vmax.f32 %v3140, 0.0
      %v3149 = vadd.f32 %v3141, 1e-05
      %v3150 = vadd.f32 %v3142, 1e-05
      %v3151 = vadd.f32 %v3143, 1e-05
      %v3152 = vadd.f32 %v3144, 1e-05
      %v3153 = vadd.f32 %v3145, 1e-05
      %v3154 = vadd.f32 %v3146, 1e-05
      %v3155 = vadd.f32 %v3147, 1e-05
      %v3156 = vadd.f32 %v3148, 1e-05
      %v3157 = vrsqrt.pop %v3149
      %v3158 = vrsqrt.pop %v3150
      %v3159 = vrsqrt.pop %v3151
      %v3160 = vrsqrt.pop %v3152
      %v3161 = vrsqrt.pop %v3153
      %v3162 = vrsqrt.pop %v3154
      %v3163 = vrsqrt.pop %v3155
      %v3164 = vrsqrt.pop %v3156
      %v3166 = vrot.slane %v128, 5
      %v3167 = vsel %vm1006, %v1005, %v3166
      %v3177 = vcombine.low %v3157, %v3158
      %v3178 = vcombine.low %v3159, %v3160
      %v3179 = vcombine.low %v3161, %v3162
      %v3180 = vcombine.low %v3163, %v3164
      %v3182 = vunpack.c.l.s4 1966171168
      %v3183 = vunpack.c.0.s8 %v3182
      %v3184 = vlaneseq
      %v3185 = vshrl.u32 %v3184, 7
      %v3186 = vsub.s32 %v3183, %v3185
      %v3187 = vrot.slane %v3177, %v3186
      %v3189 = vunpack.c.l.s4 1966171168
      %v3190 = vunpack.c.0.s8 %v3189
      %v3191 = vlaneseq
      %v3192 = vshrl.u32 %v3191, 7
      %v3193 = vsub.s32 %v3190, %v3192
      %v3194 = vrot.slane %v3178, %v3193
      %v3196 = vunpack.c.l.s4 1966171168
      %v3197 = vunpack.c.0.s8 %v3196
      %v3198 = vlaneseq
      %v3199 = vshrl.u32 %v3198, 7
      %v3200 = vsub.s32 %v3197, %v3199
      %v3201 = vrot.slane %v3179, %v3200
      %v3203 = vunpack.c.l.s4 1966171168
      %v3204 = vunpack.c.0.s8 %v3203
      %v3205 = vlaneseq
      %v3206 = vshrl.u32 %v3205, 7
      %v3207 = vsub.s32 %v3204, %v3206
      %v3208 = vrot.slane %v3180, %v3207
      %v3209 = vcombine.low %v3187, %v3194
      %v3210 = vcombine.low %v3201, %v3208
      %v3212 = vunpack.c.l.s4 1966171168
      %v3213 = vunpack.c.0.s8 %v3212
      %v3214 = vlaneseq
      %v3215 = vshrl.u32 %v3214, 7
      %v3216 = vsub.s32 %v3213, %v3215
      %v3217 = vrot.slane %v3209, %v3216
      %v3219 = vunpack.c.l.s4 1966171168
      %v3220 = vunpack.c.0.s8 %v3219
      %v3221 = vlaneseq
      %v3222 = vshrl.u32 %v3221, 7
      %v3223 = vsub.s32 %v3220, %v3222
      %v3224 = vrot.slane %v3210, %v3223
      %v3225 = vcombine.low %v3217, %v3224
      %v3227 = vmul.f32 %v3167, %v3225
      %v3229 = vlaneseq
      %v3230 = vshrl.u32 %v3229, 7
      %v3231 = vsub.s32 0, %v3230
      %v3232 = vrot.slane %v3227, %v3231
      %v3233 = vlaneseq
      %v3234 = vshrl.u32 %v3233, 7
      %v3235 = vsub.s32 1, %v3234
      %v3236 = vrot.slane %v3227, %v3235
      %v3237 = vlaneseq
      %v3238 = vshrl.u32 %v3237, 7
      %v3239 = vsub.s32 2, %v3238
      %v3240 = vrot.slane %v3227, %v3239
      %v3241 = vlaneseq
      %v3242 = vshrl.u32 %v3241, 7
      %v3243 = vsub.s32 3, %v3242
      %v3244 = vrot.slane %v3227, %v3243
      %v3245 = vlaneseq
      %v3246 = vshrl.u32 %v3245, 7
      %v3247 = vsub.s32 4, %v3246
      %v3248 = vrot.slane %v3227, %v3247
      %v3249 = vlaneseq
      %v3250 = vshrl.u32 %v3249, 7
      %v3251 = vsub.s32 5, %v3250
      %v3252 = vrot.slane %v3227, %v3251
      %v3253 = vlaneseq
      %v3254 = vshrl.u32 %v3253, 7
      %v3255 = vsub.s32 6, %v3254
      %v3256 = vrot.slane %v3227, %v3255
      %v3257 = vlaneseq
      %v3258 = vshrl.u32 %v3257, 7
      %v3259 = vsub.s32 7, %v3258
      %v3260 = vrot.slane %v3227, %v3259
      %v3269 = vmul.f32 %v3109, %v3232
      %v3270 = vmul.f32 %v3110, %v3236
      %v3271 = vmul.f32 %v3111, %v3240
      %v3272 = vmul.f32 %v3112, %v3244
      %v3273 = vmul.f32 %v3113, %v3248
      %v3274 = vmul.f32 %v3114, %v3252
      %v3275 = vmul.f32 %v3115, %v3256
      %v3276 = vmul.f32 %v3116, %v3260
      %v3278 = vrot.slane %v129, 5
      %v3279 = vsel %vm1006, %v3166, %v3278
      %v3289 = vcombine.low %v3269, %v3270
      %v3290 = vcombine.low %v3271, %v3272
      %v3291 = vcombine.low %v3273, %v3274
      %v3292 = vcombine.low %v3275, %v3276
      %v3294 = vunpack.c.l.s4 1966171168
      %v3295 = vunpack.c.0.s8 %v3294
      %v3296 = vlaneseq
      %v3297 = vshrl.u32 %v3296, 7
      %v3298 = vsub.s32 %v3295, %v3297
      %v3299 = vrot.slane %v3289, %v3298
      %v3301 = vunpack.c.l.s4 1966171168
      %v3302 = vunpack.c.0.s8 %v3301
      %v3303 = vlaneseq
      %v3304 = vshrl.u32 %v3303, 7
      %v3305 = vsub.s32 %v3302, %v3304
      %v3306 = vrot.slane %v3290, %v3305
      %v3308 = vunpack.c.l.s4 1966171168
      %v3309 = vunpack.c.0.s8 %v3308
      %v3310 = vlaneseq
      %v3311 = vshrl.u32 %v3310, 7
      %v3312 = vsub.s32 %v3309, %v3311
      %v3313 = vrot.slane %v3291, %v3312
      %v3315 = vunpack.c.l.s4 1966171168
      %v3316 = vunpack.c.0.s8 %v3315
      %v3317 = vlaneseq
      %v3318 = vshrl.u32 %v3317, 7
      %v3319 = vsub.s32 %v3316, %v3318
      %v3320 = vrot.slane %v3292, %v3319
      %v3321 = vcombine.low %v3299, %v3306
      %v3322 = vcombine.low %v3313, %v3320
      %v3324 = vunpack.c.l.s4 1966171168
      %v3325 = vunpack.c.0.s8 %v3324
      %v3326 = vlaneseq
      %v3327 = vshrl.u32 %v3326, 7
      %v3328 = vsub.s32 %v3325, %v3327
      %v3329 = vrot.slane %v3321, %v3328
      %v3331 = vunpack.c.l.s4 1966171168
      %v3332 = vunpack.c.0.s8 %v3331
      %v3333 = vlaneseq
      %v3334 = vshrl.u32 %v3333, 7
      %v3335 = vsub.s32 %v3332, %v3334
      %v3336 = vrot.slane %v3322, %v3335
      %v3337 = vcombine.low %v3329, %v3336
      %v3339 = vsub.f32 %v3279, %v3337
      %v3340 = vmul.f32 %v2753, %v3232
      %v3341 = vmul.f32 %v2755, %v3236
      %v3342 = vmul.f32 %v2835, %v3240
      %v3343 = vmul.f32 %v2837, %v3244
      %v3344 = vmul.f32 %v2917, %v3248
      %v3345 = vmul.f32 %v2919, %v3252
      %v3346 = vmul.f32 %v2999, %v3256
      %v3347 = vmul.f32 %v3001, %v3260
      %v3349 = vlaneseq
      %v3350 = vshrl.u32 %v3349, 7
      %v3351 = vsub.s32 0, %v3350
      %v3352 = vrot.slane %v3339, %v3351
      %v3353 = vlaneseq
      %v3354 = vshrl.u32 %v3353, 7
      %v3355 = vsub.s32 1, %v3354
      %v3356 = vrot.slane %v3339, %v3355
      %v3357 = vlaneseq
      %v3358 = vshrl.u32 %v3357, 7
      %v3359 = vsub.s32 2, %v3358
      %v3360 = vrot.slane %v3339, %v3359
      %v3361 = vlaneseq
      %v3362 = vshrl.u32 %v3361, 7
      %v3363 = vsub.s32 3, %v3362
      %v3364 = vrot.slane %v3339, %v3363
      %v3365 = vlaneseq
      %v3366 = vshrl.u32 %v3365, 7
      %v3367 = vsub.s32 4, %v3366
      %v3368 = vrot.slane %v3339, %v3367
      %v3369 = vlaneseq
      %v3370 = vshrl.u32 %v3369, 7
      %v3371 = vsub.s32 5, %v3370
      %v3372 = vrot.slane %v3339, %v3371
      %v3373 = vlaneseq
      %v3374 = vshrl.u32 %v3373, 7
      %v3375 = vsub.s32 6, %v3374
      %v3376 = vrot.slane %v3339, %v3375
      %v3377 = vlaneseq
      %v3378 = vshrl.u32 %v3377, 7
      %v3379 = vsub.s32 7, %v3378
      %v3380 = vrot.slane %v3339, %v3379
      %v3389 = vadd.f32 %v3340, %v3352
      %v3390 = vadd.f32 %v3341, %v3356
      %v3391 = vadd.f32 %v3342, %v3360
      %v3392 = vadd.f32 %v3343, %v3364
      %v3393 = vadd.f32 %v3344, %v3368
      %v3394 = vadd.f32 %v3345, %v3372
      %v3395 = vadd.f32 %v3346, %v3376
      %v3396 = vadd.f32 %v3347, %v3380
      %vm3397 = vcmp.ge.f32.partialorder %v3389, 0.0
      %vm3398 = vcmp.ge.f32.partialorder %v3390, 0.0
      %vm3399 = vcmp.ge.f32.partialorder %v3391, 0.0
      %vm3400 = vcmp.ge.f32.partialorder %v3392, 0.0
      %vm3401 = vcmp.ge.f32.partialorder %v3393, 0.0
      %vm3402 = vcmp.ge.f32.partialorder %v3394, 0.0
      %vm3403 = vcmp.ge.f32.partialorder %v3395, 0.0
      %vm3404 = vcmp.ge.f32.partialorder %v3396, 0.0
      %v3405 = vmul.f32 %v3389, 0.2
      %v3406 = vmul.f32 %v3390, 0.2
      %v3407 = vmul.f32 %v3391, 0.2
      %v3408 = vmul.f32 %v3392, 0.2
      %v3409 = vmul.f32 %v3393, 0.2
      %v3410 = vmul.f32 %v3394, 0.2
      %v3411 = vmul.f32 %v3395, 0.2
      %v3412 = vmul.f32 %v3396, 0.2
      %v3413 = vsel %vm3397, %v3389, %v3405
      %v3414 = vsel %vm3398, %v3390, %v3406
      %v3415 = vsel %vm3399, %v3391, %v3407
      %v3416 = vsel %vm3400, %v3392, %v3408
      %v3417 = vsel %vm3401, %v3393, %v3409
      %v3418 = vsel %vm3402, %v3394, %v3410
      %v3419 = vsel %vm3403, %v3395, %v3411
      %v3420 = vsel %vm3404, %v3396, %v3412
      %v3421 = vpack.c.bf16 %v3413, %v3413
      %v3422 = vpack.c.bf16 %v3414, %v3414
      %v3423 = vpack.c.bf16 %v3415, %v3415
      %v3424 = vpack.c.bf16 %v3416, %v3416
      %v3425 = vpack.c.bf16 %v3417, %v3417
      %v3426 = vpack.c.bf16 %v3418, %v3418
      %v3427 = vpack.c.bf16 %v3419, %v3419
      %v3428 = vpack.c.bf16 %v3420, %v3420
      %v3437 = vunpack.c.l.b16 %v3421
      %v3438 = vunpack.c.l.b16 %v3422
      %v3439 = vunpack.c.l.b16 %v3423
      %v3440 = vunpack.c.l.b16 %v3424
      %v3441 = vunpack.c.l.b16 %v3425
      %v3442 = vunpack.c.l.b16 %v3426
      %v3443 = vunpack.c.l.b16 %v3427
      %v3444 = vunpack.c.l.b16 %v3428
      %v3445 = vpack.c.b16 %v3438, %v3437
      %v3446 = vpack.c.b16 %v3440, %v3439
      %v3447 = vpack.c.b16 %v3442, %v3441
      %v3448 = vpack.c.b16 %v3444, %v3443
      %3453 = vst [vmem:[#allocation2] sm:$0xff] %v3445
      %3454 = vst [vmem:[#allocation2 + $0x8] sm:$0xff] %v3446
      %3455 = vst [vmem:[#allocation2 + $0x10] sm:$0xff] %v3447
      %3456 = vst [vmem:[#allocation2 + $0x18] sm:$0xff] %v3448
    $region65: #{tpu_custom_call.1} parent=1 // pred_fallthru
      _
    %v3457 = vld [vmem:[#allocation2] sm:$0xff]
    %v3458 = vld [vmem:[#allocation2 + $0x8] sm:$0xff]
    %v3459 = vld [vmem:[#allocation2 + $0x10] sm:$0xff]
    %v3460 = vld [vmem:[#allocation2 + $0x18] sm:$0xff]
    %v3461 = vld [vmem:[#allocation14] sm:$0xff]
    %v3462 = vld [vmem:[#allocation14 + $0x8] sm:$0xff]
    %v3463 = vld [vmem:[#allocation14 + $0x10] sm:$0xff]
    %v3464 = vld [vmem:[#allocation14 + $0x18] sm:$0xff]
    %v3465 = vld [vmem:[#allocation14 + $0x20] sm:$0xff]
    %v3466 = vld [vmem:[#allocation14 + $0x28] sm:$0xff]
    %v3467 = vld [vmem:[#allocation14 + $0x30] sm:$0xff]
    %v3468 = vld [vmem:[#allocation14 + $0x38] sm:$0xff]
    %v3469 = vld [vmem:[#allocation14 + $0x40] sm:$0xff]
    %v3470 = vld [vmem:[#allocation14 + $0x48] sm:$0xff]
    %v3471 = vld [vmem:[#allocation14 + $0x50] sm:$0xff]
    %v3472 = vld [vmem:[#allocation14 + $0x58] sm:$0xff]
    %v3473 = vld [vmem:[#allocation14 + $0x60] sm:$0xff]
    %v3474 = vld [vmem:[#allocation14 + $0x68] sm:$0xff]
    %v3475 = vld [vmem:[#allocation14 + $0x70] sm:$0xff]
    %v3476 = vld [vmem:[#allocation14 + $0x78] sm:$0xff]
    %v3477 = vld [vmem:[#allocation14 + $0x80] sm:$0xff]
    %v3478 = vld [vmem:[#allocation14 + $0x88] sm:$0xff]
    %v3479 = vld [vmem:[#allocation14 + $0x90] sm:$0xff]
    %v3480 = vld [vmem:[#allocation14 + $0x98] sm:$0xff]
    %v3481 = vld [vmem:[#allocation14 + $0xa0] sm:$0xff]
    %v3482 = vld [vmem:[#allocation14 + $0xa8] sm:$0xff]
    %v3483 = vld [vmem:[#allocation14 + $0xb0] sm:$0xff]
    %v3484 = vld [vmem:[#allocation14 + $0xb8] sm:$0xff]
    %v3485 = vld [vmem:[#allocation14 + $0xc0] sm:$0xff]
    %v3486 = vld [vmem:[#allocation14 + $0xc8] sm:$0xff]
    %v3487 = vld [vmem:[#allocation14 + $0xd0] sm:$0xff]
    %v3488 = vld [vmem:[#allocation14 + $0xd8] sm:$0xff]
    %v3489 = vld [vmem:[#allocation14 + $0xe0] sm:$0xff]
    %v3490 = vld [vmem:[#allocation14 + $0xe8] sm:$0xff]
    %v3491 = vld [vmem:[#allocation14 + $0xf0] sm:$0xff]
    %v3492 = vld [vmem:[#allocation14 + $0xf8] sm:$0xff]
    %v3493 = vld [vmem:[#allocation14 + $0x100] sm:$0xff]
    %v3494 = vld [vmem:[#allocation14 + $0x108] sm:$0xff]
    %v3495 = vld [vmem:[#allocation14 + $0x110] sm:$0xff]
    %v3496 = vld [vmem:[#allocation14 + $0x118] sm:$0xff]
    %v3497 = vld [vmem:[#allocation14 + $0x120] sm:$0xff]
    %v3498 = vld [vmem:[#allocation14 + $0x128] sm:$0xff]
    %v3499 = vld [vmem:[#allocation14 + $0x130] sm:$0xff]
    %v3500 = vld [vmem:[#allocation14 + $0x138] sm:$0xff]
    %v3501 = vld [vmem:[#allocation14 + $0x140] sm:$0xff]
    %v3502 = vld [vmem:[#allocation14 + $0x148] sm:$0xff]
    %v3503 = vld [vmem:[#allocation14 + $0x150] sm:$0xff]
    %v3504 = vld [vmem:[#allocation14 + $0x158] sm:$0xff]
    %v3505 = vld [vmem:[#allocation14 + $0x160] sm:$0xff]
    %v3506 = vld [vmem:[#allocation14 + $0x168] sm:$0xff]
    %v3507 = vld [vmem:[#allocation14 + $0x170] sm:$0xff]
    %v3508 = vld [vmem:[#allocation14 + $0x178] sm:$0xff]
    %v3509 = vld [vmem:[#allocation14 + $0x180] sm:$0xff]
    %v3510 = vld [vmem:[#allocation14 + $0x188] sm:$0xff]
    %v3511 = vld [vmem:[#allocation14 + $0x190] sm:$0xff]
    %v3512 = vld [vmem:[#allocation14 + $0x198] sm:$0xff]
    %v3513 = vld [vmem:[#allocation14 + $0x1a0] sm:$0xff]
    %v3514 = vld [vmem:[#allocation14 + $0x1a8] sm:$0xff]
    %v3515 = vld [vmem:[#allocation14 + $0x1b0] sm:$0xff]
    %v3516 = vld [vmem:[#allocation14 + $0x1b8] sm:$0xff]
    %v3517 = vld [vmem:[#allocation14 + $0x1c0] sm:$0xff]
    %v3518 = vld [vmem:[#allocation14 + $0x1c8] sm:$0xff]
    %v3519 = vld [vmem:[#allocation14 + $0x1d0] sm:$0xff]
    %v3520 = vld [vmem:[#allocation14 + $0x1d8] sm:$0xff]
    %v3521 = vld [vmem:[#allocation14 + $0x1e0] sm:$0xff]
    %v3522 = vld [vmem:[#allocation14 + $0x1e8] sm:$0xff]
    %v3523 = vld [vmem:[#allocation14 + $0x1f0] sm:$0xff]
    %v3524 = vld [vmem:[#allocation14 + $0x1f8] sm:$0xff]
    %v3525 = vld [vmem:[#allocation14 + $0x200] sm:$0xff]
    %v3526 = vld [vmem:[#allocation14 + $0x208] sm:$0xff]
    %v3527 = vld [vmem:[#allocation14 + $0x210] sm:$0xff]
    %v3528 = vld [vmem:[#allocation14 + $0x218] sm:$0xff]
    %v3529 = vld [vmem:[#allocation14 + $0x220] sm:$0xff]
    %v3530 = vld [vmem:[#allocation14 + $0x228] sm:$0xff]
    %v3531 = vld [vmem:[#allocation14 + $0x230] sm:$0xff]
    %v3532 = vld [vmem:[#allocation14 + $0x238] sm:$0xff]
    %v3533 = vld [vmem:[#allocation14 + $0x240] sm:$0xff]
    %v3534 = vld [vmem:[#allocation14 + $0x248] sm:$0xff]
    %v3535 = vld [vmem:[#allocation14 + $0x250] sm:$0xff]
    %v3536 = vld [vmem:[#allocation14 + $0x258] sm:$0xff]
    %v3537 = vld [vmem:[#allocation14 + $0x260] sm:$0xff]
    %v3538 = vld [vmem:[#allocation14 + $0x268] sm:$0xff]
    %v3539 = vld [vmem:[#allocation14 + $0x270] sm:$0xff]
    %v3540 = vld [vmem:[#allocation14 + $0x278] sm:$0xff]
    %v3541 = vld [vmem:[#allocation14 + $0x280] sm:$0xff]
    %v3542 = vld [vmem:[#allocation14 + $0x288] sm:$0xff]
    %v3543 = vld [vmem:[#allocation14 + $0x290] sm:$0xff]
    %v3544 = vld [vmem:[#allocation14 + $0x298] sm:$0xff]
    %v3545 = vld [vmem:[#allocation14 + $0x2a0] sm:$0xff]
    %v3546 = vld [vmem:[#allocation14 + $0x2a8] sm:$0xff]
    %v3547 = vld [vmem:[#allocation14 + $0x2b0] sm:$0xff]
    %v3548 = vld [vmem:[#allocation14 + $0x2b8] sm:$0xff]
    %v3549 = vld [vmem:[#allocation14 + $0x2c0] sm:$0xff]
    %v3550 = vld [vmem:[#allocation14 + $0x2c8] sm:$0xff]
    %v3551 = vld [vmem:[#allocation14 + $0x2d0] sm:$0xff]
    %v3552 = vld [vmem:[#allocation14 + $0x2d8] sm:$0xff]
    %v3553 = vld [vmem:[#allocation14 + $0x2e0] sm:$0xff]
    %v3554 = vld [vmem:[#allocation14 + $0x2e8] sm:$0xff]
    %v3555 = vld [vmem:[#allocation14 + $0x2f0] sm:$0xff]
    %v3556 = vld [vmem:[#allocation14 + $0x2f8] sm:$0xff]
    %v3557 = vld [vmem:[#allocation14 + $0x300] sm:$0xff]
    %v3558 = vld [vmem:[#allocation14 + $0x308] sm:$0xff]
    %v3559 = vld [vmem:[#allocation14 + $0x310] sm:$0xff]
    %v3560 = vld [vmem:[#allocation14 + $0x318] sm:$0xff]
    %v3561 = vld [vmem:[#allocation14 + $0x320] sm:$0xff]
    %v3562 = vld [vmem:[#allocation14 + $0x328] sm:$0xff]
    %v3563 = vld [vmem:[#allocation14 + $0x330] sm:$0xff]
    %v3564 = vld [vmem:[#allocation14 + $0x338] sm:$0xff]
    %v3565 = vld [vmem:[#allocation14 + $0x340] sm:$0xff]
    %v3566 = vld [vmem:[#allocation14 + $0x348] sm:$0xff]
    %v3567 = vld [vmem:[#allocation14 + $0x350] sm:$0xff]
    %v3568 = vld [vmem:[#allocation14 + $0x358] sm:$0xff]
    %v3569 = vld [vmem:[#allocation14 + $0x360] sm:$0xff]
    %v3570 = vld [vmem:[#allocation14 + $0x368] sm:$0xff]
    %v3571 = vld [vmem:[#allocation14 + $0x370] sm:$0xff]
    %v3572 = vld [vmem:[#allocation14 + $0x378] sm:$0xff]
    %v3573 = vld [vmem:[#allocation14 + $0x380] sm:$0xff]
    %v3574 = vld [vmem:[#allocation14 + $0x388] sm:$0xff]
    %v3575 = vld [vmem:[#allocation14 + $0x390] sm:$0xff]
    %v3576 = vld [vmem:[#allocation14 + $0x398] sm:$0xff]
    %v3577 = vld [vmem:[#allocation14 + $0x3a0] sm:$0xff]
    %v3578 = vld [vmem:[#allocation14 + $0x3a8] sm:$0xff]
    %v3579 = vld [vmem:[#allocation14 + $0x3b0] sm:$0xff]
    %v3580 = vld [vmem:[#allocation14 + $0x3b8] sm:$0xff]
    %v3581 = vld [vmem:[#allocation14 + $0x3c0] sm:$0xff]
    %v3582 = vld [vmem:[#allocation14 + $0x3c8] sm:$0xff]
    %v3583 = vld [vmem:[#allocation14 + $0x3d0] sm:$0xff]
    %v3584 = vld [vmem:[#allocation14 + $0x3d8] sm:$0xff]
    %v3585 = vld [vmem:[#allocation14 + $0x3e0] sm:$0xff]
    %v3586 = vld [vmem:[#allocation14 + $0x3e8] sm:$0xff]
    %v3587 = vld [vmem:[#allocation14 + $0x3f0] sm:$0xff]
    %v3588 = vld [vmem:[#allocation14 + $0x3f8] sm:$0xff]
    %v3589 = vld [vmem:[%s7] sm:$0x3]
    %v3591 = vlaneseq
    %v3592 = vshrl.u32 %v3591, 7
    %v3593 = vsub.s32 0, %v3592
    %v3594 = vrot.slane %v3589, %v3593
    %v3595 = vlaneseq
    %v3596 = vshrl.u32 %v3595, 7
    %v3597 = vsub.s32 1, %v3596
    %v3598 = vrot.slane %v3589, %v3597
    %v3605 = vunpack.c.l.b16 %v3457
    %v3606 = vunpack.c.h.b16 %v3457
    %v3607 = vunpack.c.l.b16 %v3458
    %v3608 = vunpack.c.h.b16 %v3458
    %v3609 = vunpack.c.l.b16 %v3459
    %v3610 = vunpack.c.h.b16 %v3459
    %v3611 = vunpack.c.l.b16 %v3460
    %v3612 = vunpack.c.h.b16 %v3460
    %v3613 = vpack.c.b16 %v3605, %v3605
    %v3614 = vpack.c.b16 %v3606, %v3606
    %v3615 = vpack.c.b16 %v3607, %v3607
    %v3616 = vpack.c.b16 %v3608, %v3608
    %v3617 = vpack.c.b16 %v3609, %v3609
    %v3618 = vpack.c.b16 %v3610, %v3610
    %v3619 = vpack.c.b16 %v3611, %v3611
    %v3620 = vpack.c.b16 %v3612, %v3612
    %v3757 = vunpack.c.l.b16 %v3461
    %v3758 = vunpack.c.h.b16 %v3461
    %v3759 = vunpack.c.l.b16 %v3462
    %v3760 = vunpack.c.h.b16 %v3462
    %v3761 = vunpack.c.l.b16 %v3463
    %v3762 = vunpack.c.h.b16 %v3463
    %v3763 = vunpack.c.l.b16 %v3464
    %v3764 = vunpack.c.h.b16 %v3464
    %v3765 = vunpack.c.l.b16 %v3465
    %v3766 = vunpack.c.h.b16 %v3465
    %v3767 = vunpack.c.l.b16 %v3466
    %v3768 = vunpack.c.h.b16 %v3466
    %v3769 = vunpack.c.l.b16 %v3467
    %v3770 = vunpack.c.h.b16 %v3467
    %v3771 = vunpack.c.l.b16 %v3468
    %v3772 = vunpack.c.h.b16 %v3468
    %v3773 = vunpack.c.l.b16 %v3469
    %v3774 = vunpack.c.h.b16 %v3469
    %v3775 = vunpack.c.l.b16 %v3470
    %v3776 = vunpack.c.h.b16 %v3470
    %v3777 = vunpack.c.l.b16 %v3471
    %v3778 = vunpack.c.h.b16 %v3471
    %v3779 = vunpack.c.l.b16 %v3472
    %v3780 = vunpack.c.h.b16 %v3472
    %v3781 = vunpack.c.l.b16 %v3473
    %v3782 = vunpack.c.h.b16 %v3473
    %v3783 = vunpack.c.l.b16 %v3474
    %v3784 = vunpack.c.h.b16 %v3474
    %v3785 = vunpack.c.l.b16 %v3475
    %v3786 = vunpack.c.h.b16 %v3475
    %v3787 = vunpack.c.l.b16 %v3476
    %v3788 = vunpack.c.h.b16 %v3476
    %v3789 = vunpack.c.l.b16 %v3477
    %v3790 = vunpack.c.h.b16 %v3477
    %v3791 = vunpack.c.l.b16 %v3478
    %v3792 = vunpack.c.h.b16 %v3478
    %v3793 = vunpack.c.l.b16 %v3479
    %v3794 = vunpack.c.h.b16 %v3479
    %v3795 = vunpack.c.l.b16 %v3480
    %v3796 = vunpack.c.h.b16 %v3480
    %v3797 = vunpack.c.l.b16 %v3481
    %v3798 = vunpack.c.h.b16 %v3481
    %v3799 = vunpack.c.l.b16 %v3482
    %v3800 = vunpack.c.h.b16 %v3482
    %v3801 = vunpack.c.l.b16 %v3483
    %v3802 = vunpack.c.h.b16 %v3483
    %v3803 = vunpack.c.l.b16 %v3484
    %v3804 = vunpack.c.h.b16 %v3484
    %v3805 = vunpack.c.l.b16 %v3485
    %v3806 = vunpack.c.h.b16 %v3485
    %v3807 = vunpack.c.l.b16 %v3486
    %v3808 = vunpack.c.h.b16 %v3486
    %v3809 = vunpack.c.l.b16 %v3487
    %v3810 = vunpack.c.h.b16 %v3487
    %v3811 = vunpack.c.l.b16 %v3488
    %v3812 = vunpack.c.h.b16 %v3488
    %v3813 = vunpack.c.l.b16 %v3489
    %v3814 = vunpack.c.h.b16 %v3489
    %v3815 = vunpack.c.l.b16 %v3490
    %v3816 = vunpack.c.h.b16 %v3490
    %v3817 = vunpack.c.l.b16 %v3491
    %v3818 = vunpack.c.h.b16 %v3491
    %v3819 = vunpack.c.l.b16 %v3492
    %v3820 = vunpack.c.h.b16 %v3492
    %v3821 = vunpack.c.l.b16 %v3493
    %v3822 = vunpack.c.h.b16 %v3493
    %v3823 = vunpack.c.l.b16 %v3494
    %v3824 = vunpack.c.h.b16 %v3494
    %v3825 = vunpack.c.l.b16 %v3495
    %v3826 = vunpack.c.h.b16 %v3495
    %v3827 = vunpack.c.l.b16 %v3496
    %v3828 = vunpack.c.h.b16 %v3496
    %v3829 = vunpack.c.l.b16 %v3497
    %v3830 = vunpack.c.h.b16 %v3497
    %v3831 = vunpack.c.l.b16 %v3498
    %v3832 = vunpack.c.h.b16 %v3498
    %v3833 = vunpack.c.l.b16 %v3499
    %v3834 = vunpack.c.h.b16 %v3499
    %v3835 = vunpack.c.l.b16 %v3500
    %v3836 = vunpack.c.h.b16 %v3500
    %v3837 = vunpack.c.l.b16 %v3501
    %v3838 = vunpack.c.h.b16 %v3501
    %v3839 = vunpack.c.l.b16 %v3502
    %v3840 = vunpack.c.h.b16 %v3502
    %v3841 = vunpack.c.l.b16 %v3503
    %v3842 = vunpack.c.h.b16 %v3503
    %v3843 = vunpack.c.l.b16 %v3504
    %v3844 = vunpack.c.h.b16 %v3504
    %v3845 = vunpack.c.l.b16 %v3505
    %v3846 = vunpack.c.h.b16 %v3505
    %v3847 = vunpack.c.l.b16 %v3506
    %v3848 = vunpack.c.h.b16 %v3506
    %v3849 = vunpack.c.l.b16 %v3507
    %v3850 = vunpack.c.h.b16 %v3507
    %v3851 = vunpack.c.l.b16 %v3508
    %v3852 = vunpack.c.h.b16 %v3508
    %v3853 = vunpack.c.l.b16 %v3509
    %v3854 = vunpack.c.h.b16 %v3509
    %v3855 = vunpack.c.l.b16 %v3510
    %v3856 = vunpack.c.h.b16 %v3510
    %v3857 = vunpack.c.l.b16 %v3511
    %v3858 = vunpack.c.h.b16 %v3511
    %v3859 = vunpack.c.l.b16 %v3512
    %v3860 = vunpack.c.h.b16 %v3512
    %v3861 = vunpack.c.l.b16 %v3513
    %v3862 = vunpack.c.h.b16 %v3513
    %v3863 = vunpack.c.l.b16 %v3514
    %v3864 = vunpack.c.h.b16 %v3514
    %v3865 = vunpack.c.l.b16 %v3515
    %v3866 = vunpack.c.h.b16 %v3515
    %v3867 = vunpack.c.l.b16 %v3516
    %v3868 = vunpack.c.h.b16 %v3516
    %v3869 = vunpack.c.l.b16 %v3517
    %v3870 = vunpack.c.h.b16 %v3517
    %v3871 = vunpack.c.l.b16 %v3518
    %v3872 = vunpack.c.h.b16 %v3518
    %v3873 = vunpack.c.l.b16 %v3519
    %v3874 = vunpack.c.h.b16 %v3519
    %v3875 = vunpack.c.l.b16 %v3520
    %v3876 = vunpack.c.h.b16 %v3520
    %v3877 = vunpack.c.l.b16 %v3521
    %v3878 = vunpack.c.h.b16 %v3521
    %v3879 = vunpack.c.l.b16 %v3522
    %v3880 = vunpack.c.h.b16 %v3522
    %v3881 = vunpack.c.l.b16 %v3523
    %v3882 = vunpack.c.h.b16 %v3523
    %v3883 = vunpack.c.l.b16 %v3524
    %v3884 = vunpack.c.h.b16 %v3524
    %v3885 = vunpack.c.l.b16 %v3525
    %v3886 = vunpack.c.h.b16 %v3525
    %v3887 = vunpack.c.l.b16 %v3526
    %v3888 = vunpack.c.h.b16 %v3526
    %v3889 = vunpack.c.l.b16 %v3527
    %v3890 = vunpack.c.h.b16 %v3527
    %v3891 = vunpack.c.l.b16 %v3528
    %v3892 = vunpack.c.h.b16 %v3528
    %v3893 = vunpack.c.l.b16 %v3529
    %v3894 = vunpack.c.h.b16 %v3529
    %v3895 = vunpack.c.l.b16 %v3530
    %v3896 = vunpack.c.h.b16 %v3530
    %v3897 = vunpack.c.l.b16 %v3531
    %v3898 = vunpack.c.h.b16 %v3531
    %v3899 = vunpack.c.l.b16 %v3532
    %v3900 = vunpack.c.h.b16 %v3532
    %v3901 = vunpack.c.l.b16 %v3533
    %v3902 = vunpack.c.h.b16 %v3533
    %v3903 = vunpack.c.l.b16 %v3534
    %v3904 = vunpack.c.h.b16 %v3534
    %v3905 = vunpack.c.l.b16 %v3535
    %v3906 = vunpack.c.h.b16 %v3535
    %v3907 = vunpack.c.l.b16 %v3536
    %v3908 = vunpack.c.h.b16 %v3536
    %v3909 = vunpack.c.l.b16 %v3537
    %v3910 = vunpack.c.h.b16 %v3537
    %v3911 = vunpack.c.l.b16 %v3538
    %v3912 = vunpack.c.h.b16 %v3538
    %v3913 = vunpack.c.l.b16 %v3539
    %v3914 = vunpack.c.h.b16 %v3539
    %v3915 = vunpack.c.l.b16 %v3540
    %v3916 = vunpack.c.h.b16 %v3540
    %v3917 = vunpack.c.l.b16 %v3541
    %v3918 = vunpack.c.h.b16 %v3541
    %v3919 = vunpack.c.l.b16 %v3542
    %v3920 = vunpack.c.h.b16 %v3542
    %v3921 = vunpack.c.l.b16 %v3543
    %v3922 = vunpack.c.h.b16 %v3543
    %v3923 = vunpack.c.l.b16 %v3544
    %v3924 = vunpack.c.h.b16 %v3544
    %v3925 = vunpack.c.l.b16 %v3545
    %v3926 = vunpack.c.h.b16 %v3545
    %v3927 = vunpack.c.l.b16 %v3546
    %v3928 = vunpack.c.h.b16 %v3546
    %v3929 = vunpack.c.l.b16 %v3547
    %v3930 = vunpack.c.h.b16 %v3547
    %v3931 = vunpack.c.l.b16 %v3548
    %v3932 = vunpack.c.h.b16 %v3548
    %v3933 = vunpack.c.l.b16 %v3549
    %v3934 = vunpack.c.h.b16 %v3549
    %v3935 = vunpack.c.l.b16 %v3550
    %v3936 = vunpack.c.h.b16 %v3550
    %v3937 = vunpack.c.l.b16 %v3551
    %v3938 = vunpack.c.h.b16 %v3551
    %v3939 = vunpack.c.l.b16 %v3552
    %v3940 = vunpack.c.h.b16 %v3552
    %v3941 = vunpack.c.l.b16 %v3553
    %v3942 = vunpack.c.h.b16 %v3553
    %v3943 = vunpack.c.l.b16 %v3554
    %v3944 = vunpack.c.h.b16 %v3554
    %v3945 = vunpack.c.l.b16 %v3555
    %v3946 = vunpack.c.h.b16 %v3555
    %v3947 = vunpack.c.l.b16 %v3556
    %v3948 = vunpack.c.h.b16 %v3556
    %v3949 = vunpack.c.l.b16 %v3557
    %v3950 = vunpack.c.h.b16 %v3557
    %v3951 = vunpack.c.l.b16 %v3558
    %v3952 = vunpack.c.h.b16 %v3558
    %v3953 = vunpack.c.l.b16 %v3559
    %v3954 = vunpack.c.h.b16 %v3559
    %v3955 = vunpack.c.l.b16 %v3560
    %v3956 = vunpack.c.h.b16 %v3560
    %v3957 = vunpack.c.l.b16 %v3561
    %v3958 = vunpack.c.h.b16 %v3561
    %v3959 = vunpack.c.l.b16 %v3562
    %v3960 = vunpack.c.h.b16 %v3562
    %v3961 = vunpack.c.l.b16 %v3563
    %v3962 = vunpack.c.h.b16 %v3563
    %v3963 = vunpack.c.l.b16 %v3564
    %v3964 = vunpack.c.h.b16 %v3564
    %v3965 = vunpack.c.l.b16 %v3565
    %v3966 = vunpack.c.h.b16 %v3565
    %v3967 = vunpack.c.l.b16 %v3566
    %v3968 = vunpack.c.h.b16 %v3566
    %v3969 = vunpack.c.l.b16 %v3567
    %v3970 = vunpack.c.h.b16 %v3567
    %v3971 = vunpack.c.l.b16 %v3568
    %v3972 = vunpack.c.h.b16 %v3568
    %v3973 = vunpack.c.l.b16 %v3569
    %v3974 = vunpack.c.h.b16 %v3569
    %v3975 = vunpack.c.l.b16 %v3570
    %v3976 = vunpack.c.h.b16 %v3570
    %v3977 = vunpack.c.l.b16 %v3571
    %v3978 = vunpack.c.h.b16 %v3571
    %v3979 = vunpack.c.l.b16 %v3572
    %v3980 = vunpack.c.h.b16 %v3572
    %v3981 = vunpack.c.l.b16 %v3573
    %v3982 = vunpack.c.h.b16 %v3573
    %v3983 = vunpack.c.l.b16 %v3574
    %v3984 = vunpack.c.h.b16 %v3574
    %v3985 = vunpack.c.l.b16 %v3575
    %v3986 = vunpack.c.h.b16 %v3575
    %v3987 = vunpack.c.l.b16 %v3576
    %v3988 = vunpack.c.h.b16 %v3576
    %v3989 = vunpack.c.l.b16 %v3577
    %v3990 = vunpack.c.h.b16 %v3577
    %v3991 = vunpack.c.l.b16 %v3578
    %v3992 = vunpack.c.h.b16 %v3578
    %v3993 = vunpack.c.l.b16 %v3579
    %v3994 = vunpack.c.h.b16 %v3579
    %v3995 = vunpack.c.l.b16 %v3580
    %v3996 = vunpack.c.h.b16 %v3580
    %v3997 = vunpack.c.l.b16 %v3581
    %v3998 = vunpack.c.h.b16 %v3581
    %v3999 = vunpack.c.l.b16 %v3582
    %v4000 = vunpack.c.h.b16 %v3582
    %v4001 = vunpack.c.l.b16 %v3583
    %v4002 = vunpack.c.h.b16 %v3583
    %v4003 = vunpack.c.l.b16 %v3584
    %v4004 = vunpack.c.h.b16 %v3584
    %v4005 = vunpack.c.l.b16 %v3585
    %v4006 = vunpack.c.h.b16 %v3585
    %v4007 = vunpack.c.l.b16 %v3586
    %v4008 = vunpack.c.h.b16 %v3586
    %v4009 = vunpack.c.l.b16 %v3587
    %v4010 = vunpack.c.h.b16 %v3587
    %v4011 = vunpack.c.l.b16 %v3588
    %v4012 = vunpack.c.h.b16 %v3588
    %v4013 = vpack.c.b16 %v3759, %v3757
    %v4014 = vpack.c.b16 %v3760, %v3758
    %v4015 = vpack.c.b16 %v3763, %v3761
    %v4016 = vpack.c.b16 %v3764, %v3762
    %v4017 = vpack.c.b16 %v3767, %v3765
    %v4018 = vpack.c.b16 %v3768, %v3766
    %v4019 = vpack.c.b16 %v3771, %v3769
    %v4020 = vpack.c.b16 %v3772, %v3770
    %v4021 = vpack.c.b16 %v3775, %v3773
    %v4022 = vpack.c.b16 %v3776, %v3774
    %v4023 = vpack.c.b16 %v3779, %v3777
    %v4024 = vpack.c.b16 %v3780, %v3778
    %v4025 = vpack.c.b16 %v3783, %v3781
    %v4026 = vpack.c.b16 %v3784, %v3782
    %v4027 = vpack.c.b16 %v3787, %v3785
    %v4028 = vpack.c.b16 %v3788, %v3786
    %v4029 = vpack.c.b16 %v3791, %v3789
    %v4030 = vpack.c.b16 %v3792, %v3790
    %v4031 = vpack.c.b16 %v3795, %v3793
    %v4032 = vpack.c.b16 %v3796, %v3794
    %v4033 = vpack.c.b16 %v3799, %v3797
    %v4034 = vpack.c.b16 %v3800, %v3798
    %v4035 = vpack.c.b16 %v3803, %v3801
    %v4036 = vpack.c.b16 %v3804, %v3802
    %v4037 = vpack.c.b16 %v3807, %v3805
    %v4038 = vpack.c.b16 %v3808, %v3806
    %v4039 = vpack.c.b16 %v3811, %v3809
    %v4040 = vpack.c.b16 %v3812, %v3810
    %v4041 = vpack.c.b16 %v3815, %v3813
    %v4042 = vpack.c.b16 %v3816, %v3814
    %v4043 = vpack.c.b16 %v3819, %v3817
    %v4044 = vpack.c.b16 %v3820, %v3818
    %v4045 = vpack.c.b16 %v3823, %v3821
    %v4046 = vpack.c.b16 %v3824, %v3822
    %v4047 = vpack.c.b16 %v3827, %v3825
    %v4048 = vpack.c.b16 %v3828, %v3826
    %v4049 = vpack.c.b16 %v3831, %v3829
    %v4050 = vpack.c.b16 %v3832, %v3830
    %v4051 = vpack.c.b16 %v3835, %v3833
    %v4052 = vpack.c.b16 %v3836, %v3834
    %v4053 = vpack.c.b16 %v3839, %v3837
    %v4054 = vpack.c.b16 %v3840, %v3838
    %v4055 = vpack.c.b16 %v3843, %v3841
    %v4056 = vpack.c.b16 %v3844, %v3842
    %v4057 = vpack.c.b16 %v3847, %v3845
    %v4058 = vpack.c.b16 %v3848, %v3846
    %v4059 = vpack.c.b16 %v3851, %v3849
    %v4060 = vpack.c.b16 %v3852, %v3850
    %v4061 = vpack.c.b16 %v3855, %v3853
    %v4062 = vpack.c.b16 %v3856, %v3854
    %v4063 = vpack.c.b16 %v3859, %v3857
    %v4064 = vpack.c.b16 %v3860, %v3858
    %v4065 = vpack.c.b16 %v3863, %v3861
    %v4066 = vpack.c.b16 %v3864, %v3862
    %v4067 = vpack.c.b16 %v3867, %v3865
    %v4068 = vpack.c.b16 %v3868, %v3866
    %v4069 = vpack.c.b16 %v3871, %v3869
    %v4070 = vpack.c.b16 %v3872, %v3870
    %v4071 = vpack.c.b16 %v3875, %v3873
    %v4072 = vpack.c.b16 %v3876, %v3874
    %v4073 = vpack.c.b16 %v3879, %v3877
    %v4074 = vpack.c.b16 %v3880, %v3878
    %v4075 = vpack.c.b16 %v3883, %v3881
    %v4076 = vpack.c.b16 %v3884, %v3882
    %v4077 = vpack.c.b16 %v3887, %v3885
    %v4078 = vpack.c.b16 %v3888, %v3886
    %v4079 = vpack.c.b16 %v3891, %v3889
    %v4080 = vpack.c.b16 %v3892, %v3890
    %v4081 = vpack.c.b16 %v3895, %v3893
    %v4082 = vpack.c.b16 %v3896, %v3894
    %v4083 = vpack.c.b16 %v3899, %v3897
    %v4084 = vpack.c.b16 %v3900, %v3898
    %v4085 = vpack.c.b16 %v3903, %v3901
    %v4086 = vpack.c.b16 %v3904, %v3902
    %v4087 = vpack.c.b16 %v3907, %v3905
    %v4088 = vpack.c.b16 %v3908, %v3906
    %v4089 = vpack.c.b16 %v3911, %v3909
    %v4090 = vpack.c.b16 %v3912, %v3910
    %v4091 = vpack.c.b16 %v3915, %v3913
    %v4092 = vpack.c.b16 %v3916, %v3914
    %v4093 = vpack.c.b16 %v3919, %v3917
    %v4094 = vpack.c.b16 %v3920, %v3918
    %v4095 = vpack.c.b16 %v3923, %v3921
    %v4096 = vpack.c.b16 %v3924, %v3922
    %v4097 = vpack.c.b16 %v3927, %v3925
    %v4098 = vpack.c.b16 %v3928, %v3926
    %v4099 = vpack.c.b16 %v3931, %v3929
    %v4100 = vpack.c.b16 %v3932, %v3930
    %v4101 = vpack.c.b16 %v3935, %v3933
    %v4102 = vpack.c.b16 %v3936, %v3934
    %v4103 = vpack.c.b16 %v3939, %v3937
    %v4104 = vpack.c.b16 %v3940, %v3938
    %v4105 = vpack.c.b16 %v3943, %v3941
    %v4106 = vpack.c.b16 %v3944, %v3942
    %v4107 = vpack.c.b16 %v3947, %v3945
    %v4108 = vpack.c.b16 %v3948, %v3946
    %v4109 = vpack.c.b16 %v3951, %v3949
    %v4110 = vpack.c.b16 %v3952, %v3950
    %v4111 = vpack.c.b16 %v3955, %v3953
    %v4112 = vpack.c.b16 %v3956, %v3954
    %v4113 = vpack.c.b16 %v3959, %v3957
    %v4114 = vpack.c.b16 %v3960, %v3958
    %v4115 = vpack.c.b16 %v3963, %v3961
    %v4116 = vpack.c.b16 %v3964, %v3962
    %v4117 = vpack.c.b16 %v3967, %v3965
    %v4118 = vpack.c.b16 %v3968, %v3966
    %v4119 = vpack.c.b16 %v3971, %v3969
    %v4120 = vpack.c.b16 %v3972, %v3970
    %v4121 = vpack.c.b16 %v3975, %v3973
    %v4122 = vpack.c.b16 %v3976, %v3974
    %v4123 = vpack.c.b16 %v3979, %v3977
    %v4124 = vpack.c.b16 %v3980, %v3978
    %v4125 = vpack.c.b16 %v3983, %v3981
    %v4126 = vpack.c.b16 %v3984, %v3982
    %v4127 = vpack.c.b16 %v3987, %v3985
    %v4128 = vpack.c.b16 %v3988, %v3986
    %v4129 = vpack.c.b16 %v3991, %v3989
    %v4130 = vpack.c.b16 %v3992, %v3990
    %v4131 = vpack.c.b16 %v3995, %v3993
    %v4132 = vpack.c.b16 %v3996, %v3994
    %v4133 = vpack.c.b16 %v3999, %v3997
    %v4134 = vpack.c.b16 %v4000, %v3998
    %v4135 = vpack.c.b16 %v4003, %v4001
    %v4136 = vpack.c.b16 %v4004, %v4002
    %v4137 = vpack.c.b16 %v4007, %v4005
    %v4138 = vpack.c.b16 %v4008, %v4006
    %v4139 = vpack.c.b16 %v4011, %v4009
    %v4140 = vpack.c.b16 %v4012, %v4010
    %4269 = vmatprep.subr.bf16.mxu0 %v4014
    %4270 = vmatpush1.bf16.msra.mxu0 %v4013
    %4271 = vmatprep.subr.bf16.mxu0 %v4016
    %4272 = vmatpush1.bf16.msra.mxu0 %v4015
    %4273 = vmatprep.subr.bf16.mxu0 %v4018
    %4274 = vmatpush1.bf16.msra.mxu0 %v4017
    %4275 = vmatprep.subr.bf16.mxu0 %v4020
    %4276 = vmatpush1.bf16.msra.mxu0 %v4019
    %4277 = vmatprep.subr.bf16.mxu0 %v4022
    %4278 = vmatpush1.bf16.msra.mxu0 %v4021
    %4279 = vmatprep.subr.bf16.mxu0 %v4024
    %4280 = vmatpush1.bf16.msra.mxu0 %v4023
    %4281 = vmatprep.subr.bf16.mxu0 %v4026
    %4282 = vmatpush1.bf16.msra.mxu0 %v4025
    %4283 = vmatprep.subr.bf16.mxu0 %v4028
    %4284 = vmatpush1.bf16.msra.mxu0 %v4027
    %4285 = vmatprep.subr.bf16.mxu0 %v4030
    %4286 = vmatpush1.bf16.msra.mxu0 %v4029
    %4287 = vmatprep.subr.bf16.mxu0 %v4032
    %4288 = vmatpush1.bf16.msra.mxu0 %v4031
    %4289 = vmatprep.subr.bf16.mxu0 %v4034
    %4290 = vmatpush1.bf16.msra.mxu0 %v4033
    %4291 = vmatprep.subr.bf16.mxu0 %v4036
    %4292 = vmatpush1.bf16.msra.mxu0 %v4035
    %4293 = vmatprep.subr.bf16.mxu0 %v4038
    %4294 = vmatpush1.bf16.msra.mxu0 %v4037
    %4295 = vmatprep.subr.bf16.mxu0 %v4040
    %4296 = vmatpush1.bf16.msra.mxu0 %v4039
    %4297 = vmatprep.subr.bf16.mxu0 %v4042
    %4298 = vmatpush1.bf16.msra.mxu0 %v4041
    %4299 = vmatprep.subr.bf16.mxu0 %v4044
    %4300 = vmatpush1.bf16.msra.mxu0 %v4043
    %4301 = vmatprep.mubr.bf16.mxu0 %v3614
    %4302 = vmatmul.mubr.bf16.gmra.mrb[0].mxu0 %v3613
    %v4303 = vpop.f32.mrb[0].mxu0
    %v4304 = vadd.f32 %v3594, %v4303
    %v4305 = vpop.f32.mrb[0].mxu0
    %v4306 = vadd.f32 %v3598, %v4305
    %v4307 = vpop.f32.mrb[0].mxu0
    %v4308 = vpop.f32.mrb[0].mxu0
    %4309 = vdwg.mxu0
    %4310 = vmatprep.subr.bf16.mxu0 %v4046
    %4311 = vmatpush1.bf16.msra.mxu0 %v4045
    %4312 = vmatprep.subr.bf16.mxu0 %v4048
    %4313 = vmatpush1.bf16.msra.mxu0 %v4047
    %4314 = vmatprep.subr.bf16.mxu0 %v4050
    %4315 = vmatpush1.bf16.msra.mxu0 %v4049
    %4316 = vmatprep.subr.bf16.mxu0 %v4052
    %4317 = vmatpush1.bf16.msra.mxu0 %v4051
    %4318 = vmatprep.subr.bf16.mxu0 %v4054
    %4319 = vmatpush1.bf16.msra.mxu0 %v4053
    %4320 = vmatprep.subr.bf16.mxu0 %v4056
    %4321 = vmatpush1.bf16.msra.mxu0 %v4055
    %4322 = vmatprep.subr.bf16.mxu0 %v4058
    %4323 = vmatpush1.bf16.msra.mxu0 %v4057
    %4324 = vmatprep.subr.bf16.mxu0 %v4060
    %4325 = vmatpush1.bf16.msra.mxu0 %v4059
    %4326 = vmatprep.subr.bf16.mxu0 %v4062
    %4327 = vmatpush1.bf16.msra.mxu0 %v4061
    %4328 = vmatprep.subr.bf16.mxu0 %v4064
    %4329 = vmatpush1.bf16.msra.mxu0 %v4063
    %4330 = vmatprep.subr.bf16.mxu0 %v4066
    %4331 = vmatpush1.bf16.msra.mxu0 %v4065
    %4332 = vmatprep.subr.bf16.mxu0 %v4068
    %4333 = vmatpush1.bf16.msra.mxu0 %v4067
    %4334 = vmatprep.subr.bf16.mxu0 %v4070
    %4335 = vmatpush1.bf16.msra.mxu0 %v4069
    %4336 = vmatprep.subr.bf16.mxu0 %v4072
    %4337 = vmatpush1.bf16.msra.mxu0 %v4071
    %4338 = vmatprep.subr.bf16.mxu0 %v4074
    %4339 = vmatpush1.bf16.msra.mxu0 %v4073
    %4340 = vmatprep.subr.bf16.mxu0 %v4076
    %4341 = vmatpush1.bf16.msra.mxu0 %v4075
    %4342 = vmatprep.mubr.bf16.mxu0 %v3616
    %4343 = vmatmul.mubr.bf16.gmra.mrb[0].mxu0 %v3615
    %v4344 = vpop.f32.mrb[0].mxu0
    %v4345 = vadd.f32 %v4304, %v4344
    %v4346 = vpop.f32.mrb[0].mxu0
    %v4347 = vadd.f32 %v4306, %v4346
    %v4348 = vpop.f32.mrb[0].mxu0
    %v4349 = vpop.f32.mrb[0].mxu0
    %4350 = vdwg.mxu0
    %4351 = vmatprep.subr.bf16.mxu0 %v4078
    %4352 = vmatpush1.bf16.msra.mxu0 %v4077
    %4353 = vmatprep.subr.bf16.mxu0 %v4080
    %4354 = vmatpush1.bf16.msra.mxu0 %v4079
    %4355 = vmatprep.subr.bf16.mxu0 %v4082
    %4356 = vmatpush1.bf16.msra.mxu0 %v4081
    %4357 = vmatprep.subr.bf16.mxu0 %v4084
    %4358 = vmatpush1.bf16.msra.mxu0 %v4083
    %4359 = vmatprep.subr.bf16.mxu0 %v4086
    %4360 = vmatpush1.bf16.msra.mxu0 %v4085
    %4361 = vmatprep.subr.bf16.mxu0 %v4088
    %4362 = vmatpush1.bf16.msra.mxu0 %v4087
    %4363 = vmatprep.subr.bf16.mxu0 %v4090
    %4364 = vmatpush1.bf16.msra.mxu0 %v4089
    %4365 = vmatprep.subr.bf16.mxu0 %v4092
    %4366 = vmatpush1.bf16.msra.mxu0 %v4091
    %4367 = vmatprep.subr.bf16.mxu0 %v4094
    %4368 = vmatpush1.bf16.msra.mxu0 %v4093
    %4369 = vmatprep.subr.bf16.mxu0 %v4096
    %4370 = vmatpush1.bf16.msra.mxu0 %v4095
    %4371 = vmatprep.subr.bf16.mxu0 %v4098
    %4372 = vmatpush1.bf16.msra.mxu0 %v4097
    %4373 = vmatprep.subr.bf16.mxu0 %v4100
    %4374 = vmatpush1.bf16.msra.mxu0 %v4099
    %4375 = vmatprep.subr.bf16.mxu0 %v4102
    %4376 = vmatpush1.bf16.msra.mxu0 %v4101
    %4377 = vmatprep.subr.bf16.mxu0 %v4104
    %4378 = vmatpush1.bf16.msra.mxu0 %v4103
    %4379 = vmatprep.subr.bf16.mxu0 %v4106
    %4380 = vmatpush1.bf16.msra.mxu0 %v4105
    %4381 = vmatprep.subr.bf16.mxu0 %v4108
    %4382 = vmatpush1.bf16.msra.mxu0 %v4107
    %4383 = vmatprep.mubr.bf16.mxu0 %v3618
    %4384 = vmatmul.mubr.bf16.gmra.mrb[0].mxu0 %v3617
    %v4385 = vpop.f32.mrb[0].mxu0
    %v4386 = vadd.f32 %v4345, %v4385
    %v4387 = vpop.f32.mrb[0].mxu0
    %v4388 = vadd.f32 %v4347, %v4387
    %v4389 = vpop.f32.mrb[0].mxu0
    %v4390 = vpop.f32.mrb[0].mxu0
    %4391 = vdwg.mxu0
    %4392 = vmatprep.subr.bf16.mxu0 %v4110
    %4393 = vmatpush1.bf16.msra.mxu0 %v4109
    %4394 = vmatprep.subr.bf16.mxu0 %v4112
    %4395 = vmatpush1.bf16.msra.mxu0 %v4111
    %4396 = vmatprep.subr.bf16.mxu0 %v4114
    %4397 = vmatpush1.bf16.msra.mxu0 %v4113
    %4398 = vmatprep.subr.bf16.mxu0 %v4116
    %4399 = vmatpush1.bf16.msra.mxu0 %v4115
    %4400 = vmatprep.subr.bf16.mxu0 %v4118
    %4401 = vmatpush1.bf16.msra.mxu0 %v4117
    %4402 = vmatprep.subr.bf16.mxu0 %v4120
    %4403 = vmatpush1.bf16.msra.mxu0 %v4119
    %4404 = vmatprep.subr.bf16.mxu0 %v4122
    %4405 = vmatpush1.bf16.msra.mxu0 %v4121
    %4406 = vmatprep.subr.bf16.mxu0 %v4124
    %4407 = vmatpush1.bf16.msra.mxu0 %v4123
    %4408 = vmatprep.subr.bf16.mxu0 %v4126
    %4409 = vmatpush1.bf16.msra.mxu0 %v4125
    %4410 = vmatprep.subr.bf16.mxu0 %v4128
    %4411 = vmatpush1.bf16.msra.mxu0 %v4127
    %4412 = vmatprep.subr.bf16.mxu0 %v4130
    %4413 = vmatpush1.bf16.msra.mxu0 %v4129
    %4414 = vmatprep.subr.bf16.mxu0 %v4132
    %4415 = vmatpush1.bf16.msra.mxu0 %v4131
    %4416 = vmatprep.subr.bf16.mxu0 %v4134
    %4417 = vmatpush1.bf16.msra.mxu0 %v4133
    %4418 = vmatprep.subr.bf16.mxu0 %v4136
    %4419 = vmatpush1.bf16.msra.mxu0 %v4135
    %4420 = vmatprep.subr.bf16.mxu0 %v4138
    %4421 = vmatpush1.bf16.msra.mxu0 %v4137
    %4422 = vmatprep.subr.bf16.mxu0 %v4140
    %4423 = vmatpush1.bf16.msra.mxu0 %v4139
    %4424 = vmatprep.mubr.bf16.mxu0 %v3620
    %4425 = vmatmul.mubr.bf16.gmra.mrb[0].mxu0 %v3619
    %v4426 = vpop.f32.mrb[0].mxu0
    %v4427 = vadd.f32 %v4386, %v4426
    %v4428 = vpop.f32.mrb[0].mxu0
    %v4429 = vadd.f32 %v4388, %v4428
    %v4430 = vpop.f32.mrb[0].mxu0
    %v4431 = vpop.f32.mrb[0].mxu0
    %4432 = vdwg.mxu0
    %v4433 = vtanh.pop %v4427
    %v4434 = vtanh.pop %v4429
    %4435 = vst [vmem:[#allocation15] sm:$0xff] %v4433
    %4436 = vst [vmem:[#allocation15 + $0x8] sm:$0xff] %v4434
    // Predicated region
    $region66: #{tpu_custom_call.1} parent=1 // pred_check
      _
    $region67: #{tpu_custom_call.1} parent=1 // pred_check_branch
      %4438 = sbr.rel (0) target = $region69
    $region68: #{tpu_custom_call.1} parent=1 // pred_region
      %s4440 = ssub.s32 256, 256
      %4441 = vsyncadd [#allocation5], %s4440
      %s4443 = sshll.u32 [#allocation15], 4
      %s4444 = int_to_ptr.vmem [resolvable:$true] %s4443
      %4446 = dma.vmem_to_hbm [thread:$0]  %s4444, 256, %s8, [#allocation5]
    $region69: #{tpu_custom_call.1} parent=1 // pred_fallthru
      _
    // Predicated region
    $region70: #{tpu_custom_call.1} parent=1 // pred_check
      _
    $region71: #{tpu_custom_call.1} parent=1 // pred_check_branch
      %4448 = sbr.rel (0) target = $region73
    $region72: #{tpu_custom_call.1} parent=1 // pred_region
      %4449 = dma.done [#allocation5], 256
    $region73: #{tpu_custom_call.1} parent=1 // pred_fallthru
      _
    %4450 = vsyncpa [#allocation4], 1
    %4451 = vsyncpa [#allocation7], 1
    %4452 = vsyncpa [#allocation10], 1
    %4453 = vsyncpa [#allocation13], 1
    %4454 = vsyncpa [#allocation5], 1

</llo_original>
